<compile_context>
chip_gen: v5e
topology: v5e:2x2
jax: 0.10.0
libtpu: 0.0.40
codegen_flags: <defaults>
</compile_context>

<pallas_src>
import functools
import math

import jax
import jax.numpy as jnp
from jax import lax
from jax.experimental import pallas as pl
from jax.experimental.pallas import tpu as pltpu


# ----------------------------- in-kernel helpers -----------------------------

def _mm(a, b):
    # a @ b  (contract a.dim1 with b.dim0), f32 accumulation
    return lax.dot_general(a, b, (((1,), (0,)), ((), ())),
                           preferred_element_type=jnp.float32)


def _mm_t(a, b):
    # a @ b.T (contract last dim of both) -- torch.nn.Linear(weight=(out,in))
    return lax.dot_general(a, b, (((1,), (1,)), ((), ())),
                           preferred_element_type=jnp.float32)


def _layernorm(v, gamma, eps=1e-5):
    mu = jnp.mean(v, axis=-1, keepdims=True)
    c = v - mu
    var = jnp.mean(c * c, axis=-1, keepdims=True)
    return c * lax.rsqrt(var + eps) * gamma


def _sigmoid(v):
    # numerically stable sigmoid; reciprocal on the EUP (approx is fine for gates)
    e = jnp.exp(-jnp.abs(v))
    r = pl.reciprocal(1.0 + e, approx=True)
    return jnp.where(v >= 0.0, r, e * r)


def _silu(v):
    return v * _sigmoid(v)


def _log_sigmoid(v):
    return jnp.minimum(v, 0.0) - jnp.log(1.0 + jnp.exp(-jnp.abs(v)))


def _erf(v):
    # Abramowitz–Stegun 7.1.26 (fp32-exact), avoids relying on lax.erf lowering.
    a1, a2, a3, a4, a5 = 0.254829592, -0.284496736, 1.421413741, -1.453152027, 1.061405429
    p = 0.3275911
    s = jnp.where(v >= 0.0, 1.0, -1.0)
    a = jnp.abs(v)
    t = 1.0 / (1.0 + p * a)
    poly = ((((a5 * t + a4) * t + a3) * t + a2) * t + a1) * t
    return s * (1.0 - poly * jnp.exp(-a * a))


def _gelu_exact(v):
    # matches torch.nn.GELU() (approximate='none')
    return 0.5 * v * (1.0 + _erf(v * (1.0 / math.sqrt(2.0))))


# --------------------------------- the kernel --------------------------------

def xlstm_block_kernel(x_ref, ln1_g_ref, w_up_ref, conv_w_ref, conv_b_ref,
                       wq_band_ref, wk_band_ref, wv_band_ref,
                       wif_q_ref, wif_k_ref, wif_v_ref, b_if_ref,
                       maskf_ref, eye_ref, hsel_ref, mh_g_ref, skip_ref,
                       w_down_ref, ln2_g_ref, w_ffup_ref, w_ffdn_ref,
                       out_ref, h_acc_ref, *, seq_len):
    S = seq_len
    M = x_ref.shape[0]                  # packed rows = batch_tile * seq_len
    ID = conv_w_ref.shape[1]            # inner (up-projected) mLSTM dim
    K = conv_w_ref.shape[0]             # conv1d kernel size
    QB = (wq_band_ref.shape[0] + 1) // 2   # qkv_proj_blocksize
    NH = wif_q_ref.shape[0] // 2        # mLSTM cell heads
    DH = ID // NH
    UP = w_ffdn_ref.shape[1]            # FFN up-proj dim
    bf16 = jnp.bfloat16

    x = x_ref[...]                                            # (M, D) f32

    # ---- pre-norm + mLSTM up-projection (bf16 operands, f32 accumulation) ----
    xn = _layernorm(x, ln1_g_ref[...])
    x_inner = _mm_t(xn.astype(bf16), w_up_ref[...])           # (M, 2*ID) f32
    x_m = x_inner[:, :ID]
    z = x_inner[:, ID:]

    # ---- causal depthwise conv1d along the sequence axis (sublane rolls) ----
    seq_pos = lax.broadcasted_iota(jnp.int32, (M, 1), 0) % S
    conv = x_m * conv_w_ref[K - 1:K, :] + conv_b_ref[...]     # tap d = 0
    for d in range(1, K):
        shifted = jnp.where(seq_pos >= d,
                            pltpu.roll(x_m, shift=d, axis=0), 0.0)
        conv = conv + shifted * conv_w_ref[K - 1 - d:K - d, :]
    conv_act = _silu(conv)                                    # (M, ID)

    # ---- grouped q/k/v projections (LinearHeadwiseExpand) as banded lane MACs ----
    # never materializes the (ID, ID) block-diagonal weight; q/k share rolls.
    c_rolls = {0: conv_act}
    x_rolls = {0: x_m}
    for d in range(1, QB):
        c_rolls[d] = pltpu.roll(conv_act, shift=(-d) % ID, axis=1)
        c_rolls[-d] = pltpu.roll(conv_act, shift=d, axis=1)
        x_rolls[d] = pltpu.roll(x_m, shift=(-d) % ID, axis=1)
        x_rolls[-d] = pltpu.roll(x_m, shift=d, axis=1)

    ctr = QB - 1

    def banded(rolls, band_ref):
        acc = rolls[0] * band_ref[ctr:ctr + 1, :]
        for d in range(1, QB):
            acc = acc + rolls[d] * band_ref[ctr + d:ctr + d + 1, :]
            acc = acc + rolls[-d] * band_ref[ctr - d:ctr - d + 1, :]
        return acc

    q = banded(c_rolls, wq_band_ref)                          # (M, ID) f32
    k = banded(c_rolls, wk_band_ref)
    v = banded(x_rolls, wv_band_ref)
    q_b = q.astype(bf16)
    k_b = k.astype(bf16)
    v_b = v.astype(bf16)

    # ---- fused i/f gate pre-activations; cat([q,k,v]) is never materialized ----
    gates = (_mm_t(q_b, wif_q_ref[...]) + _mm_t(k_b, wif_k_ref[...]) +
             _mm_t(v_b, wif_v_ref[...]) + b_if_ref[...])      # (M, 2*NH) f32
    ipre = gates[:, :NH]
    fpre = gates[:, NH:]

    maskf = maskf_ref[...]                                    # (M, M) 0/1 f32 (static)
    neg_add = (maskf - 1.0) * 1e30                            # 0 valid / -1e30 invalid
    eye = eye_ref[...]                                        # (M, M) identity

    # per-sequence inclusive cumsum of log forget gates, all heads at once
    csum = _mm(maskf, _log_sigmoid(fpre))                     # (M, NH) f32
    rt = ipre - csum                                          # (M, NH) f32

    inv_sqrt_dh = 1.0 / math.sqrt(DH)

    # ---- parallel stabilized mLSTM cell, per head (writes to VMEM scratch) ----
    for h in range(NH):
        lo = h * DH
        qh = q_b[:, lo:lo + DH]
        kh = k_b[:, lo:lo + DH]
        vh = v_b[:, lo:lo + DH]

        # row-orientation of rt[:, h] via identity mask + sublane reduce
        # (tiny "transpose" without XLU-transpose or an extra (NH,M)@(M,M) matmul)
        rt_row = jnp.sum(eye * rt[:, h:h + 1], axis=0, keepdims=True)   # (1, M)

        # log D matrix: [i, j] = csum[i] - csum[j] + ipre[j] on valid (i, j)
        log_d = csum[:, h:h + 1] + rt_row + neg_add           # (M, M) f32
        m = jnp.max(log_d, axis=-1, keepdims=True)            # row-wise stabilization
        d_mat = jnp.exp(log_d - m)                            # masked entries -> 0

        qk = _mm_t(qh, kh) * inv_sqrt_dh                      # (M, M) f32
        c_mat = qk * d_mat
        normalizer = jnp.maximum(
            jnp.abs(jnp.sum(c_mat, axis=-1, keepdims=True)),
            jnp.exp(-m))
        c_norm = (c_mat / (normalizer + 1e-6)).astype(bf16)   # exact divide
        h_acc_ref[:, lo:lo + DH] = _mm(c_norm, vh)            # (M, DH) f32

    # ---- MultiHeadLayerNorm (per-head group norm) on the full tile ----
    h_full = h_acc_ref[...]                                   # (M, ID) f32
    hsel = hsel_ref[...]                                      # (ID, NH) head indicator
    mean = _mm(h_full, hsel) * (1.0 / DH)                     # (M, NH)
    ex2 = _mm(h_full * h_full, hsel) * (1.0 / DH)
    var = jnp.maximum(ex2 - mean * mean, 0.0)
    rstd = lax.rsqrt(var + 1e-5)
    mean_f = _mm_t(mean, hsel)                                # broadcast back to (M, ID)
    rstd_f = _mm_t(rstd, hsel)
    h_norm = (h_full - mean_f) * rstd_f * mh_g_ref[...]

    h_skip = h_norm + skip_ref[...] * conv_act                # learnable skip
    h_state = h_skip * _silu(z)                               # output gate
    y_mlstm = _mm_t(h_state.astype(bf16), w_down_ref[...])    # (M, D)
    x1 = x + y_mlstm                                          # residual

    # ---- gated feed-forward (pre-norm + residual) ----
    xn2 = _layernorm(x1, ln2_g_ref[...])
    up = _mm_t(xn2.astype(bf16), w_ffup_ref[...])             # (M, 2*UP)
    gate = up[:, :UP]
    upp = up[:, UP:]
    ff_in = (_gelu_exact(gate) * upp).astype(bf16)
    y_ffn = _mm_t(ff_in, w_ffdn_ref[...])                     # (M, D)
    out_ref[...] = x1 + y_ffn


# --------------------------------- wrapper -----------------------------------

def _grouped_to_band(w, block):
    # w: (G, block, block) grouped LinearHeadwiseExpand weight ((out, in) per head).
    # Returns (2*block-1, ID) banded coefficients: band[block-1+d, g*block+r] = w[g, r, r+d].
    G = w.shape[0]
    ID = G * block
    rows = []
    for d in range(-(block - 1), block):
        cols = []
        for r in range(block):
            c = r + d
            if 0 <= c < block:
                cols.append(w[:, r, c])
            else:
                cols.append(jnp.zeros((G,), w.dtype))
        rows.append(jnp.stack(cols, axis=1).reshape(ID))
    return jnp.stack(rows, axis=0).astype(jnp.float32)


def _pick_batch_tile(B, S, max_rows=128):
    # cap packed rows at 128 (MXU row fill vs Bt^2 cross-sequence waste),
    # prefer a grid of >= 2 so both TensorCores get work on v7x megacore.
    cands = [bt for bt in range(1, B + 1)
             if B % bt == 0 and (bt * S) % 8 == 0 and bt * S <= max_rows]
    if not cands:
        cands = [bt for bt in range(1, B + 1)
                 if B % bt == 0 and (bt * S) % 8 == 0]
    if not cands:
        return B
    pref = [bt for bt in cands if B // bt >= 2] or cands
    return max(pref)


def xlstm_block_apply(x, params, *, batch_tile=None):
    B, S, D = x.shape
    ID = params["conv_w"].shape[1]
    NH = params["wi"].shape[0]
    DH = ID // NH
    qb = params["wq"].shape[1]
    bf16 = jnp.bfloat16

    if batch_tile is None:
        batch_tile = _pick_batch_tile(B, S)
    Bt = batch_tile
    assert B % Bt == 0
    M = Bt * S
    assert M % 8 == 0 or Bt == B, "packed rows per grid step must be a multiple of 8"

    # fuse i/f gate weights and split per q/k/v input (no cat([q,k,v]) in-kernel)
    w_if = jnp.concatenate([params["wi"], params["wf"]], axis=0)     # (2*NH, 3*ID)
    w_if_q = w_if[:, :ID].astype(bf16)
    w_if_k = w_if[:, ID:2 * ID].astype(bf16)
    w_if_v = w_if[:, 2 * ID:].astype(bf16)
    b_if = jnp.concatenate([params["bi"], params["bf"]], axis=1)     # (1, 2*NH)

    # banded (grouped) q/k/v projection weights -- no dense block-diag ever built
    wq_band = _grouped_to_band(params["wq"], qb)
    wk_band = _grouped_to_band(params["wk"], qb)
    wv_band = _grouped_to_band(params["wv"], qb)

    # static block-diagonal causal mask, identity, head indicator (tiny, VMEM-resident)
    idx = jnp.arange(M)
    same_seq = (idx[:, None] // S) == (idx[None, :] // S)
    maskf = (same_seq & (idx[:, None] >= idx[None, :])).astype(jnp.float32)
    eye = jnp.eye(M, dtype=jnp.float32)
    hsel = (jnp.arange(ID)[:, None] // DH
            == jnp.arange(NH)[None, :]).astype(jnp.float32)

    weight_inputs = [
        params["ln1_g"], params["w_up"].astype(bf16),
        params["conv_w"], params["conv_b"],
        wq_band, wk_band, wv_band,
        w_if_q, w_if_k, w_if_v, b_if,
        maskf, eye, hsel,
        params["mh_g"], params["skip"],
        params["w_down"].astype(bf16),
        params["ln2_g"],
        params["w_ffup"].astype(bf16), params["w_ffdn"].astype(bf16),
    ]

    # constant weights: whole-array VMEM residency (single buffer, DMA'd once,
    # never re-fetched across grid steps) instead of double-buffered BlockSpecs.
    vmem_resident = pl.BlockSpec(memory_space=pltpu.MemorySpace.VMEM)

    x2d = x.reshape(B * S, D)
    kernel = functools.partial(xlstm_block_kernel, seq_len=S)

    # TODO(synk): at production widths (D >= 2048, ID = 2*D, long S) tile the big
    # weights (w_up/w_down/w_ffup/w_ffdn) over ID/UP with an extra "arbitrary" grid
    # axis, and tile the per-head (M, M) score region flash-style over kv chunks
    # (or use a block-banded (M, S) D-matrix) so the kernel fits v7x's 64 MiB VMEM.
    out2d = pl.pallas_call(
        kernel,
        out_shape=jax.ShapeDtypeStruct((B * S, D), jnp.float32),
        grid=(B // Bt,),
        in_specs=[pl.BlockSpec((M, D), lambda b: (b, 0))]
                 + [vmem_resident] * len(weight_inputs),
        out_specs=pl.BlockSpec((M, D), lambda b: (b, 0)),
        scratch_shapes=[pltpu.VMEM((M, ID), jnp.float32)],     # per-head output accumulator
        compiler_params=pltpu.CompilerParams(
            # independent batch tiles -> shard across TensorCores (megacore / v7x)
            dimension_semantics=("parallel",),
            # 48 MiB leaves headroom on v7x (64 MiB/TC); can be raised ~100 MiB on v5e/v6e
            vmem_limit_bytes=48 * 1024 * 1024),
    )(x2d, *weight_inputs)
    return out2d.reshape(B, S, D)


# --------------------------- deterministic params ----------------------------

def init_params(key, D, ID, K, qkv_block, NH, UP):
    ks = jax.random.split(key, 12)

    def nrm(k, shape, scale):
        return (scale * jax.random.normal(k, shape)).astype(jnp.float32)

    G = ID // qkv_block
    return dict(
        ln1_g=jnp.ones((1, D), jnp.float32),                  # pre-mLSTM LayerNorm weight
        w_up=nrm(ks[0], (2 * ID, D), 0.05),                   # proj_up (no bias)
        conv_w=nrm(ks[1], (K, ID), 0.2),                      # depthwise conv taps (K, ID)
        conv_b=nrm(ks[2], (1, ID), 0.1),                      # conv bias
        wq=nrm(ks[3], (G, qkv_block, qkv_block), 0.2),        # grouped LinearHeadwiseExpand
        wk=nrm(ks[4], (G, qkv_block, qkv_block), 0.2),
        wv=nrm(ks[5], (G, qkv_block, qkv_block), 0.2),
        wi=nrm(ks[6], (NH, 3 * ID), 0.02),                    # igate Linear(3*ID -> NH)
        bi=nrm(ks[7], (1, NH), 0.1),
        wf=nrm(ks[8], (NH, 3 * ID), 0.02),                    # fgate Linear(3*ID -> NH)
        bf=jnp.linspace(3.0, 6.0, NH, dtype=jnp.float32).reshape(1, NH),
        mh_g=jnp.ones((1, ID), jnp.float32),                  # MultiHeadLayerNorm weight
        skip=jnp.ones((1, ID), jnp.float32),                  # learnable_skip init = ones
        w_down=nrm(ks[9], (D, ID), 0.05),                     # proj_down (no bias)
        ln2_g=jnp.ones((1, D), jnp.float32),                  # pre-FFN LayerNorm weight
        w_ffup=nrm(ks[10], (2 * UP, D), 0.05),                # FFN proj_up (no bias)
        w_ffdn=nrm(ks[11], (D, UP), 0.05),                    # FFN proj_down (no bias)
    )


if __name__ == "__main__":
    # Small config consistent with xLSTMBlockConfig(mlstm=..., feedforward=...):
    #   embedding_dim D=64, proj_factor=2.0 -> inner dim ID=128,
    #   conv1d_kernel_size=4, qkv_proj_blocksize=4, num_heads=4 (head dim 32),
    #   FFN proj_factor=1.3 -> round_up(83.2, 64) = 128.
    B, S, D = 4, 8, 64
    ID = 128
    K = 4
    qkv_block = 4
    NH = 4
    UP = 128

    key = jax.random.PRNGKey(0)
    kx, kp = jax.random.split(key)
    x = jax.random.normal(kx, (B, S, D), jnp.float32)
    params = init_params(kp, D, ID, K, qkv_block, NH, UP)

    # heuristic picks batch_tile=2 -> 2 sequences (16 rows) per grid step, grid of 2
    out = xlstm_block_apply(x, params)
    out = jax.block_until_ready(out)
    assert out.shape == (B, S, D)
    assert bool(jnp.all(jnp.isfinite(out)))
    print("KERNEL_OK")
</pallas_src>

<mosaic_0001>
module attributes {stable_mosaic.version = 11 : i64} {
  func.func @xlstm_block_kernel(%arg0: i32, %arg1: memref<16x64xf32, #tpu.memory_space<vmem>>, %arg2: memref<1x64xf32, #tpu.memory_space<vmem>>, %arg3: memref<256x64xbf16, #tpu.memory_space<vmem>>, %arg4: memref<4x128xf32, #tpu.memory_space<vmem>>, %arg5: memref<1x128xf32, #tpu.memory_space<vmem>>, %arg6: memref<7x128xf32, #tpu.memory_space<vmem>>, %arg7: memref<7x128xf32, #tpu.memory_space<vmem>>, %arg8: memref<7x128xf32, #tpu.memory_space<vmem>>, %arg9: memref<8x128xbf16, #tpu.memory_space<vmem>>, %arg10: memref<8x128xbf16, #tpu.memory_space<vmem>>, %arg11: memref<8x128xbf16, #tpu.memory_space<vmem>>, %arg12: memref<1x8xf32, #tpu.memory_space<vmem>>, %arg13: memref<16x16xf32, #tpu.memory_space<vmem>>, %arg14: memref<16x16xf32, #tpu.memory_space<vmem>>, %arg15: memref<128x4xf32, #tpu.memory_space<vmem>>, %arg16: memref<1x128xf32, #tpu.memory_space<vmem>>, %arg17: memref<1x128xf32, #tpu.memory_space<vmem>>, %arg18: memref<64x128xbf16, #tpu.memory_space<vmem>>, %arg19: memref<1x64xf32, #tpu.memory_space<vmem>>, %arg20: memref<256x64xbf16, #tpu.memory_space<vmem>>, %arg21: memref<64x128xbf16, #tpu.memory_space<vmem>>, %arg22: memref<16x64xf32, #tpu.memory_space<vmem>>, %arg23: memref<16x128xf32, #tpu.memory_space<vmem>>) attributes {dimension_semantics = [#tpu.dimension_semantics<parallel>], iteration_bounds = array<i64: 2>, scalar_prefetch = 0 : i64, scratch_operands = 1 : i64, tpu.core_type = #tpu.core_type<tc>, window_params = [{transform_indices = @transform_0, window_bounds = array<i64: 16, 64>}, {pipeline_mode = #tpu.pipeline_mode<synchronous>, transform_indices = @transform_1, window_bounds = array<i64: 1, 64>}, {pipeline_mode = #tpu.pipeline_mode<synchronous>, transform_indices = @transform_2, window_bounds = array<i64: 256, 64>}, {pipeline_mode = #tpu.pipeline_mode<synchronous>, transform_indices = @transform_3, window_bounds = array<i64: 4, 128>}, {pipeline_mode = #tpu.pipeline_mode<synchronous>, transform_indices = @transform_4, window_bounds = array<i64: 1, 128>}, {pipeline_mode = #tpu.pipeline_mode<synchronous>, transform_indices = @transform_5, window_bounds = array<i64: 7, 128>}, {pipeline_mode = #tpu.pipeline_mode<synchronous>, transform_indices = @transform_6, window_bounds = array<i64: 7, 128>}, {pipeline_mode = #tpu.pipeline_mode<synchronous>, transform_indices = @transform_7, window_bounds = array<i64: 7, 128>}, {pipeline_mode = #tpu.pipeline_mode<synchronous>, transform_indices = @transform_8, window_bounds = array<i64: 8, 128>}, {pipeline_mode = #tpu.pipeline_mode<synchronous>, transform_indices = @transform_9, window_bounds = array<i64: 8, 128>}, {pipeline_mode = #tpu.pipeline_mode<synchronous>, transform_indices = @transform_10, window_bounds = array<i64: 8, 128>}, {pipeline_mode = #tpu.pipeline_mode<synchronous>, transform_indices = @transform_11, window_bounds = array<i64: 1, 8>}, {pipeline_mode = #tpu.pipeline_mode<synchronous>, transform_indices = @transform_12, window_bounds = array<i64: 16, 16>}, {pipeline_mode = #tpu.pipeline_mode<synchronous>, transform_indices = @transform_13, window_bounds = array<i64: 16, 16>}, {pipeline_mode = #tpu.pipeline_mode<synchronous>, transform_indices = @transform_14, window_bounds = array<i64: 128, 4>}, {pipeline_mode = #tpu.pipeline_mode<synchronous>, transform_indices = @transform_15, window_bounds = array<i64: 1, 128>}, {pipeline_mode = #tpu.pipeline_mode<synchronous>, transform_indices = @transform_16, window_bounds = array<i64: 1, 128>}, {pipeline_mode = #tpu.pipeline_mode<synchronous>, transform_indices = @transform_17, window_bounds = array<i64: 64, 128>}, {pipeline_mode = #tpu.pipeline_mode<synchronous>, transform_indices = @transform_18, window_bounds = array<i64: 1, 64>}, {pipeline_mode = #tpu.pipeline_mode<synchronous>, transform_indices = @transform_19, window_bounds = array<i64: 256, 64>}, {pipeline_mode = #tpu.pipeline_mode<synchronous>, transform_indices = @transform_20, window_bounds = array<i64: 64, 128>}, {transform_indices = @transform_21, window_bounds = array<i64: 16, 64>}]} {
    %c0 = arith.constant 0 : index
    %c0_0 = arith.constant 0 : index
    %0 = vector.load %arg1[%c0, %c0_0] : memref<16x64xf32, #tpu.memory_space<vmem>>, vector<16x64xf32>
    %c0_1 = arith.constant 0 : index
    %c0_2 = arith.constant 0 : index
    %1 = vector.load %arg2[%c0_1, %c0_2] : memref<1x64xf32, #tpu.memory_space<vmem>>, vector<1x64xf32>
    %cst = arith.constant dense<0.000000e+00> : vector<16xf32>
    %2 = vector.multi_reduction <add>, %0, %cst [1] : vector<16x64xf32> to vector<16xf32>
    %3 = vector.shape_cast %2 : vector<16xf32> to vector<16x1xf32>
    %cst_3 = arith.constant 6.400000e+01 : f32
    %4 = vector.broadcast %cst_3 : f32 to vector<16x1xf32>
    %5 = arith.divf %3, %4 : vector<16x1xf32>
    %6 = vector.broadcast %5 : vector<16x1xf32> to vector<16x64xf32>
    %7 = arith.subf %0, %6 : vector<16x64xf32>
    %8 = arith.mulf %7, %7 : vector<16x64xf32>
    %cst_4 = arith.constant dense<0.000000e+00> : vector<16xf32>
    %9 = vector.multi_reduction <add>, %8, %cst_4 [1] : vector<16x64xf32> to vector<16xf32>
    %10 = vector.shape_cast %9 : vector<16xf32> to vector<16x1xf32>
    %cst_5 = arith.constant 6.400000e+01 : f32
    %11 = vector.broadcast %cst_5 : f32 to vector<16x1xf32>
    %12 = arith.divf %10, %11 : vector<16x1xf32>
    %cst_6 = arith.constant 9.99999974E-6 : f32
    %13 = vector.broadcast %cst_6 : f32 to vector<16x1xf32>
    %14 = arith.addf %12, %13 : vector<16x1xf32>
    %15 = math.rsqrt %14 : vector<16x1xf32>
    %16 = vector.broadcast %15 : vector<16x1xf32> to vector<16x64xf32>
    %17 = arith.mulf %7, %16 : vector<16x64xf32>
    %18 = vector.broadcast %1 : vector<1x64xf32> to vector<16x64xf32>
    %19 = arith.mulf %17, %18 : vector<16x64xf32>
    %20 = arith.truncf %19 : vector<16x64xf32> to vector<16x64xbf16>
    %c0_7 = arith.constant 0 : index
    %c0_8 = arith.constant 0 : index
    %21 = vector.load %arg3[%c0_7, %c0_8] : memref<256x64xbf16, #tpu.memory_space<vmem>>, vector<256x64xbf16>
    %cst_9 = arith.constant dense<0.000000e+00> : vector<16x256xf32>
    %22 = tpu.matmul %20, %21, %cst_9 {dimension_numbers = #tpu.dot_dimension_numbers<[1], [1], [0], [0], [0, 0, 1, 0], [], []>} : vector<16x64xbf16>, vector<256x64xbf16>, vector<16x256xf32> -> vector<16x256xf32>
    %23 = vector.extract_strided_slice %22 {offsets = [0, 0], sizes = [16, 128], strides = [1, 1]} : vector<16x256xf32> to vector<16x128xf32>
    %24 = vector.extract_strided_slice %22 {offsets = [0, 128], sizes = [16, 128], strides = [1, 1]} : vector<16x256xf32> to vector<16x128xf32>
    %25 = tpu.iota {dimensions = array<i32: 0>} : vector<16x1xi32>
    %c8_i32 = arith.constant 8 : i32
    %c0_i32 = arith.constant 0 : i32
    %26 = arith.cmpi eq, %c8_i32, %c0_i32 : i32
    %c1_i32 = arith.constant 1 : i32
    %27 = arith.select %26, %c1_i32, %c8_i32 : i32
    %28 = vector.broadcast %27 : i32 to vector<16x1xi32>
    %29 = arith.remsi %25, %28 : vector<16x1xi32>
    %c0_i32_10 = arith.constant 0 : i32
    %30 = vector.broadcast %c0_i32_10 : i32 to vector<16x1xi32>
    %31 = arith.cmpi ne, %29, %30 : vector<16x1xi32>
    %c0_i32_11 = arith.constant 0 : i32
    %32 = vector.broadcast %c0_i32_11 : i32 to vector<16x1xi32>
    %33 = arith.cmpi slt, %29, %32 : vector<16x1xi32>
    %c0_i32_12 = arith.constant 0 : i32
    %34 = arith.cmpi slt, %27, %c0_i32_12 : i32
    %35 = vector.broadcast %34 : i1 to vector<16x1xi1>
    %36 = vector.broadcast %35 : vector<16x1xi1> to vector<16x1xi1>
    %37 = arith.xori %33, %36 : vector<16x1xi1>
    %38 = arith.andi %37, %31 : vector<16x1xi1>
    %39 = vector.broadcast %27 : i32 to vector<16x1xi32>
    %40 = arith.addi %29, %39 : vector<16x1xi32>
    %41 = arith.select %38, %40, %29 : vector<16x1xi1>, vector<16x1xi32>
    %c3 = arith.constant 3 : index
    %c0_13 = arith.constant 0 : index
    %42 = vector.load %arg4[%c3, %c0_13] : memref<4x128xf32, #tpu.memory_space<vmem>>, vector<1x128xf32>
    %43 = vector.broadcast %42 : vector<1x128xf32> to vector<16x128xf32>
    %44 = arith.mulf %23, %43 : vector<16x128xf32>
    %c0_14 = arith.constant 0 : index
    %c0_15 = arith.constant 0 : index
    %45 = vector.load %arg5[%c0_14, %c0_15] : memref<1x128xf32, #tpu.memory_space<vmem>>, vector<1x128xf32>
    %46 = vector.broadcast %45 : vector<1x128xf32> to vector<16x128xf32>
    %47 = arith.addf %44, %46 : vector<16x128xf32>
    %c1_i32_16 = arith.constant 1 : i32
    %48 = vector.broadcast %c1_i32_16 : i32 to vector<16x1xi32>
    %49 = arith.cmpi sge, %41, %48 : vector<16x1xi32>
    %c1_i32_17 = arith.constant 1 : i32
    %50 = tpu.dynamic_rotate %23 by %c1_i32_17 dim 0 : vector<16x128xf32>, i32 -> vector<16x128xf32>
    %cst_18 = arith.constant 0.000000e+00 : f32
    %51 = vector.shape_cast %49 : vector<16x1xi1> to vector<16x1xi1>
    %52 = vector.broadcast %51 : vector<16x1xi1> to vector<16x128xi1>
    %53 = vector.broadcast %cst_18 : f32 to vector<16x128xf32>
    %54 = arith.select %52, %50, %53 : vector<16x128xi1>, vector<16x128xf32>
    %c2 = arith.constant 2 : index
    %c0_19 = arith.constant 0 : index
    %55 = vector.load %arg4[%c2, %c0_19] : memref<4x128xf32, #tpu.memory_space<vmem>>, vector<1x128xf32>
    %56 = vector.broadcast %55 : vector<1x128xf32> to vector<16x128xf32>
    %57 = arith.mulf %54, %56 : vector<16x128xf32>
    %58 = arith.addf %47, %57 : vector<16x128xf32>
    %c2_i32 = arith.constant 2 : i32
    %59 = vector.broadcast %c2_i32 : i32 to vector<16x1xi32>
    %60 = arith.cmpi sge, %41, %59 : vector<16x1xi32>
    %c2_i32_20 = arith.constant 2 : i32
    %61 = tpu.dynamic_rotate %23 by %c2_i32_20 dim 0 : vector<16x128xf32>, i32 -> vector<16x128xf32>
    %cst_21 = arith.constant 0.000000e+00 : f32
    %62 = vector.shape_cast %60 : vector<16x1xi1> to vector<16x1xi1>
    %63 = vector.broadcast %62 : vector<16x1xi1> to vector<16x128xi1>
    %64 = vector.broadcast %cst_21 : f32 to vector<16x128xf32>
    %65 = arith.select %63, %61, %64 : vector<16x128xi1>, vector<16x128xf32>
    %c1 = arith.constant 1 : index
    %c0_22 = arith.constant 0 : index
    %66 = vector.load %arg4[%c1, %c0_22] : memref<4x128xf32, #tpu.memory_space<vmem>>, vector<1x128xf32>
    %67 = vector.broadcast %66 : vector<1x128xf32> to vector<16x128xf32>
    %68 = arith.mulf %65, %67 : vector<16x128xf32>
    %69 = arith.addf %58, %68 : vector<16x128xf32>
    %c3_i32 = arith.constant 3 : i32
    %70 = vector.broadcast %c3_i32 : i32 to vector<16x1xi32>
    %71 = arith.cmpi sge, %41, %70 : vector<16x1xi32>
    %c3_i32_23 = arith.constant 3 : i32
    %72 = tpu.dynamic_rotate %23 by %c3_i32_23 dim 0 : vector<16x128xf32>, i32 -> vector<16x128xf32>
    %cst_24 = arith.constant 0.000000e+00 : f32
    %73 = vector.shape_cast %71 : vector<16x1xi1> to vector<16x1xi1>
    %74 = vector.broadcast %73 : vector<16x1xi1> to vector<16x128xi1>
    %75 = vector.broadcast %cst_24 : f32 to vector<16x128xf32>
    %76 = arith.select %74, %72, %75 : vector<16x128xi1>, vector<16x128xf32>
    %c0_25 = arith.constant 0 : index
    %c0_26 = arith.constant 0 : index
    %77 = vector.load %arg4[%c0_25, %c0_26] : memref<4x128xf32, #tpu.memory_space<vmem>>, vector<1x128xf32>
    %78 = vector.broadcast %77 : vector<1x128xf32> to vector<16x128xf32>
    %79 = arith.mulf %76, %78 : vector<16x128xf32>
    %80 = arith.addf %69, %79 : vector<16x128xf32>
    %81 = math.absf %80 : vector<16x128xf32>
    %cst_27 = arith.constant 0.000000e+00 : f32
    %82 = vector.broadcast %cst_27 : f32 to vector<16x128xf32>
    %83 = arith.subf %82, %81 : vector<16x128xf32>
    %84 = math.exp %83 : vector<16x128xf32>
    %cst_28 = arith.constant 1.000000e+00 : f32
    %85 = vector.broadcast %cst_28 : f32 to vector<16x128xf32>
    %86 = arith.addf %85, %84 : vector<16x128xf32>
    %87 = tpu.reciprocal %86 {approx = true} : vector<16x128xf32> -> vector<16x128xf32>
    %cst_29 = arith.constant 0.000000e+00 : f32
    %88 = vector.broadcast %cst_29 : f32 to vector<16x128xf32>
    %89 = arith.cmpf oge, %80, %88 : vector<16x128xf32>
    %90 = arith.mulf %84, %87 : vector<16x128xf32>
    %91 = arith.select %89, %87, %90 : vector<16x128xi1>, vector<16x128xf32>
    %92 = arith.mulf %80, %91 : vector<16x128xf32>
    %c127_i32 = arith.constant 127 : i32
    %93 = tpu.dynamic_rotate %92 by %c127_i32 dim 1 : vector<16x128xf32>, i32 -> vector<16x128xf32>
    %c1_i32_30 = arith.constant 1 : i32
    %94 = tpu.dynamic_rotate %92 by %c1_i32_30 dim 1 : vector<16x128xf32>, i32 -> vector<16x128xf32>
    %c127_i32_31 = arith.constant 127 : i32
    %95 = tpu.dynamic_rotate %23 by %c127_i32_31 dim 1 : vector<16x128xf32>, i32 -> vector<16x128xf32>
    %c1_i32_32 = arith.constant 1 : i32
    %96 = tpu.dynamic_rotate %23 by %c1_i32_32 dim 1 : vector<16x128xf32>, i32 -> vector<16x128xf32>
    %c126_i32 = arith.constant 126 : i32
    %97 = tpu.dynamic_rotate %92 by %c126_i32 dim 1 : vector<16x128xf32>, i32 -> vector<16x128xf32>
    %c2_i32_33 = arith.constant 2 : i32
    %98 = tpu.dynamic_rotate %92 by %c2_i32_33 dim 1 : vector<16x128xf32>, i32 -> vector<16x128xf32>
    %c126_i32_34 = arith.constant 126 : i32
    %99 = tpu.dynamic_rotate %23 by %c126_i32_34 dim 1 : vector<16x128xf32>, i32 -> vector<16x128xf32>
    %c2_i32_35 = arith.constant 2 : i32
    %100 = tpu.dynamic_rotate %23 by %c2_i32_35 dim 1 : vector<16x128xf32>, i32 -> vector<16x128xf32>
    %c125_i32 = arith.constant 125 : i32
    %101 = tpu.dynamic_rotate %92 by %c125_i32 dim 1 : vector<16x128xf32>, i32 -> vector<16x128xf32>
    %c3_i32_36 = arith.constant 3 : i32
    %102 = tpu.dynamic_rotate %92 by %c3_i32_36 dim 1 : vector<16x128xf32>, i32 -> vector<16x128xf32>
    %c125_i32_37 = arith.constant 125 : i32
    %103 = tpu.dynamic_rotate %23 by %c125_i32_37 dim 1 : vector<16x128xf32>, i32 -> vector<16x128xf32>
    %c3_i32_38 = arith.constant 3 : i32
    %104 = tpu.dynamic_rotate %23 by %c3_i32_38 dim 1 : vector<16x128xf32>, i32 -> vector<16x128xf32>
    %c3_39 = arith.constant 3 : index
    %c0_40 = arith.constant 0 : index
    %105 = vector.load %arg6[%c3_39, %c0_40] : memref<7x128xf32, #tpu.memory_space<vmem>>, vector<1x128xf32>
    %106 = vector.broadcast %105 : vector<1x128xf32> to vector<16x128xf32>
    %107 = arith.mulf %92, %106 : vector<16x128xf32>
    %c4 = arith.constant 4 : index
    %c0_41 = arith.constant 0 : index
    %108 = vector.load %arg6[%c4, %c0_41] : memref<7x128xf32, #tpu.memory_space<vmem>>, vector<1x128xf32>
    %109 = vector.broadcast %108 : vector<1x128xf32> to vector<16x128xf32>
    %110 = arith.mulf %93, %109 : vector<16x128xf32>
    %111 = arith.addf %107, %110 : vector<16x128xf32>
    %c2_42 = arith.constant 2 : index
    %c0_43 = arith.constant 0 : index
    %112 = vector.load %arg6[%c2_42, %c0_43] : memref<7x128xf32, #tpu.memory_space<vmem>>, vector<1x128xf32>
    %113 = vector.broadcast %112 : vector<1x128xf32> to vector<16x128xf32>
    %114 = arith.mulf %94, %113 : vector<16x128xf32>
    %115 = arith.addf %111, %114 : vector<16x128xf32>
    %c5 = arith.constant 5 : index
    %c0_44 = arith.constant 0 : index
    %116 = vector.load %arg6[%c5, %c0_44] : memref<7x128xf32, #tpu.memory_space<vmem>>, vector<1x128xf32>
    %117 = vector.broadcast %116 : vector<1x128xf32> to vector<16x128xf32>
    %118 = arith.mulf %97, %117 : vector<16x128xf32>
    %119 = arith.addf %115, %118 : vector<16x128xf32>
    %c1_45 = arith.constant 1 : index
    %c0_46 = arith.constant 0 : index
    %120 = vector.load %arg6[%c1_45, %c0_46] : memref<7x128xf32, #tpu.memory_space<vmem>>, vector<1x128xf32>
    %121 = vector.broadcast %120 : vector<1x128xf32> to vector<16x128xf32>
    %122 = arith.mulf %98, %121 : vector<16x128xf32>
    %123 = arith.addf %119, %122 : vector<16x128xf32>
    %c6 = arith.constant 6 : index
    %c0_47 = arith.constant 0 : index
    %124 = vector.load %arg6[%c6, %c0_47] : memref<7x128xf32, #tpu.memory_space<vmem>>, vector<1x128xf32>
    %125 = vector.broadcast %124 : vector<1x128xf32> to vector<16x128xf32>
    %126 = arith.mulf %101, %125 : vector<16x128xf32>
    %127 = arith.addf %123, %126 : vector<16x128xf32>
    %c0_48 = arith.constant 0 : index
    %c0_49 = arith.constant 0 : index
    %128 = vector.load %arg6[%c0_48, %c0_49] : memref<7x128xf32, #tpu.memory_space<vmem>>, vector<1x128xf32>
    %129 = vector.broadcast %128 : vector<1x128xf32> to vector<16x128xf32>
    %130 = arith.mulf %102, %129 : vector<16x128xf32>
    %131 = arith.addf %127, %130 : vector<16x128xf32>
    %c3_50 = arith.constant 3 : index
    %c0_51 = arith.constant 0 : index
    %132 = vector.load %arg7[%c3_50, %c0_51] : memref<7x128xf32, #tpu.memory_space<vmem>>, vector<1x128xf32>
    %133 = vector.broadcast %132 : vector<1x128xf32> to vector<16x128xf32>
    %134 = arith.mulf %92, %133 : vector<16x128xf32>
    %c4_52 = arith.constant 4 : index
    %c0_53 = arith.constant 0 : index
    %135 = vector.load %arg7[%c4_52, %c0_53] : memref<7x128xf32, #tpu.memory_space<vmem>>, vector<1x128xf32>
    %136 = vector.broadcast %135 : vector<1x128xf32> to vector<16x128xf32>
    %137 = arith.mulf %93, %136 : vector<16x128xf32>
    %138 = arith.addf %134, %137 : vector<16x128xf32>
    %c2_54 = arith.constant 2 : index
    %c0_55 = arith.constant 0 : index
    %139 = vector.load %arg7[%c2_54, %c0_55] : memref<7x128xf32, #tpu.memory_space<vmem>>, vector<1x128xf32>
    %140 = vector.broadcast %139 : vector<1x128xf32> to vector<16x128xf32>
    %141 = arith.mulf %94, %140 : vector<16x128xf32>
    %142 = arith.addf %138, %141 : vector<16x128xf32>
    %c5_56 = arith.constant 5 : index
    %c0_57 = arith.constant 0 : index
    %143 = vector.load %arg7[%c5_56, %c0_57] : memref<7x128xf32, #tpu.memory_space<vmem>>, vector<1x128xf32>
    %144 = vector.broadcast %143 : vector<1x128xf32> to vector<16x128xf32>
    %145 = arith.mulf %97, %144 : vector<16x128xf32>
    %146 = arith.addf %142, %145 : vector<16x128xf32>
    %c1_58 = arith.constant 1 : index
    %c0_59 = arith.constant 0 : index
    %147 = vector.load %arg7[%c1_58, %c0_59] : memref<7x128xf32, #tpu.memory_space<vmem>>, vector<1x128xf32>
    %148 = vector.broadcast %147 : vector<1x128xf32> to vector<16x128xf32>
    %149 = arith.mulf %98, %148 : vector<16x128xf32>
    %150 = arith.addf %146, %149 : vector<16x128xf32>
    %c6_60 = arith.constant 6 : index
    %c0_61 = arith.constant 0 : index
    %151 = vector.load %arg7[%c6_60, %c0_61] : memref<7x128xf32, #tpu.memory_space<vmem>>, vector<1x128xf32>
    %152 = vector.broadcast %151 : vector<1x128xf32> to vector<16x128xf32>
    %153 = arith.mulf %101, %152 : vector<16x128xf32>
    %154 = arith.addf %150, %153 : vector<16x128xf32>
    %c0_62 = arith.constant 0 : index
    %c0_63 = arith.constant 0 : index
    %155 = vector.load %arg7[%c0_62, %c0_63] : memref<7x128xf32, #tpu.memory_space<vmem>>, vector<1x128xf32>
    %156 = vector.broadcast %155 : vector<1x128xf32> to vector<16x128xf32>
    %157 = arith.mulf %102, %156 : vector<16x128xf32>
    %158 = arith.addf %154, %157 : vector<16x128xf32>
    %c3_64 = arith.constant 3 : index
    %c0_65 = arith.constant 0 : index
    %159 = vector.load %arg8[%c3_64, %c0_65] : memref<7x128xf32, #tpu.memory_space<vmem>>, vector<1x128xf32>
    %160 = vector.broadcast %159 : vector<1x128xf32> to vector<16x128xf32>
    %161 = arith.mulf %23, %160 : vector<16x128xf32>
    %c4_66 = arith.constant 4 : index
    %c0_67 = arith.constant 0 : index
    %162 = vector.load %arg8[%c4_66, %c0_67] : memref<7x128xf32, #tpu.memory_space<vmem>>, vector<1x128xf32>
    %163 = vector.broadcast %162 : vector<1x128xf32> to vector<16x128xf32>
    %164 = arith.mulf %95, %163 : vector<16x128xf32>
    %165 = arith.addf %161, %164 : vector<16x128xf32>
    %c2_68 = arith.constant 2 : index
    %c0_69 = arith.constant 0 : index
    %166 = vector.load %arg8[%c2_68, %c0_69] : memref<7x128xf32, #tpu.memory_space<vmem>>, vector<1x128xf32>
    %167 = vector.broadcast %166 : vector<1x128xf32> to vector<16x128xf32>
    %168 = arith.mulf %96, %167 : vector<16x128xf32>
    %169 = arith.addf %165, %168 : vector<16x128xf32>
    %c5_70 = arith.constant 5 : index
    %c0_71 = arith.constant 0 : index
    %170 = vector.load %arg8[%c5_70, %c0_71] : memref<7x128xf32, #tpu.memory_space<vmem>>, vector<1x128xf32>
    %171 = vector.broadcast %170 : vector<1x128xf32> to vector<16x128xf32>
    %172 = arith.mulf %99, %171 : vector<16x128xf32>
    %173 = arith.addf %169, %172 : vector<16x128xf32>
    %c1_72 = arith.constant 1 : index
    %c0_73 = arith.constant 0 : index
    %174 = vector.load %arg8[%c1_72, %c0_73] : memref<7x128xf32, #tpu.memory_space<vmem>>, vector<1x128xf32>
    %175 = vector.broadcast %174 : vector<1x128xf32> to vector<16x128xf32>
    %176 = arith.mulf %100, %175 : vector<16x128xf32>
    %177 = arith.addf %173, %176 : vector<16x128xf32>
    %c6_74 = arith.constant 6 : index
    %c0_75 = arith.constant 0 : index
    %178 = vector.load %arg8[%c6_74, %c0_75] : memref<7x128xf32, #tpu.memory_space<vmem>>, vector<1x128xf32>
    %179 = vector.broadcast %178 : vector<1x128xf32> to vector<16x128xf32>
    %180 = arith.mulf %103, %179 : vector<16x128xf32>
    %181 = arith.addf %177, %180 : vector<16x128xf32>
    %c0_76 = arith.constant 0 : index
    %c0_77 = arith.constant 0 : index
    %182 = vector.load %arg8[%c0_76, %c0_77] : memref<7x128xf32, #tpu.memory_space<vmem>>, vector<1x128xf32>
    %183 = vector.broadcast %182 : vector<1x128xf32> to vector<16x128xf32>
    %184 = arith.mulf %104, %183 : vector<16x128xf32>
    %185 = arith.addf %181, %184 : vector<16x128xf32>
    %186 = arith.truncf %131 : vector<16x128xf32> to vector<16x128xbf16>
    %187 = arith.truncf %158 : vector<16x128xf32> to vector<16x128xbf16>
    %188 = arith.truncf %185 : vector<16x128xf32> to vector<16x128xbf16>
    %c0_78 = arith.constant 0 : index
    %c0_79 = arith.constant 0 : index
    %189 = vector.load %arg9[%c0_78, %c0_79] : memref<8x128xbf16, #tpu.memory_space<vmem>>, vector<8x128xbf16>
    %cst_80 = arith.constant dense<0.000000e+00> : vector<16x8xf32>
    %190 = tpu.matmul %186, %189, %cst_80 {dimension_numbers = #tpu.dot_dimension_numbers<[1], [1], [0], [0], [0, 0, 1, 0], [], []>} : vector<16x128xbf16>, vector<8x128xbf16>, vector<16x8xf32> -> vector<16x8xf32>
    %c0_81 = arith.constant 0 : index
    %c0_82 = arith.constant 0 : index
    %191 = vector.load %arg10[%c0_81, %c0_82] : memref<8x128xbf16, #tpu.memory_space<vmem>>, vector<8x128xbf16>
    %cst_83 = arith.constant dense<0.000000e+00> : vector<16x8xf32>
    %192 = tpu.matmul %187, %191, %cst_83 {dimension_numbers = #tpu.dot_dimension_numbers<[1], [1], [0], [0], [0, 0, 1, 0], [], []>} : vector<16x128xbf16>, vector<8x128xbf16>, vector<16x8xf32> -> vector<16x8xf32>
    %193 = arith.addf %190, %192 : vector<16x8xf32>
    %c0_84 = arith.constant 0 : index
    %c0_85 = arith.constant 0 : index
    %194 = vector.load %arg11[%c0_84, %c0_85] : memref<8x128xbf16, #tpu.memory_space<vmem>>, vector<8x128xbf16>
    %cst_86 = arith.constant dense<0.000000e+00> : vector<16x8xf32>
    %195 = tpu.matmul %188, %194, %cst_86 {dimension_numbers = #tpu.dot_dimension_numbers<[1], [1], [0], [0], [0, 0, 1, 0], [], []>} : vector<16x128xbf16>, vector<8x128xbf16>, vector<16x8xf32> -> vector<16x8xf32>
    %196 = arith.addf %193, %195 : vector<16x8xf32>
    %c0_87 = arith.constant 0 : index
    %c0_88 = arith.constant 0 : index
    %197 = vector.load %arg12[%c0_87, %c0_88] : memref<1x8xf32, #tpu.memory_space<vmem>>, vector<1x8xf32>
    %198 = vector.broadcast %197 : vector<1x8xf32> to vector<16x8xf32>
    %199 = arith.addf %196, %198 : vector<16x8xf32>
    %200 = vector.extract_strided_slice %199 {offsets = [0, 0], sizes = [16, 4], strides = [1, 1]} : vector<16x8xf32> to vector<16x4xf32>
    %201 = vector.extract_strided_slice %199 {offsets = [0, 4], sizes = [16, 4], strides = [1, 1]} : vector<16x8xf32> to vector<16x4xf32>
    %c0_89 = arith.constant 0 : index
    %c0_90 = arith.constant 0 : index
    %202 = vector.load %arg13[%c0_89, %c0_90] : memref<16x16xf32, #tpu.memory_space<vmem>>, vector<16x16xf32>
    %cst_91 = arith.constant 1.000000e+00 : f32
    %203 = vector.broadcast %cst_91 : f32 to vector<16x16xf32>
    %204 = arith.subf %202, %203 : vector<16x16xf32>
    %cst_92 = arith.constant 1.000000e+30 : f32
    %205 = vector.broadcast %cst_92 : f32 to vector<16x16xf32>
    %206 = arith.mulf %204, %205 : vector<16x16xf32>
    %c0_93 = arith.constant 0 : index
    %c0_94 = arith.constant 0 : index
    %207 = vector.load %arg14[%c0_93, %c0_94] : memref<16x16xf32, #tpu.memory_space<vmem>>, vector<16x16xf32>
    %cst_95 = arith.constant 0.000000e+00 : f32
    %208 = vector.broadcast %cst_95 : f32 to vector<16x4xf32>
    %209 = arith.minimumf %201, %208 : vector<16x4xf32>
    %210 = math.absf %201 : vector<16x4xf32>
    %cst_96 = arith.constant 0.000000e+00 : f32
    %211 = vector.broadcast %cst_96 : f32 to vector<16x4xf32>
    %212 = arith.subf %211, %210 : vector<16x4xf32>
    %213 = math.exp %212 : vector<16x4xf32>
    %cst_97 = arith.constant 1.000000e+00 : f32
    %214 = vector.broadcast %cst_97 : f32 to vector<16x4xf32>
    %215 = arith.addf %214, %213 : vector<16x4xf32>
    %216 = math.log %215 : vector<16x4xf32>
    %217 = arith.subf %209, %216 : vector<16x4xf32>
    %cst_98 = arith.constant dense<0.000000e+00> : vector<16x4xf32>
    %218 = tpu.matmul %202, %217, %cst_98 {dimension_numbers = #tpu.dot_dimension_numbers<[1], [0], [0], [1], [0, 0, 1, 1], [], []>} : vector<16x16xf32>, vector<16x4xf32>, vector<16x4xf32> -> vector<16x4xf32>
    %219 = arith.subf %200, %218 : vector<16x4xf32>
    %220 = vector.extract_strided_slice %186 {offsets = [0, 0], sizes = [16, 32], strides = [1, 1]} : vector<16x128xbf16> to vector<16x32xbf16>
    %221 = vector.extract_strided_slice %187 {offsets = [0, 0], sizes = [16, 32], strides = [1, 1]} : vector<16x128xbf16> to vector<16x32xbf16>
    %222 = vector.extract_strided_slice %188 {offsets = [0, 0], sizes = [16, 32], strides = [1, 1]} : vector<16x128xbf16> to vector<16x32xbf16>
    %223 = vector.extract_strided_slice %219 {offsets = [0, 0], sizes = [16, 1], strides = [1, 1]} : vector<16x4xf32> to vector<16x1xf32>
    %224 = vector.broadcast %223 : vector<16x1xf32> to vector<16x16xf32>
    %225 = arith.mulf %207, %224 : vector<16x16xf32>
    %cst_99 = arith.constant dense<0.000000e+00> : vector<16xf32>
    %226 = vector.multi_reduction <add>, %225, %cst_99 [0] : vector<16x16xf32> to vector<16xf32>
    %227 = vector.shape_cast %226 : vector<16xf32> to vector<1x16xf32>
    %228 = vector.extract_strided_slice %218 {offsets = [0, 0], sizes = [16, 1], strides = [1, 1]} : vector<16x4xf32> to vector<16x1xf32>
    %229 = vector.broadcast %228 : vector<16x1xf32> to vector<16x16xf32>
    %230 = vector.broadcast %227 : vector<1x16xf32> to vector<16x16xf32>
    %231 = arith.addf %229, %230 : vector<16x16xf32>
    %232 = arith.addf %231, %206 : vector<16x16xf32>
    %cst_100 = arith.constant dense<0xFF800000> : vector<16xf32>
    %233 = vector.multi_reduction <maximumf>, %232, %cst_100 [1] : vector<16x16xf32> to vector<16xf32>
    %234 = vector.shape_cast %233 : vector<16xf32> to vector<16x1xf32>
    %235 = vector.broadcast %234 : vector<16x1xf32> to vector<16x16xf32>
    %236 = arith.subf %232, %235 : vector<16x16xf32>
    %237 = math.exp %236 : vector<16x16xf32>
    %cst_101 = arith.constant dense<0.000000e+00> : vector<16x16xf32>
    %238 = tpu.matmul %220, %221, %cst_101 {dimension_numbers = #tpu.dot_dimension_numbers<[1], [1], [0], [0], [0, 0, 1, 0], [], []>} : vector<16x32xbf16>, vector<16x32xbf16>, vector<16x16xf32> -> vector<16x16xf32>
    %cst_102 = arith.constant 0.176776692 : f32
    %239 = vector.broadcast %cst_102 : f32 to vector<16x16xf32>
    %240 = arith.mulf %238, %239 : vector<16x16xf32>
    %241 = arith.mulf %240, %237 : vector<16x16xf32>
    %cst_103 = arith.constant dense<0.000000e+00> : vector<16xf32>
    %242 = vector.multi_reduction <add>, %241, %cst_103 [1] : vector<16x16xf32> to vector<16xf32>
    %243 = vector.shape_cast %242 : vector<16xf32> to vector<16x1xf32>
    %244 = math.absf %243 : vector<16x1xf32>
    %cst_104 = arith.constant 0.000000e+00 : f32
    %245 = vector.broadcast %cst_104 : f32 to vector<16x1xf32>
    %246 = arith.subf %245, %234 : vector<16x1xf32>
    %247 = math.exp %246 : vector<16x1xf32>
    %248 = arith.maximumf %244, %247 : vector<16x1xf32>
    %cst_105 = arith.constant 9.99999997E-7 : f32
    %249 = vector.broadcast %cst_105 : f32 to vector<16x1xf32>
    %250 = arith.addf %248, %249 : vector<16x1xf32>
    %251 = vector.broadcast %250 : vector<16x1xf32> to vector<16x16xf32>
    %252 = arith.divf %241, %251 : vector<16x16xf32>
    %253 = arith.truncf %252 : vector<16x16xf32> to vector<16x16xbf16>
    %cst_106 = arith.constant dense<0.000000e+00> : vector<16x32xf32>
    %254 = tpu.matmul %253, %222, %cst_106 {dimension_numbers = #tpu.dot_dimension_numbers<[1], [0], [0], [1], [0, 0, 1, 1], [], []>} : vector<16x16xbf16>, vector<16x32xbf16>, vector<16x32xf32> -> vector<16x32xf32>
    %c0_107 = arith.constant 0 : index
    %c0_108 = arith.constant 0 : index
    %255 = vector.load %arg23[%c0_107, %c0_108] : memref<16x128xf32, #tpu.memory_space<vmem>>, vector<16x32xf32>
    tpu.vector_store %arg23[%c0_107, %c0_108], %254 {strides = array<i32>} : memref<16x128xf32, #tpu.memory_space<vmem>>, vector<16x32xf32>,
    %256 = vector.extract_strided_slice %186 {offsets = [0, 32], sizes = [16, 32], strides = [1, 1]} : vector<16x128xbf16> to vector<16x32xbf16>
    %257 = vector.extract_strided_slice %187 {offsets = [0, 32], sizes = [16, 32], strides = [1, 1]} : vector<16x128xbf16> to vector<16x32xbf16>
    %258 = vector.extract_strided_slice %188 {offsets = [0, 32], sizes = [16, 32], strides = [1, 1]} : vector<16x128xbf16> to vector<16x32xbf16>
    %259 = vector.extract_strided_slice %219 {offsets = [0, 1], sizes = [16, 1], strides = [1, 1]} : vector<16x4xf32> to vector<16x1xf32>
    %260 = vector.broadcast %259 : vector<16x1xf32> to vector<16x16xf32>
    %261 = arith.mulf %207, %260 : vector<16x16xf32>
    %cst_109 = arith.constant dense<0.000000e+00> : vector<16xf32>
    %262 = vector.multi_reduction <add>, %261, %cst_109 [0] : vector<16x16xf32> to vector<16xf32>
    %263 = vector.shape_cast %262 : vector<16xf32> to vector<1x16xf32>
    %264 = vector.extract_strided_slice %218 {offsets = [0, 1], sizes = [16, 1], strides = [1, 1]} : vector<16x4xf32> to vector<16x1xf32>
    %265 = vector.broadcast %264 : vector<16x1xf32> to vector<16x16xf32>
    %266 = vector.broadcast %263 : vector<1x16xf32> to vector<16x16xf32>
    %267 = arith.addf %265, %266 : vector<16x16xf32>
    %268 = arith.addf %267, %206 : vector<16x16xf32>
    %cst_110 = arith.constant dense<0xFF800000> : vector<16xf32>
    %269 = vector.multi_reduction <maximumf>, %268, %cst_110 [1] : vector<16x16xf32> to vector<16xf32>
    %270 = vector.shape_cast %269 : vector<16xf32> to vector<16x1xf32>
    %271 = vector.broadcast %270 : vector<16x1xf32> to vector<16x16xf32>
    %272 = arith.subf %268, %271 : vector<16x16xf32>
    %273 = math.exp %272 : vector<16x16xf32>
    %cst_111 = arith.constant dense<0.000000e+00> : vector<16x16xf32>
    %274 = tpu.matmul %256, %257, %cst_111 {dimension_numbers = #tpu.dot_dimension_numbers<[1], [1], [0], [0], [0, 0, 1, 0], [], []>} : vector<16x32xbf16>, vector<16x32xbf16>, vector<16x16xf32> -> vector<16x16xf32>
    %cst_112 = arith.constant 0.176776692 : f32
    %275 = vector.broadcast %cst_112 : f32 to vector<16x16xf32>
    %276 = arith.mulf %274, %275 : vector<16x16xf32>
    %277 = arith.mulf %276, %273 : vector<16x16xf32>
    %cst_113 = arith.constant dense<0.000000e+00> : vector<16xf32>
    %278 = vector.multi_reduction <add>, %277, %cst_113 [1] : vector<16x16xf32> to vector<16xf32>
    %279 = vector.shape_cast %278 : vector<16xf32> to vector<16x1xf32>
    %280 = math.absf %279 : vector<16x1xf32>
    %cst_114 = arith.constant 0.000000e+00 : f32
    %281 = vector.broadcast %cst_114 : f32 to vector<16x1xf32>
    %282 = arith.subf %281, %270 : vector<16x1xf32>
    %283 = math.exp %282 : vector<16x1xf32>
    %284 = arith.maximumf %280, %283 : vector<16x1xf32>
    %cst_115 = arith.constant 9.99999997E-7 : f32
    %285 = vector.broadcast %cst_115 : f32 to vector<16x1xf32>
    %286 = arith.addf %284, %285 : vector<16x1xf32>
    %287 = vector.broadcast %286 : vector<16x1xf32> to vector<16x16xf32>
    %288 = arith.divf %277, %287 : vector<16x16xf32>
    %289 = arith.truncf %288 : vector<16x16xf32> to vector<16x16xbf16>
    %cst_116 = arith.constant dense<0.000000e+00> : vector<16x32xf32>
    %290 = tpu.matmul %289, %258, %cst_116 {dimension_numbers = #tpu.dot_dimension_numbers<[1], [0], [0], [1], [0, 0, 1, 1], [], []>} : vector<16x16xbf16>, vector<16x32xbf16>, vector<16x32xf32> -> vector<16x32xf32>
    %c0_117 = arith.constant 0 : index
    %c32 = arith.constant 32 : index
    %291 = vector.load %arg23[%c0_117, %c32] : memref<16x128xf32, #tpu.memory_space<vmem>>, vector<16x32xf32>
    tpu.vector_store %arg23[%c0_117, %c32], %290 {strides = array<i32>} : memref<16x128xf32, #tpu.memory_space<vmem>>, vector<16x32xf32>,
    %292 = vector.extract_strided_slice %186 {offsets = [0, 64], sizes = [16, 32], strides = [1, 1]} : vector<16x128xbf16> to vector<16x32xbf16>
    %293 = vector.extract_strided_slice %187 {offsets = [0, 64], sizes = [16, 32], strides = [1, 1]} : vector<16x128xbf16> to vector<16x32xbf16>
    %294 = vector.extract_strided_slice %188 {offsets = [0, 64], sizes = [16, 32], strides = [1, 1]} : vector<16x128xbf16> to vector<16x32xbf16>
    %295 = vector.extract_strided_slice %219 {offsets = [0, 2], sizes = [16, 1], strides = [1, 1]} : vector<16x4xf32> to vector<16x1xf32>
    %296 = vector.broadcast %295 : vector<16x1xf32> to vector<16x16xf32>
    %297 = arith.mulf %207, %296 : vector<16x16xf32>
    %cst_118 = arith.constant dense<0.000000e+00> : vector<16xf32>
    %298 = vector.multi_reduction <add>, %297, %cst_118 [0] : vector<16x16xf32> to vector<16xf32>
    %299 = vector.shape_cast %298 : vector<16xf32> to vector<1x16xf32>
    %300 = vector.extract_strided_slice %218 {offsets = [0, 2], sizes = [16, 1], strides = [1, 1]} : vector<16x4xf32> to vector<16x1xf32>
    %301 = vector.broadcast %300 : vector<16x1xf32> to vector<16x16xf32>
    %302 = vector.broadcast %299 : vector<1x16xf32> to vector<16x16xf32>
    %303 = arith.addf %301, %302 : vector<16x16xf32>
    %304 = arith.addf %303, %206 : vector<16x16xf32>
    %cst_119 = arith.constant dense<0xFF800000> : vector<16xf32>
    %305 = vector.multi_reduction <maximumf>, %304, %cst_119 [1] : vector<16x16xf32> to vector<16xf32>
    %306 = vector.shape_cast %305 : vector<16xf32> to vector<16x1xf32>
    %307 = vector.broadcast %306 : vector<16x1xf32> to vector<16x16xf32>
    %308 = arith.subf %304, %307 : vector<16x16xf32>
    %309 = math.exp %308 : vector<16x16xf32>
    %cst_120 = arith.constant dense<0.000000e+00> : vector<16x16xf32>
    %310 = tpu.matmul %292, %293, %cst_120 {dimension_numbers = #tpu.dot_dimension_numbers<[1], [1], [0], [0], [0, 0, 1, 0], [], []>} : vector<16x32xbf16>, vector<16x32xbf16>, vector<16x16xf32> -> vector<16x16xf32>
    %cst_121 = arith.constant 0.176776692 : f32
    %311 = vector.broadcast %cst_121 : f32 to vector<16x16xf32>
    %312 = arith.mulf %310, %311 : vector<16x16xf32>
    %313 = arith.mulf %312, %309 : vector<16x16xf32>
    %cst_122 = arith.constant dense<0.000000e+00> : vector<16xf32>
    %314 = vector.multi_reduction <add>, %313, %cst_122 [1] : vector<16x16xf32> to vector<16xf32>
    %315 = vector.shape_cast %314 : vector<16xf32> to vector<16x1xf32>
    %316 = math.absf %315 : vector<16x1xf32>
    %cst_123 = arith.constant 0.000000e+00 : f32
    %317 = vector.broadcast %cst_123 : f32 to vector<16x1xf32>
    %318 = arith.subf %317, %306 : vector<16x1xf32>
    %319 = math.exp %318 : vector<16x1xf32>
    %320 = arith.maximumf %316, %319 : vector<16x1xf32>
    %cst_124 = arith.constant 9.99999997E-7 : f32
    %321 = vector.broadcast %cst_124 : f32 to vector<16x1xf32>
    %322 = arith.addf %320, %321 : vector<16x1xf32>
    %323 = vector.broadcast %322 : vector<16x1xf32> to vector<16x16xf32>
    %324 = arith.divf %313, %323 : vector<16x16xf32>
    %325 = arith.truncf %324 : vector<16x16xf32> to vector<16x16xbf16>
    %cst_125 = arith.constant dense<0.000000e+00> : vector<16x32xf32>
    %326 = tpu.matmul %325, %294, %cst_125 {dimension_numbers = #tpu.dot_dimension_numbers<[1], [0], [0], [1], [0, 0, 1, 1], [], []>} : vector<16x16xbf16>, vector<16x32xbf16>, vector<16x32xf32> -> vector<16x32xf32>
    %c0_126 = arith.constant 0 : index
    %c64 = arith.constant 64 : index
    %327 = vector.load %arg23[%c0_126, %c64] : memref<16x128xf32, #tpu.memory_space<vmem>>, vector<16x32xf32>
    tpu.vector_store %arg23[%c0_126, %c64], %326 {strides = array<i32>} : memref<16x128xf32, #tpu.memory_space<vmem>>, vector<16x32xf32>,
    %328 = vector.extract_strided_slice %186 {offsets = [0, 96], sizes = [16, 32], strides = [1, 1]} : vector<16x128xbf16> to vector<16x32xbf16>
    %329 = vector.extract_strided_slice %187 {offsets = [0, 96], sizes = [16, 32], strides = [1, 1]} : vector<16x128xbf16> to vector<16x32xbf16>
    %330 = vector.extract_strided_slice %188 {offsets = [0, 96], sizes = [16, 32], strides = [1, 1]} : vector<16x128xbf16> to vector<16x32xbf16>
    %331 = vector.extract_strided_slice %219 {offsets = [0, 3], sizes = [16, 1], strides = [1, 1]} : vector<16x4xf32> to vector<16x1xf32>
    %332 = vector.broadcast %331 : vector<16x1xf32> to vector<16x16xf32>
    %333 = arith.mulf %207, %332 : vector<16x16xf32>
    %cst_127 = arith.constant dense<0.000000e+00> : vector<16xf32>
    %334 = vector.multi_reduction <add>, %333, %cst_127 [0] : vector<16x16xf32> to vector<16xf32>
    %335 = vector.shape_cast %334 : vector<16xf32> to vector<1x16xf32>
    %336 = vector.extract_strided_slice %218 {offsets = [0, 3], sizes = [16, 1], strides = [1, 1]} : vector<16x4xf32> to vector<16x1xf32>
    %337 = vector.broadcast %336 : vector<16x1xf32> to vector<16x16xf32>
    %338 = vector.broadcast %335 : vector<1x16xf32> to vector<16x16xf32>
    %339 = arith.addf %337, %338 : vector<16x16xf32>
    %340 = arith.addf %339, %206 : vector<16x16xf32>
    %cst_128 = arith.constant dense<0xFF800000> : vector<16xf32>
    %341 = vector.multi_reduction <maximumf>, %340, %cst_128 [1] : vector<16x16xf32> to vector<16xf32>
    %342 = vector.shape_cast %341 : vector<16xf32> to vector<16x1xf32>
    %343 = vector.broadcast %342 : vector<16x1xf32> to vector<16x16xf32>
    %344 = arith.subf %340, %343 : vector<16x16xf32>
    %345 = math.exp %344 : vector<16x16xf32>
    %cst_129 = arith.constant dense<0.000000e+00> : vector<16x16xf32>
    %346 = tpu.matmul %328, %329, %cst_129 {dimension_numbers = #tpu.dot_dimension_numbers<[1], [1], [0], [0], [0, 0, 1, 0], [], []>} : vector<16x32xbf16>, vector<16x32xbf16>, vector<16x16xf32> -> vector<16x16xf32>
    %cst_130 = arith.constant 0.176776692 : f32
    %347 = vector.broadcast %cst_130 : f32 to vector<16x16xf32>
    %348 = arith.mulf %346, %347 : vector<16x16xf32>
    %349 = arith.mulf %348, %345 : vector<16x16xf32>
    %cst_131 = arith.constant dense<0.000000e+00> : vector<16xf32>
    %350 = vector.multi_reduction <add>, %349, %cst_131 [1] : vector<16x16xf32> to vector<16xf32>
    %351 = vector.shape_cast %350 : vector<16xf32> to vector<16x1xf32>
    %352 = math.absf %351 : vector<16x1xf32>
    %cst_132 = arith.constant 0.000000e+00 : f32
    %353 = vector.broadcast %cst_132 : f32 to vector<16x1xf32>
    %354 = arith.subf %353, %342 : vector<16x1xf32>
    %355 = math.exp %354 : vector<16x1xf32>
    %356 = arith.maximumf %352, %355 : vector<16x1xf32>
    %cst_133 = arith.constant 9.99999997E-7 : f32
    %357 = vector.broadcast %cst_133 : f32 to vector<16x1xf32>
    %358 = arith.addf %356, %357 : vector<16x1xf32>
    %359 = vector.broadcast %358 : vector<16x1xf32> to vector<16x16xf32>
    %360 = arith.divf %349, %359 : vector<16x16xf32>
    %361 = arith.truncf %360 : vector<16x16xf32> to vector<16x16xbf16>
    %cst_134 = arith.constant dense<0.000000e+00> : vector<16x32xf32>
    %362 = tpu.matmul %361, %330, %cst_134 {dimension_numbers = #tpu.dot_dimension_numbers<[1], [0], [0], [1], [0, 0, 1, 1], [], []>} : vector<16x16xbf16>, vector<16x32xbf16>, vector<16x32xf32> -> vector<16x32xf32>
    %c0_135 = arith.constant 0 : index
    %c96 = arith.constant 96 : index
    %363 = vector.load %arg23[%c0_135, %c96] : memref<16x128xf32, #tpu.memory_space<vmem>>, vector<16x32xf32>
    tpu.vector_store %arg23[%c0_135, %c96], %362 {strides = array<i32>} : memref<16x128xf32, #tpu.memory_space<vmem>>, vector<16x32xf32>,
    %c0_136 = arith.constant 0 : index
    %c0_137 = arith.constant 0 : index
    %364 = vector.load %arg23[%c0_136, %c0_137] : memref<16x128xf32, #tpu.memory_space<vmem>>, vector<16x128xf32>
    %c0_138 = arith.constant 0 : index
    %c0_139 = arith.constant 0 : index
    %365 = vector.load %arg15[%c0_138, %c0_139] : memref<128x4xf32, #tpu.memory_space<vmem>>, vector<128x4xf32>
    %cst_140 = arith.constant dense<0.000000e+00> : vector<16x4xf32>
    %366 = tpu.matmul %364, %365, %cst_140 {dimension_numbers = #tpu.dot_dimension_numbers<[1], [0], [0], [1], [0, 0, 1, 1], [], []>} : vector<16x128xf32>, vector<128x4xf32>, vector<16x4xf32> -> vector<16x4xf32>
    %cst_141 = arith.constant 3.125000e-02 : f32
    %367 = vector.broadcast %cst_141 : f32 to vector<16x4xf32>
    %368 = arith.mulf %366, %367 : vector<16x4xf32>
    %369 = arith.mulf %364, %364 : vector<16x128xf32>
    %cst_142 = arith.constant dense<0.000000e+00> : vector<16x4xf32>
    %370 = tpu.matmul %369, %365, %cst_142 {dimension_numbers = #tpu.dot_dimension_numbers<[1], [0], [0], [1], [0, 0, 1, 1], [], []>} : vector<16x128xf32>, vector<128x4xf32>, vector<16x4xf32> -> vector<16x4xf32>
    %cst_143 = arith.constant 3.125000e-02 : f32
    %371 = vector.broadcast %cst_143 : f32 to vector<16x4xf32>
    %372 = arith.mulf %370, %371 : vector<16x4xf32>
    %373 = arith.mulf %368, %368 : vector<16x4xf32>
    %374 = arith.subf %372, %373 : vector<16x4xf32>
    %cst_144 = arith.constant 0.000000e+00 : f32
    %375 = vector.broadcast %cst_144 : f32 to vector<16x4xf32>
    %376 = arith.maximumf %374, %375 : vector<16x4xf32>
    %cst_145 = arith.constant 9.99999974E-6 : f32
    %377 = vector.broadcast %cst_145 : f32 to vector<16x4xf32>
    %378 = arith.addf %376, %377 : vector<16x4xf32>
    %379 = math.rsqrt %378 : vector<16x4xf32>
    %cst_146 = arith.constant dense<0.000000e+00> : vector<16x128xf32>
    %380 = tpu.matmul %368, %365, %cst_146 {dimension_numbers = #tpu.dot_dimension_numbers<[1], [1], [0], [0], [0, 0, 1, 0], [], []>} : vector<16x4xf32>, vector<128x4xf32>, vector<16x128xf32> -> vector<16x128xf32>
    %cst_147 = arith.constant dense<0.000000e+00> : vector<16x128xf32>
    %381 = tpu.matmul %379, %365, %cst_147 {dimension_numbers = #tpu.dot_dimension_numbers<[1], [1], [0], [0], [0, 0, 1, 0], [], []>} : vector<16x4xf32>, vector<128x4xf32>, vector<16x128xf32> -> vector<16x128xf32>
    %382 = arith.subf %364, %380 : vector<16x128xf32>
    %383 = arith.mulf %382, %381 : vector<16x128xf32>
    %c0_148 = arith.constant 0 : index
    %c0_149 = arith.constant 0 : index
    %384 = vector.load %arg16[%c0_148, %c0_149] : memref<1x128xf32, #tpu.memory_space<vmem>>, vector<1x128xf32>
    %385 = vector.broadcast %384 : vector<1x128xf32> to vector<16x128xf32>
    %386 = arith.mulf %383, %385 : vector<16x128xf32>
    %c0_150 = arith.constant 0 : index
    %c0_151 = arith.constant 0 : index
    %387 = vector.load %arg17[%c0_150, %c0_151] : memref<1x128xf32, #tpu.memory_space<vmem>>, vector<1x128xf32>
    %388 = vector.broadcast %387 : vector<1x128xf32> to vector<16x128xf32>
    %389 = arith.mulf %388, %92 : vector<16x128xf32>
    %390 = arith.addf %386, %389 : vector<16x128xf32>
    %391 = math.absf %24 : vector<16x128xf32>
    %cst_152 = arith.constant 0.000000e+00 : f32
    %392 = vector.broadcast %cst_152 : f32 to vector<16x128xf32>
    %393 = arith.subf %392, %391 : vector<16x128xf32>
    %394 = math.exp %393 : vector<16x128xf32>
    %cst_153 = arith.constant 1.000000e+00 : f32
    %395 = vector.broadcast %cst_153 : f32 to vector<16x128xf32>
    %396 = arith.addf %395, %394 : vector<16x128xf32>
    %397 = tpu.reciprocal %396 {approx = true} : vector<16x128xf32> -> vector<16x128xf32>
    %cst_154 = arith.constant 0.000000e+00 : f32
    %398 = vector.broadcast %cst_154 : f32 to vector<16x128xf32>
    %399 = arith.cmpf oge, %24, %398 : vector<16x128xf32>
    %400 = arith.mulf %394, %397 : vector<16x128xf32>
    %401 = arith.select %399, %397, %400 : vector<16x128xi1>, vector<16x128xf32>
    %402 = arith.mulf %24, %401 : vector<16x128xf32>
    %403 = arith.mulf %390, %402 : vector<16x128xf32>
    %404 = arith.truncf %403 : vector<16x128xf32> to vector<16x128xbf16>
    %c0_155 = arith.constant 0 : index
    %c0_156 = arith.constant 0 : index
    %405 = vector.load %arg18[%c0_155, %c0_156] : memref<64x128xbf16, #tpu.memory_space<vmem>>, vector<64x128xbf16>
    %cst_157 = arith.constant dense<0.000000e+00> : vector<16x64xf32>
    %406 = tpu.matmul %404, %405, %cst_157 {dimension_numbers = #tpu.dot_dimension_numbers<[1], [1], [0], [0], [0, 0, 1, 0], [], []>} : vector<16x128xbf16>, vector<64x128xbf16>, vector<16x64xf32> -> vector<16x64xf32>
    %407 = arith.addf %0, %406 : vector<16x64xf32>
    %c0_158 = arith.constant 0 : index
    %c0_159 = arith.constant 0 : index
    %408 = vector.load %arg19[%c0_158, %c0_159] : memref<1x64xf32, #tpu.memory_space<vmem>>, vector<1x64xf32>
    %cst_160 = arith.constant dense<0.000000e+00> : vector<16xf32>
    %409 = vector.multi_reduction <add>, %407, %cst_160 [1] : vector<16x64xf32> to vector<16xf32>
    %410 = vector.shape_cast %409 : vector<16xf32> to vector<16x1xf32>
    %cst_161 = arith.constant 6.400000e+01 : f32
    %411 = vector.broadcast %cst_161 : f32 to vector<16x1xf32>
    %412 = arith.divf %410, %411 : vector<16x1xf32>
    %413 = vector.broadcast %412 : vector<16x1xf32> to vector<16x64xf32>
    %414 = arith.subf %407, %413 : vector<16x64xf32>
    %415 = arith.mulf %414, %414 : vector<16x64xf32>
    %cst_162 = arith.constant dense<0.000000e+00> : vector<16xf32>
    %416 = vector.multi_reduction <add>, %415, %cst_162 [1] : vector<16x64xf32> to vector<16xf32>
    %417 = vector.shape_cast %416 : vector<16xf32> to vector<16x1xf32>
    %cst_163 = arith.constant 6.400000e+01 : f32
    %418 = vector.broadcast %cst_163 : f32 to vector<16x1xf32>
    %419 = arith.divf %417, %418 : vector<16x1xf32>
    %cst_164 = arith.constant 9.99999974E-6 : f32
    %420 = vector.broadcast %cst_164 : f32 to vector<16x1xf32>
    %421 = arith.addf %419, %420 : vector<16x1xf32>
    %422 = math.rsqrt %421 : vector<16x1xf32>
    %423 = vector.broadcast %422 : vector<16x1xf32> to vector<16x64xf32>
    %424 = arith.mulf %414, %423 : vector<16x64xf32>
    %425 = vector.broadcast %408 : vector<1x64xf32> to vector<16x64xf32>
    %426 = arith.mulf %424, %425 : vector<16x64xf32>
    %427 = arith.truncf %426 : vector<16x64xf32> to vector<16x64xbf16>
    %c0_165 = arith.constant 0 : index
    %c0_166 = arith.constant 0 : index
    %428 = vector.load %arg20[%c0_165, %c0_166] : memref<256x64xbf16, #tpu.memory_space<vmem>>, vector<256x64xbf16>
    %cst_167 = arith.constant dense<0.000000e+00> : vector<16x256xf32>
    %429 = tpu.matmul %427, %428, %cst_167 {dimension_numbers = #tpu.dot_dimension_numbers<[1], [1], [0], [0], [0, 0, 1, 0], [], []>} : vector<16x64xbf16>, vector<256x64xbf16>, vector<16x256xf32> -> vector<16x256xf32>
    %430 = vector.extract_strided_slice %429 {offsets = [0, 0], sizes = [16, 128], strides = [1, 1]} : vector<16x256xf32> to vector<16x128xf32>
    %431 = vector.extract_strided_slice %429 {offsets = [0, 128], sizes = [16, 128], strides = [1, 1]} : vector<16x256xf32> to vector<16x128xf32>
    %cst_168 = arith.constant 5.000000e-01 : f32
    %432 = vector.broadcast %cst_168 : f32 to vector<16x128xf32>
    %433 = arith.mulf %432, %430 : vector<16x128xf32>
    %cst_169 = arith.constant 0.707106769 : f32
    %434 = vector.broadcast %cst_169 : f32 to vector<16x128xf32>
    %435 = arith.mulf %430, %434 : vector<16x128xf32>
    %cst_170 = arith.constant 0.000000e+00 : f32
    %436 = vector.broadcast %cst_170 : f32 to vector<16x128xf32>
    %437 = arith.cmpf oge, %435, %436 : vector<16x128xf32>
    %cst_171 = arith.constant 1.000000e+00 : f32
    %cst_172 = arith.constant -1.000000e+00 : f32
    %438 = vector.broadcast %cst_171 : f32 to vector<16x128xf32>
    %439 = vector.broadcast %cst_172 : f32 to vector<16x128xf32>
    %440 = arith.select %437, %438, %439 : vector<16x128xi1>, vector<16x128xf32>
    %441 = math.absf %435 : vector<16x128xf32>
    %cst_173 = arith.constant 0.327591091 : f32
    %442 = vector.broadcast %cst_173 : f32 to vector<16x128xf32>
    %443 = arith.mulf %442, %441 : vector<16x128xf32>
    %cst_174 = arith.constant 1.000000e+00 : f32
    %444 = vector.broadcast %cst_174 : f32 to vector<16x128xf32>
    %445 = arith.addf %444, %443 : vector<16x128xf32>
    %cst_175 = arith.constant 1.000000e+00 : f32
    %446 = vector.broadcast %cst_175 : f32 to vector<16x128xf32>
    %447 = arith.divf %446, %445 : vector<16x128xf32>
    %cst_176 = arith.constant 1.06140542 : f32
    %448 = vector.broadcast %cst_176 : f32 to vector<16x128xf32>
    %449 = arith.mulf %448, %447 : vector<16x128xf32>
    %cst_177 = arith.constant -1.45315206 : f32
    %450 = vector.broadcast %cst_177 : f32 to vector<16x128xf32>
    %451 = arith.addf %449, %450 : vector<16x128xf32>
    %452 = arith.mulf %451, %447 : vector<16x128xf32>
    %cst_178 = arith.constant 1.42141378 : f32
    %453 = vector.broadcast %cst_178 : f32 to vector<16x128xf32>
    %454 = arith.addf %452, %453 : vector<16x128xf32>
    %455 = arith.mulf %454, %447 : vector<16x128xf32>
    %cst_179 = arith.constant -0.284496725 : f32
    %456 = vector.broadcast %cst_179 : f32 to vector<16x128xf32>
    %457 = arith.addf %455, %456 : vector<16x128xf32>
    %458 = arith.mulf %457, %447 : vector<16x128xf32>
    %cst_180 = arith.constant 0.254829586 : f32
    %459 = vector.broadcast %cst_180 : f32 to vector<16x128xf32>
    %460 = arith.addf %458, %459 : vector<16x128xf32>
    %461 = arith.mulf %460, %447 : vector<16x128xf32>
    %cst_181 = arith.constant 0.000000e+00 : f32
    %462 = vector.broadcast %cst_181 : f32 to vector<16x128xf32>
    %463 = arith.subf %462, %441 : vector<16x128xf32>
    %464 = arith.mulf %463, %441 : vector<16x128xf32>
    %465 = math.exp %464 : vector<16x128xf32>
    %466 = arith.mulf %461, %465 : vector<16x128xf32>
    %cst_182 = arith.constant 1.000000e+00 : f32
    %467 = vector.broadcast %cst_182 : f32 to vector<16x128xf32>
    %468 = arith.subf %467, %466 : vector<16x128xf32>
    %469 = arith.mulf %440, %468 : vector<16x128xf32>
    %cst_183 = arith.constant 1.000000e+00 : f32
    %470 = vector.broadcast %cst_183 : f32 to vector<16x128xf32>
    %471 = arith.addf %470, %469 : vector<16x128xf32>
    %472 = arith.mulf %433, %471 : vector<16x128xf32>
    %473 = arith.mulf %472, %431 : vector<16x128xf32>
    %474 = arith.truncf %473 : vector<16x128xf32> to vector<16x128xbf16>
    %c0_184 = arith.constant 0 : index
    %c0_185 = arith.constant 0 : index
    %475 = vector.load %arg21[%c0_184, %c0_185] : memref<64x128xbf16, #tpu.memory_space<vmem>>, vector<64x128xbf16>
    %cst_186 = arith.constant dense<0.000000e+00> : vector<16x64xf32>
    %476 = tpu.matmul %474, %475, %cst_186 {dimension_numbers = #tpu.dot_dimension_numbers<[1], [1], [0], [0], [0, 0, 1, 0], [], []>} : vector<16x128xbf16>, vector<64x128xbf16>, vector<16x64xf32> -> vector<16x64xf32>
    %477 = arith.addf %407, %476 : vector<16x64xf32>
    %c0_187 = arith.constant 0 : index
    %c0_188 = arith.constant 0 : index
    %478 = vector.load %arg22[%c0_187, %c0_188] : memref<16x64xf32, #tpu.memory_space<vmem>>, vector<16x64xf32>
    tpu.vector_store %arg22[%c0_187, %c0_188], %477 {strides = array<i32>} : memref<16x64xf32, #tpu.memory_space<vmem>>, vector<16x64xf32>,
    return
  }
  func.func @transform_0(%arg0: i32) -> (i32, i32) {
    %c0_i32 = arith.constant 0 : i32
    %c0_i32_0 = arith.constant 0 : i32
    return %arg0, %c0_i32 : i32, i32
  }
  func.func @transform_1(%arg0: i32) -> (i32, i32) {
    %c0_i32 = arith.constant 0 : i32
    %c0_i32_0 = arith.constant 0 : i32
    %c0_i32_1 = arith.constant 0 : i32
    return %c0_i32, %c0_i32_0 : i32, i32
  }
  func.func @transform_2(%arg0: i32) -> (i32, i32) {
    %c0_i32 = arith.constant 0 : i32
    %c0_i32_0 = arith.constant 0 : i32
    %c0_i32_1 = arith.constant 0 : i32
    return %c0_i32, %c0_i32_0 : i32, i32
  }
  func.func @transform_3(%arg0: i32) -> (i32, i32) {
    %c0_i32 = arith.constant 0 : i32
    %c0_i32_0 = arith.constant 0 : i32
    %c0_i32_1 = arith.constant 0 : i32
    return %c0_i32, %c0_i32_0 : i32, i32
  }
  func.func @transform_4(%arg0: i32) -> (i32, i32) {
    %c0_i32 = arith.constant 0 : i32
    %c0_i32_0 = arith.constant 0 : i32
    %c0_i32_1 = arith.constant 0 : i32
    return %c0_i32, %c0_i32_0 : i32, i32
  }
  func.func @transform_5(%arg0: i32) -> (i32, i32) {
    %c0_i32 = arith.constant 0 : i32
    %c0_i32_0 = arith.constant 0 : i32
    %c0_i32_1 = arith.constant 0 : i32
    return %c0_i32, %c0_i32_0 : i32, i32
  }
  func.func @transform_6(%arg0: i32) -> (i32, i32) {
    %c0_i32 = arith.constant 0 : i32
    %c0_i32_0 = arith.constant 0 : i32
    %c0_i32_1 = arith.constant 0 : i32
    return %c0_i32, %c0_i32_0 : i32, i32
  }
  func.func @transform_7(%arg0: i32) -> (i32, i32) {
    %c0_i32 = arith.constant 0 : i32
    %c0_i32_0 = arith.constant 0 : i32
    %c0_i32_1 = arith.constant 0 : i32
    return %c0_i32, %c0_i32_0 : i32, i32
  }
  func.func @transform_8(%arg0: i32) -> (i32, i32) {
    %c0_i32 = arith.constant 0 : i32
    %c0_i32_0 = arith.constant 0 : i32
    %c0_i32_1 = arith.constant 0 : i32
    return %c0_i32, %c0_i32_0 : i32, i32
  }
  func.func @transform_9(%arg0: i32) -> (i32, i32) {
    %c0_i32 = arith.constant 0 : i32
    %c0_i32_0 = arith.constant 0 : i32
    %c0_i32_1 = arith.constant 0 : i32
    return %c0_i32, %c0_i32_0 : i32, i32
  }
  func.func @transform_10(%arg0: i32) -> (i32, i32) {
    %c0_i32 = arith.constant 0 : i32
    %c0_i32_0 = arith.constant 0 : i32
    %c0_i32_1 = arith.constant 0 : i32
    return %c0_i32, %c0_i32_0 : i32, i32
  }
  func.func @transform_11(%arg0: i32) -> (i32, i32) {
    %c0_i32 = arith.constant 0 : i32
    %c0_i32_0 = arith.constant 0 : i32
    %c0_i32_1 = arith.constant 0 : i32
    return %c0_i32, %c0_i32_0 : i32, i32
  }
  func.func @transform_12(%arg0: i32) -> (i32, i32) {
    %c0_i32 = arith.constant 0 : i32
    %c0_i32_0 = arith.constant 0 : i32
    %c0_i32_1 = arith.constant 0 : i32
    return %c0_i32, %c0_i32_0 : i32, i32
  }
  func.func @transform_13(%arg0: i32) -> (i32, i32) {
    %c0_i32 = arith.constant 0 : i32
    %c0_i32_0 = arith.constant 0 : i32
    %c0_i32_1 = arith.constant 0 : i32
    return %c0_i32, %c0_i32_0 : i32, i32
  }
  func.func @transform_14(%arg0: i32) -> (i32, i32) {
    %c0_i32 = arith.constant 0 : i32
    %c0_i32_0 = arith.constant 0 : i32
    %c0_i32_1 = arith.constant 0 : i32
    return %c0_i32, %c0_i32_0 : i32, i32
  }
  func.func @transform_15(%arg0: i32) -> (i32, i32) {
    %c0_i32 = arith.constant 0 : i32
    %c0_i32_0 = arith.constant 0 : i32
    %c0_i32_1 = arith.constant 0 : i32
    return %c0_i32, %c0_i32_0 : i32, i32
  }
  func.func @transform_16(%arg0: i32) -> (i32, i32) {
    %c0_i32 = arith.constant 0 : i32
    %c0_i32_0 = arith.constant 0 : i32
    %c0_i32_1 = arith.constant 0 : i32
    return %c0_i32, %c0_i32_0 : i32, i32
  }
  func.func @transform_17(%arg0: i32) -> (i32, i32) {
    %c0_i32 = arith.constant 0 : i32
    %c0_i32_0 = arith.constant 0 : i32
    %c0_i32_1 = arith.constant 0 : i32
    return %c0_i32, %c0_i32_0 : i32, i32
  }
  func.func @transform_18(%arg0: i32) -> (i32, i32) {
    %c0_i32 = arith.constant 0 : i32
    %c0_i32_0 = arith.constant 0 : i32
    %c0_i32_1 = arith.constant 0 : i32
    return %c0_i32, %c0_i32_0 : i32, i32
  }
  func.func @transform_19(%arg0: i32) -> (i32, i32) {
    %c0_i32 = arith.constant 0 : i32
    %c0_i32_0 = arith.constant 0 : i32
    %c0_i32_1 = arith.constant 0 : i32
    return %c0_i32, %c0_i32_0 : i32, i32
  }
  func.func @transform_20(%arg0: i32) -> (i32, i32) {
    %c0_i32 = arith.constant 0 : i32
    %c0_i32_0 = arith.constant 0 : i32
    %c0_i32_1 = arith.constant 0 : i32
    return %c0_i32, %c0_i32_0 : i32, i32
  }
  func.func @transform_21(%arg0: i32) -> (i32, i32) {
    %c0_i32 = arith.constant 0 : i32
    %c0_i32_0 = arith.constant 0 : i32
    return %arg0, %c0_i32 : i32, i32
  }
}

</mosaic_0001>

<llo_original>
// kernel: tpu_custom_call.1
$region0: #{tpu_custom_call.1}
  #allocation0 [shape = 'u32[]', space=smem, size = 0x4, offset = 0x4, fixed_abs, tag = 'smem constant byte address 0x4 - core index']
  #allocation1 [shape = 'u32[72,128]{1,0:T(1,128)}', space=vmem, size = 0x9000, scoped, tag = 'internal scratch']
  #allocation2 [shape = 'f32[16,128]{1,0:T(8,128)}', space=vmem, size = 0x2000, scoped, tag = 'scratch operand']
  %s0 = inlined_call_operand.vmem [shape: f32[32,64], index: 0, kind: input, shape index: {}]
  %s1 = inlined_call_operand.vmem [shape: f32[1,64], index: 1, kind: input, shape index: {}]
  %s2 = inlined_call_operand.vmem [shape: bf16[256,64], index: 2, kind: input, shape index: {}]
  %s3 = inlined_call_operand.vmem [shape: f32[4,128], index: 3, kind: input, shape index: {}]
  %s4 = inlined_call_operand.vmem [shape: f32[1,128], index: 4, kind: input, shape index: {}]
  %s5 = inlined_call_operand.vmem [shape: f32[7,128], index: 5, kind: input, shape index: {}]
  %s6 = inlined_call_operand.vmem [shape: f32[7,128], index: 6, kind: input, shape index: {}]
  %s7 = inlined_call_operand.vmem [shape: f32[7,128], index: 7, kind: input, shape index: {}]
  %s8 = inlined_call_operand.vmem [shape: bf16[8,128], index: 8, kind: input, shape index: {}]
  %s9 = inlined_call_operand.vmem [shape: bf16[8,128], index: 9, kind: input, shape index: {}]
  %s10 = inlined_call_operand.vmem [shape: bf16[8,128], index: 10, kind: input, shape index: {}]
  %s11 = inlined_call_operand.vmem [shape: f32[1,8], index: 11, kind: input, shape index: {}]
  %s12 = inlined_call_operand.vmem [shape: f32[16,16], index: 12, kind: input, shape index: {}]
  %s13 = inlined_call_operand.vmem [shape: f32[16,16], index: 13, kind: input, shape index: {}]
  %s14 = inlined_call_operand.vmem [shape: f32[128,4], index: 14, kind: input, shape index: {}]
  %s15 = inlined_call_operand.vmem [shape: f32[1,128], index: 15, kind: input, shape index: {}]
  %s16 = inlined_call_operand.vmem [shape: f32[1,128], index: 16, kind: input, shape index: {}]
  %s17 = inlined_call_operand.vmem [shape: bf16[64,128], index: 17, kind: input, shape index: {}]
  %s18 = inlined_call_operand.vmem [shape: f32[1,64], index: 18, kind: input, shape index: {}]
  %s19 = inlined_call_operand.vmem [shape: bf16[256,64], index: 19, kind: input, shape index: {}]
  %s20 = inlined_call_operand.vmem [shape: bf16[64,128], index: 20, kind: input, shape index: {}]
  %s21 = inlined_call_operand.hbm [shape: f32[32,64], index: 21, kind: output, shape index: {}]
  %s22 = sld [smem:[#allocation0]]
  $region117: #{tpu_custom_call.1} parent=0
    _
  %s24 = ssub.s32 1, %s22
  %s25 = scalar_select 0, %s24, %s22
  $region1: #{tpu_custom_call.1} parent=0
    #allocation3 [shape = 'u8[16384]{0}', space=vmem, size = 0x4000, scoped, tag = 'output window, operand 0']
    #allocation4 [shape = 's32[2]{0}', space=sflag, size = 0x8, scoped, tag = 'scoped memory for tpu_custom_call.1']
    %26 = vsyncpa [#allocation4], 0
    %s27 = scalar_lea.sflag [#allocation4], 1
    %28 = vsyncpa %s27, 0
    loop: start=0, step=1, limit=4
    $region2: #{tpu_custom_call.1} parent=1 // loop_pre_header
      _
    $region3: #{tpu_custom_call.1} parent=1 // loop_header
      %s30 = sphi 0, %s34
      %p31 = scmp.ge.s32.totalorder %s30, 4
      %s40 = sphi 0, %s42
      %s43 = sphi 0, %s40
      %s44 = sphi 0, %s43
      %s60 = sphi 0, %s44
      %s64 = sphi 0, %s64
      %s66 = sphi 0, %s64
      %s67 = sphi 0, %s66
      %s81 = sphi 0, %s67
      %s85 = sphi 0, %s85
      %s87 = sphi 0, %s85
      %s88 = sphi 0, %s87
      %s102 = sphi 0, %s88
      %s106 = sphi 0, %s106
      %s108 = sphi 0, %s106
      %s109 = sphi 0, %s108
      %s123 = sphi 0, %s109
      %s127 = sphi 0, %s127
      %s129 = sphi 0, %s127
      %s130 = sphi 0, %s129
      %s144 = sphi 0, %s130
      %s148 = sphi 0, %s148
      %s150 = sphi 0, %s148
      %s151 = sphi 0, %s150
      %s165 = sphi 0, %s151
      %s169 = sphi 0, %s169
      %s171 = sphi 0, %s169
      %s172 = sphi 0, %s171
      %s186 = sphi 0, %s172
      %s190 = sphi 0, %s190
      %s192 = sphi 0, %s190
      %s193 = sphi 0, %s192
      %s207 = sphi 0, %s193
      %s211 = sphi 0, %s211
      %s213 = sphi 0, %s211
      %s214 = sphi 0, %s213
      %s228 = sphi 0, %s214
      %s232 = sphi 0, %s232
      %s234 = sphi 0, %s232
      %s235 = sphi 0, %s234
      %s249 = sphi 0, %s235
      %s253 = sphi 0, %s253
      %s255 = sphi 0, %s253
      %s256 = sphi 0, %s255
      %s270 = sphi 0, %s256
      %s274 = sphi 0, %s274
      %s276 = sphi 0, %s274
      %s277 = sphi 0, %s276
      %s291 = sphi 0, %s277
      %s295 = sphi 0, %s295
      %s297 = sphi 0, %s295
      %s298 = sphi 0, %s297
      %s312 = sphi 0, %s298
      %s316 = sphi 0, %s316
      %s318 = sphi 0, %s316
      %s319 = sphi 0, %s318
      %s333 = sphi 0, %s319
      %s337 = sphi 0, %s337
      %s339 = sphi 0, %s337
      %s340 = sphi 0, %s339
      %s354 = sphi 0, %s340
      %s358 = sphi 0, %s358
      %s360 = sphi 0, %s358
      %s361 = sphi 0, %s360
      %s375 = sphi 0, %s361
      %s379 = sphi 0, %s379
      %s381 = sphi 0, %s379
      %s382 = sphi 0, %s381
      %s396 = sphi 0, %s382
      %s400 = sphi 0, %s400
      %s402 = sphi 0, %s400
      %s403 = sphi 0, %s402
      %s417 = sphi 0, %s403
      %s421 = sphi 0, %s421
      %s423 = sphi 0, %s421
      %s424 = sphi 0, %s423
      %s438 = sphi 0, %s424
      %s442 = sphi 0, %s442
      %s444 = sphi 0, %s442
      %s445 = sphi 0, %s444
      %s459 = sphi 0, %s445
      %s463 = sphi 0, %s463
      %s465 = sphi 0, %s463
      %s466 = sphi 0, %s465
      %s480 = sphi 0, %s466
      %s486 = sphi 0, %s488
      %s489 = sphi 0, %s486
      %s490 = sphi 0, %s489
      %s506 = sphi 0, %s490
    $region4: #{tpu_custom_call.1} parent=1 // loop_header_branch
      %33 = sbr.rel (%p31) target = $region8
    $region5: #{tpu_custom_call.1} parent=1 // loop_body
      %s35 = ssub.s32 %s30, 1
      %s36 = ssub.s32 %s30, 2
      %s37 = sadd.s32 %s30, 1
      %s38 = ssub.s32 %s30, %s37
      %p39 = scmp.eq.s32.totalorder %s38, 0
      %s41 = sadd.s32 %s40, 1
      %s42 = scalar_select %p39, %s40, %s41
      %p45 = pneg %p39
      %p46 = scmp.eq.s32.totalorder %s30, 1
      %p47 = por %p45, %p46
      %p48 = scmp.ne.s32.totalorder %s40, %s43
      %p49 = scmp.eq.s32.totalorder %s30, 0
      %p50 = por %p48, %p49
      %p51 = scmp.ne.s32.totalorder %s40, %s43
      %p52 = scmp.eq.s32.totalorder %s35, 1
      %p53 = por %p51, %p52
      %p54 = scmp.ne.s32.totalorder %s43, %s44
      %p55 = scmp.eq.s32.totalorder %s35, 0
      %p56 = por %p54, %p55
      %p57 = scmp.ne.s32.totalorder %s43, %s44
      %p58 = scmp.eq.s32.totalorder %s36, 1
      %p59 = por %p57, %p58
      %p61 = scmp.ne.s32.totalorder %s44, %s60
      %p62 = scmp.eq.s32.totalorder %s36, 0
      %p63 = por %p61, %p62
      %s65 = sadd.s32 %s64, 1
      %p68 = scmp.eq.s32.totalorder %s30, 1
      %p69 = scmp.ne.s32.totalorder %s64, %s66
      %p70 = scmp.eq.s32.totalorder %s30, 0
      %p71 = por %p69, %p70
      %p72 = scmp.ne.s32.totalorder %s64, %s66
      %p73 = scmp.eq.s32.totalorder %s35, 1
      %p74 = por %p72, %p73
      %p75 = scmp.ne.s32.totalorder %s66, %s67
      %p76 = scmp.eq.s32.totalorder %s35, 0
      %p77 = por %p75, %p76
      %p78 = scmp.ne.s32.totalorder %s66, %s67
      %p79 = scmp.eq.s32.totalorder %s36, 1
      %p80 = por %p78, %p79
      %p82 = scmp.ne.s32.totalorder %s67, %s81
      %p83 = scmp.eq.s32.totalorder %s36, 0
      %p84 = por %p82, %p83
      %s86 = sadd.s32 %s85, 1
      %p89 = scmp.eq.s32.totalorder %s30, 1
      %p90 = scmp.ne.s32.totalorder %s85, %s87
      %p91 = scmp.eq.s32.totalorder %s30, 0
      %p92 = por %p90, %p91
      %p93 = scmp.ne.s32.totalorder %s85, %s87
      %p94 = scmp.eq.s32.totalorder %s35, 1
      %p95 = por %p93, %p94
      %p96 = scmp.ne.s32.totalorder %s87, %s88
      %p97 = scmp.eq.s32.totalorder %s35, 0
      %p98 = por %p96, %p97
      %p99 = scmp.ne.s32.totalorder %s87, %s88
      %p100 = scmp.eq.s32.totalorder %s36, 1
      %p101 = por %p99, %p100
      %p103 = scmp.ne.s32.totalorder %s88, %s102
      %p104 = scmp.eq.s32.totalorder %s36, 0
      %p105 = por %p103, %p104
      %s107 = sadd.s32 %s106, 1
      %p110 = scmp.eq.s32.totalorder %s30, 1
      %p111 = scmp.ne.s32.totalorder %s106, %s108
      %p112 = scmp.eq.s32.totalorder %s30, 0
      %p113 = por %p111, %p112
      %p114 = scmp.ne.s32.totalorder %s106, %s108
      %p115 = scmp.eq.s32.totalorder %s35, 1
      %p116 = por %p114, %p115
      %p117 = scmp.ne.s32.totalorder %s108, %s109
      %p118 = scmp.eq.s32.totalorder %s35, 0
      %p119 = por %p117, %p118
      %p120 = scmp.ne.s32.totalorder %s108, %s109
      %p121 = scmp.eq.s32.totalorder %s36, 1
      %p122 = por %p120, %p121
      %p124 = scmp.ne.s32.totalorder %s109, %s123
      %p125 = scmp.eq.s32.totalorder %s36, 0
      %p126 = por %p124, %p125
      %s128 = sadd.s32 %s127, 1
      %p131 = scmp.eq.s32.totalorder %s30, 1
      %p132 = scmp.ne.s32.totalorder %s127, %s129
      %p133 = scmp.eq.s32.totalorder %s30, 0
      %p134 = por %p132, %p133
      %p135 = scmp.ne.s32.totalorder %s127, %s129
      %p136 = scmp.eq.s32.totalorder %s35, 1
      %p137 = por %p135, %p136
      %p138 = scmp.ne.s32.totalorder %s129, %s130
      %p139 = scmp.eq.s32.totalorder %s35, 0
      %p140 = por %p138, %p139
      %p141 = scmp.ne.s32.totalorder %s129, %s130
      %p142 = scmp.eq.s32.totalorder %s36, 1
      %p143 = por %p141, %p142
      %p145 = scmp.ne.s32.totalorder %s130, %s144
      %p146 = scmp.eq.s32.totalorder %s36, 0
      %p147 = por %p145, %p146
      %s149 = sadd.s32 %s148, 1
      %p152 = scmp.eq.s32.totalorder %s30, 1
      %p153 = scmp.ne.s32.totalorder %s148, %s150
      %p154 = scmp.eq.s32.totalorder %s30, 0
      %p155 = por %p153, %p154
      %p156 = scmp.ne.s32.totalorder %s148, %s150
      %p157 = scmp.eq.s32.totalorder %s35, 1
      %p158 = por %p156, %p157
      %p159 = scmp.ne.s32.totalorder %s150, %s151
      %p160 = scmp.eq.s32.totalorder %s35, 0
      %p161 = por %p159, %p160
      %p162 = scmp.ne.s32.totalorder %s150, %s151
      %p163 = scmp.eq.s32.totalorder %s36, 1
      %p164 = por %p162, %p163
      %p166 = scmp.ne.s32.totalorder %s151, %s165
      %p167 = scmp.eq.s32.totalorder %s36, 0
      %p168 = por %p166, %p167
      %s170 = sadd.s32 %s169, 1
      %p173 = scmp.eq.s32.totalorder %s30, 1
      %p174 = scmp.ne.s32.totalorder %s169, %s171
      %p175 = scmp.eq.s32.totalorder %s30, 0
      %p176 = por %p174, %p175
      %p177 = scmp.ne.s32.totalorder %s169, %s171
      %p178 = scmp.eq.s32.totalorder %s35, 1
      %p179 = por %p177, %p178
      %p180 = scmp.ne.s32.totalorder %s171, %s172
      %p181 = scmp.eq.s32.totalorder %s35, 0
      %p182 = por %p180, %p181
      %p183 = scmp.ne.s32.totalorder %s171, %s172
      %p184 = scmp.eq.s32.totalorder %s36, 1
      %p185 = por %p183, %p184
      %p187 = scmp.ne.s32.totalorder %s172, %s186
      %p188 = scmp.eq.s32.totalorder %s36, 0
      %p189 = por %p187, %p188
      %s191 = sadd.s32 %s190, 1
      %p194 = scmp.eq.s32.totalorder %s30, 1
      %p195 = scmp.ne.s32.totalorder %s190, %s192
      %p196 = scmp.eq.s32.totalorder %s30, 0
      %p197 = por %p195, %p196
      %p198 = scmp.ne.s32.totalorder %s190, %s192
      %p199 = scmp.eq.s32.totalorder %s35, 1
      %p200 = por %p198, %p199
      %p201 = scmp.ne.s32.totalorder %s192, %s193
      %p202 = scmp.eq.s32.totalorder %s35, 0
      %p203 = por %p201, %p202
      %p204 = scmp.ne.s32.totalorder %s192, %s193
      %p205 = scmp.eq.s32.totalorder %s36, 1
      %p206 = por %p204, %p205
      %p208 = scmp.ne.s32.totalorder %s193, %s207
      %p209 = scmp.eq.s32.totalorder %s36, 0
      %p210 = por %p208, %p209
      %s212 = sadd.s32 %s211, 1
      %p215 = scmp.eq.s32.totalorder %s30, 1
      %p216 = scmp.ne.s32.totalorder %s211, %s213
      %p217 = scmp.eq.s32.totalorder %s30, 0
      %p218 = por %p216, %p217
      %p219 = scmp.ne.s32.totalorder %s211, %s213
      %p220 = scmp.eq.s32.totalorder %s35, 1
      %p221 = por %p219, %p220
      %p222 = scmp.ne.s32.totalorder %s213, %s214
      %p223 = scmp.eq.s32.totalorder %s35, 0
      %p224 = por %p222, %p223
      %p225 = scmp.ne.s32.totalorder %s213, %s214
      %p226 = scmp.eq.s32.totalorder %s36, 1
      %p227 = por %p225, %p226
      %p229 = scmp.ne.s32.totalorder %s214, %s228
      %p230 = scmp.eq.s32.totalorder %s36, 0
      %p231 = por %p229, %p230
      %s233 = sadd.s32 %s232, 1
      %p236 = scmp.eq.s32.totalorder %s30, 1
      %p237 = scmp.ne.s32.totalorder %s232, %s234
      %p238 = scmp.eq.s32.totalorder %s30, 0
      %p239 = por %p237, %p238
      %p240 = scmp.ne.s32.totalorder %s232, %s234
      %p241 = scmp.eq.s32.totalorder %s35, 1
      %p242 = por %p240, %p241
      %p243 = scmp.ne.s32.totalorder %s234, %s235
      %p244 = scmp.eq.s32.totalorder %s35, 0
      %p245 = por %p243, %p244
      %p246 = scmp.ne.s32.totalorder %s234, %s235
      %p247 = scmp.eq.s32.totalorder %s36, 1
      %p248 = por %p246, %p247
      %p250 = scmp.ne.s32.totalorder %s235, %s249
      %p251 = scmp.eq.s32.totalorder %s36, 0
      %p252 = por %p250, %p251
      %s254 = sadd.s32 %s253, 1
      %p257 = scmp.eq.s32.totalorder %s30, 1
      %p258 = scmp.ne.s32.totalorder %s253, %s255
      %p259 = scmp.eq.s32.totalorder %s30, 0
      %p260 = por %p258, %p259
      %p261 = scmp.ne.s32.totalorder %s253, %s255
      %p262 = scmp.eq.s32.totalorder %s35, 1
      %p263 = por %p261, %p262
      %p264 = scmp.ne.s32.totalorder %s255, %s256
      %p265 = scmp.eq.s32.totalorder %s35, 0
      %p266 = por %p264, %p265
      %p267 = scmp.ne.s32.totalorder %s255, %s256
      %p268 = scmp.eq.s32.totalorder %s36, 1
      %p269 = por %p267, %p268
      %p271 = scmp.ne.s32.totalorder %s256, %s270
      %p272 = scmp.eq.s32.totalorder %s36, 0
      %p273 = por %p271, %p272
      %s275 = sadd.s32 %s274, 1
      %p278 = scmp.eq.s32.totalorder %s30, 1
      %p279 = scmp.ne.s32.totalorder %s274, %s276
      %p280 = scmp.eq.s32.totalorder %s30, 0
      %p281 = por %p279, %p280
      %p282 = scmp.ne.s32.totalorder %s274, %s276
      %p283 = scmp.eq.s32.totalorder %s35, 1
      %p284 = por %p282, %p283
      %p285 = scmp.ne.s32.totalorder %s276, %s277
      %p286 = scmp.eq.s32.totalorder %s35, 0
      %p287 = por %p285, %p286
      %p288 = scmp.ne.s32.totalorder %s276, %s277
      %p289 = scmp.eq.s32.totalorder %s36, 1
      %p290 = por %p288, %p289
      %p292 = scmp.ne.s32.totalorder %s277, %s291
      %p293 = scmp.eq.s32.totalorder %s36, 0
      %p294 = por %p292, %p293
      %s296 = sadd.s32 %s295, 1
      %p299 = scmp.eq.s32.totalorder %s30, 1
      %p300 = scmp.ne.s32.totalorder %s295, %s297
      %p301 = scmp.eq.s32.totalorder %s30, 0
      %p302 = por %p300, %p301
      %p303 = scmp.ne.s32.totalorder %s295, %s297
      %p304 = scmp.eq.s32.totalorder %s35, 1
      %p305 = por %p303, %p304
      %p306 = scmp.ne.s32.totalorder %s297, %s298
      %p307 = scmp.eq.s32.totalorder %s35, 0
      %p308 = por %p306, %p307
      %p309 = scmp.ne.s32.totalorder %s297, %s298
      %p310 = scmp.eq.s32.totalorder %s36, 1
      %p311 = por %p309, %p310
      %p313 = scmp.ne.s32.totalorder %s298, %s312
      %p314 = scmp.eq.s32.totalorder %s36, 0
      %p315 = por %p313, %p314
      %s317 = sadd.s32 %s316, 1
      %p320 = scmp.eq.s32.totalorder %s30, 1
      %p321 = scmp.ne.s32.totalorder %s316, %s318
      %p322 = scmp.eq.s32.totalorder %s30, 0
      %p323 = por %p321, %p322
      %p324 = scmp.ne.s32.totalorder %s316, %s318
      %p325 = scmp.eq.s32.totalorder %s35, 1
      %p326 = por %p324, %p325
      %p327 = scmp.ne.s32.totalorder %s318, %s319
      %p328 = scmp.eq.s32.totalorder %s35, 0
      %p329 = por %p327, %p328
      %p330 = scmp.ne.s32.totalorder %s318, %s319
      %p331 = scmp.eq.s32.totalorder %s36, 1
      %p332 = por %p330, %p331
      %p334 = scmp.ne.s32.totalorder %s319, %s333
      %p335 = scmp.eq.s32.totalorder %s36, 0
      %p336 = por %p334, %p335
      %s338 = sadd.s32 %s337, 1
      %p341 = scmp.eq.s32.totalorder %s30, 1
      %p342 = scmp.ne.s32.totalorder %s337, %s339
      %p343 = scmp.eq.s32.totalorder %s30, 0
      %p344 = por %p342, %p343
      %p345 = scmp.ne.s32.totalorder %s337, %s339
      %p346 = scmp.eq.s32.totalorder %s35, 1
      %p347 = por %p345, %p346
      %p348 = scmp.ne.s32.totalorder %s339, %s340
      %p349 = scmp.eq.s32.totalorder %s35, 0
      %p350 = por %p348, %p349
      %p351 = scmp.ne.s32.totalorder %s339, %s340
      %p352 = scmp.eq.s32.totalorder %s36, 1
      %p353 = por %p351, %p352
      %p355 = scmp.ne.s32.totalorder %s340, %s354
      %p356 = scmp.eq.s32.totalorder %s36, 0
      %p357 = por %p355, %p356
      %s359 = sadd.s32 %s358, 1
      %p362 = scmp.eq.s32.totalorder %s30, 1
      %p363 = scmp.ne.s32.totalorder %s358, %s360
      %p364 = scmp.eq.s32.totalorder %s30, 0
      %p365 = por %p363, %p364
      %p366 = scmp.ne.s32.totalorder %s358, %s360
      %p367 = scmp.eq.s32.totalorder %s35, 1
      %p368 = por %p366, %p367
      %p369 = scmp.ne.s32.totalorder %s360, %s361
      %p370 = scmp.eq.s32.totalorder %s35, 0
      %p371 = por %p369, %p370
      %p372 = scmp.ne.s32.totalorder %s360, %s361
      %p373 = scmp.eq.s32.totalorder %s36, 1
      %p374 = por %p372, %p373
      %p376 = scmp.ne.s32.totalorder %s361, %s375
      %p377 = scmp.eq.s32.totalorder %s36, 0
      %p378 = por %p376, %p377
      %s380 = sadd.s32 %s379, 1
      %p383 = scmp.eq.s32.totalorder %s30, 1
      %p384 = scmp.ne.s32.totalorder %s379, %s381
      %p385 = scmp.eq.s32.totalorder %s30, 0
      %p386 = por %p384, %p385
      %p387 = scmp.ne.s32.totalorder %s379, %s381
      %p388 = scmp.eq.s32.totalorder %s35, 1
      %p389 = por %p387, %p388
      %p390 = scmp.ne.s32.totalorder %s381, %s382
      %p391 = scmp.eq.s32.totalorder %s35, 0
      %p392 = por %p390, %p391
      %p393 = scmp.ne.s32.totalorder %s381, %s382
      %p394 = scmp.eq.s32.totalorder %s36, 1
      %p395 = por %p393, %p394
      %p397 = scmp.ne.s32.totalorder %s382, %s396
      %p398 = scmp.eq.s32.totalorder %s36, 0
      %p399 = por %p397, %p398
      %s401 = sadd.s32 %s400, 1
      %p404 = scmp.eq.s32.totalorder %s30, 1
      %p405 = scmp.ne.s32.totalorder %s400, %s402
      %p406 = scmp.eq.s32.totalorder %s30, 0
      %p407 = por %p405, %p406
      %p408 = scmp.ne.s32.totalorder %s400, %s402
      %p409 = scmp.eq.s32.totalorder %s35, 1
      %p410 = por %p408, %p409
      %p411 = scmp.ne.s32.totalorder %s402, %s403
      %p412 = scmp.eq.s32.totalorder %s35, 0
      %p413 = por %p411, %p412
      %p414 = scmp.ne.s32.totalorder %s402, %s403
      %p415 = scmp.eq.s32.totalorder %s36, 1
      %p416 = por %p414, %p415
      %p418 = scmp.ne.s32.totalorder %s403, %s417
      %p419 = scmp.eq.s32.totalorder %s36, 0
      %p420 = por %p418, %p419
      %s422 = sadd.s32 %s421, 1
      %p425 = scmp.eq.s32.totalorder %s30, 1
      %p426 = scmp.ne.s32.totalorder %s421, %s423
      %p427 = scmp.eq.s32.totalorder %s30, 0
      %p428 = por %p426, %p427
      %p429 = scmp.ne.s32.totalorder %s421, %s423
      %p430 = scmp.eq.s32.totalorder %s35, 1
      %p431 = por %p429, %p430
      %p432 = scmp.ne.s32.totalorder %s423, %s424
      %p433 = scmp.eq.s32.totalorder %s35, 0
      %p434 = por %p432, %p433
      %p435 = scmp.ne.s32.totalorder %s423, %s424
      %p436 = scmp.eq.s32.totalorder %s36, 1
      %p437 = por %p435, %p436
      %p439 = scmp.ne.s32.totalorder %s424, %s438
      %p440 = scmp.eq.s32.totalorder %s36, 0
      %p441 = por %p439, %p440
      %s443 = sadd.s32 %s442, 1
      %p446 = scmp.eq.s32.totalorder %s30, 1
      %p447 = scmp.ne.s32.totalorder %s442, %s444
      %p448 = scmp.eq.s32.totalorder %s30, 0
      %p449 = por %p447, %p448
      %p450 = scmp.ne.s32.totalorder %s442, %s444
      %p451 = scmp.eq.s32.totalorder %s35, 1
      %p452 = por %p450, %p451
      %p453 = scmp.ne.s32.totalorder %s444, %s445
      %p454 = scmp.eq.s32.totalorder %s35, 0
      %p455 = por %p453, %p454
      %p456 = scmp.ne.s32.totalorder %s444, %s445
      %p457 = scmp.eq.s32.totalorder %s36, 1
      %p458 = por %p456, %p457
      %p460 = scmp.ne.s32.totalorder %s445, %s459
      %p461 = scmp.eq.s32.totalorder %s36, 0
      %p462 = por %p460, %p461
      %s464 = sadd.s32 %s463, 1
      %p467 = scmp.eq.s32.totalorder %s30, 1
      %p468 = scmp.ne.s32.totalorder %s463, %s465
      %p469 = scmp.eq.s32.totalorder %s30, 0
      %p470 = por %p468, %p469
      %p471 = scmp.ne.s32.totalorder %s463, %s465
      %p472 = scmp.eq.s32.totalorder %s35, 1
      %p473 = por %p471, %p472
      %p474 = scmp.ne.s32.totalorder %s465, %s466
      %p475 = scmp.eq.s32.totalorder %s35, 0
      %p476 = por %p474, %p475
      %p477 = scmp.ne.s32.totalorder %s465, %s466
      %p478 = scmp.eq.s32.totalorder %s36, 1
      %p479 = por %p477, %p478
      %p481 = scmp.ne.s32.totalorder %s466, %s480
      %p482 = scmp.eq.s32.totalorder %s36, 0
      %p483 = por %p481, %p482
      %s484 = ssub.s32 %s30, %s37
      %p485 = scmp.eq.s32.totalorder %s484, 0
      %s487 = sadd.s32 %s486, 1
      %s488 = scalar_select %p485, %s486, %s487
      %p491 = pneg %p485
      %p492 = scmp.eq.s32.totalorder %s30, 1
      %p493 = por %p491, %p492
      %p494 = scmp.ne.s32.totalorder %s486, %s489
      %p495 = scmp.eq.s32.totalorder %s30, 0
      %p496 = por %p494, %p495
      %p497 = scmp.ne.s32.totalorder %s486, %s489
      %p498 = scmp.eq.s32.totalorder %s35, 1
      %p499 = por %p497, %p498
      %p500 = scmp.ne.s32.totalorder %s489, %s490
      %p501 = scmp.eq.s32.totalorder %s35, 0
      %p502 = por %p500, %p501
      %p503 = scmp.ne.s32.totalorder %s489, %s490
      %p504 = scmp.eq.s32.totalorder %s36, 1
      %p505 = por %p503, %p504
      %p507 = scmp.ne.s32.totalorder %s490, %s506
      %p508 = scmp.eq.s32.totalorder %s36, 0
      %p509 = por %p507, %p508
      %p510 = scmp.le.s32.totalorder 1, %s30
      %p511 = scmp.lt.s32.totalorder %s30, 3
      %p512 = pnand %p510, %p511
      %p513 = pneg %p512
      // Predicated region
      $region9: #{tpu_custom_call.1} parent=5 // pred_check
        _
      $region10: #{tpu_custom_call.1} parent=5 // pred_check_branch
        %515 = sbr.rel (%p512) target = $region12
      $region11: #{tpu_custom_call.1} parent=5 // pred_region
        %s516 = ssub.s32 %s30, 1
        // Predicated region
        $region13: #{tpu_custom_call.1} parent=11 // pred_check
          %p517 = pneg %p77
        $region14: #{tpu_custom_call.1} parent=11 // pred_check_branch
          %519 = sbr.rel (%p517) target = $region16
        $region15: #{tpu_custom_call.1} parent=11 // pred_region
          _
        $region16: #{tpu_custom_call.1} parent=11 // pred_fallthru
          _
        // Predicated region
        $region17: #{tpu_custom_call.1} parent=11 // pred_check
          %p520 = pneg %p98
        $region18: #{tpu_custom_call.1} parent=11 // pred_check_branch
          %522 = sbr.rel (%p520) target = $region20
        $region19: #{tpu_custom_call.1} parent=11 // pred_region
          _
        $region20: #{tpu_custom_call.1} parent=11 // pred_fallthru
          _
        // Predicated region
        $region21: #{tpu_custom_call.1} parent=11 // pred_check
          %p523 = pneg %p119
        $region22: #{tpu_custom_call.1} parent=11 // pred_check_branch
          %525 = sbr.rel (%p523) target = $region24
        $region23: #{tpu_custom_call.1} parent=11 // pred_region
          _
        $region24: #{tpu_custom_call.1} parent=11 // pred_fallthru
          _
        // Predicated region
        $region25: #{tpu_custom_call.1} parent=11 // pred_check
          %p526 = pneg %p140
        $region26: #{tpu_custom_call.1} parent=11 // pred_check_branch
          %528 = sbr.rel (%p526) target = $region28
        $region27: #{tpu_custom_call.1} parent=11 // pred_region
          _
        $region28: #{tpu_custom_call.1} parent=11 // pred_fallthru
          _
        // Predicated region
        $region29: #{tpu_custom_call.1} parent=11 // pred_check
          %p529 = pneg %p161
        $region30: #{tpu_custom_call.1} parent=11 // pred_check_branch
          %531 = sbr.rel (%p529) target = $region32
        $region31: #{tpu_custom_call.1} parent=11 // pred_region
          _
        $region32: #{tpu_custom_call.1} parent=11 // pred_fallthru
          _
        // Predicated region
        $region33: #{tpu_custom_call.1} parent=11 // pred_check
          %p532 = pneg %p182
        $region34: #{tpu_custom_call.1} parent=11 // pred_check_branch
          %534 = sbr.rel (%p532) target = $region36
        $region35: #{tpu_custom_call.1} parent=11 // pred_region
          _
        $region36: #{tpu_custom_call.1} parent=11 // pred_fallthru
          _
        // Predicated region
        $region37: #{tpu_custom_call.1} parent=11 // pred_check
          %p535 = pneg %p203
        $region38: #{tpu_custom_call.1} parent=11 // pred_check_branch
          %537 = sbr.rel (%p535) target = $region40
        $region39: #{tpu_custom_call.1} parent=11 // pred_region
          _
        $region40: #{tpu_custom_call.1} parent=11 // pred_fallthru
          _
        // Predicated region
        $region41: #{tpu_custom_call.1} parent=11 // pred_check
          %p538 = pneg %p224
        $region42: #{tpu_custom_call.1} parent=11 // pred_check_branch
          %540 = sbr.rel (%p538) target = $region44
        $region43: #{tpu_custom_call.1} parent=11 // pred_region
          _
        $region44: #{tpu_custom_call.1} parent=11 // pred_fallthru
          _
        // Predicated region
        $region45: #{tpu_custom_call.1} parent=11 // pred_check
          %p541 = pneg %p245
        $region46: #{tpu_custom_call.1} parent=11 // pred_check_branch
          %543 = sbr.rel (%p541) target = $region48
        $region47: #{tpu_custom_call.1} parent=11 // pred_region
          _
        $region48: #{tpu_custom_call.1} parent=11 // pred_fallthru
          _
        // Predicated region
        $region49: #{tpu_custom_call.1} parent=11 // pred_check
          %p544 = pneg %p266
        $region50: #{tpu_custom_call.1} parent=11 // pred_check_branch
          %546 = sbr.rel (%p544) target = $region52
        $region51: #{tpu_custom_call.1} parent=11 // pred_region
          _
        $region52: #{tpu_custom_call.1} parent=11 // pred_fallthru
          _
        // Predicated region
        $region53: #{tpu_custom_call.1} parent=11 // pred_check
          %p547 = pneg %p287
        $region54: #{tpu_custom_call.1} parent=11 // pred_check_branch
          %549 = sbr.rel (%p547) target = $region56
        $region55: #{tpu_custom_call.1} parent=11 // pred_region
          _
        $region56: #{tpu_custom_call.1} parent=11 // pred_fallthru
          _
        // Predicated region
        $region57: #{tpu_custom_call.1} parent=11 // pred_check
          %p550 = pneg %p308
        $region58: #{tpu_custom_call.1} parent=11 // pred_check_branch
          %552 = sbr.rel (%p550) target = $region60
        $region59: #{tpu_custom_call.1} parent=11 // pred_region
          _
        $region60: #{tpu_custom_call.1} parent=11 // pred_fallthru
          _
        // Predicated region
        $region61: #{tpu_custom_call.1} parent=11 // pred_check
          %p553 = pneg %p329
        $region62: #{tpu_custom_call.1} parent=11 // pred_check_branch
          %555 = sbr.rel (%p553) target = $region64
        $region63: #{tpu_custom_call.1} parent=11 // pred_region
          _
        $region64: #{tpu_custom_call.1} parent=11 // pred_fallthru
          _
        // Predicated region
        $region65: #{tpu_custom_call.1} parent=11 // pred_check
          %p556 = pneg %p350
        $region66: #{tpu_custom_call.1} parent=11 // pred_check_branch
          %558 = sbr.rel (%p556) target = $region68
        $region67: #{tpu_custom_call.1} parent=11 // pred_region
          _
        $region68: #{tpu_custom_call.1} parent=11 // pred_fallthru
          _
        // Predicated region
        $region69: #{tpu_custom_call.1} parent=11 // pred_check
          %p559 = pneg %p371
        $region70: #{tpu_custom_call.1} parent=11 // pred_check_branch
          %561 = sbr.rel (%p559) target = $region72
        $region71: #{tpu_custom_call.1} parent=11 // pred_region
          _
        $region72: #{tpu_custom_call.1} parent=11 // pred_fallthru
          _
        // Predicated region
        $region73: #{tpu_custom_call.1} parent=11 // pred_check
          %p562 = pneg %p392
        $region74: #{tpu_custom_call.1} parent=11 // pred_check_branch
          %564 = sbr.rel (%p562) target = $region76
        $region75: #{tpu_custom_call.1} parent=11 // pred_region
          _
        $region76: #{tpu_custom_call.1} parent=11 // pred_fallthru
          _
        // Predicated region
        $region77: #{tpu_custom_call.1} parent=11 // pred_check
          %p565 = pneg %p413
        $region78: #{tpu_custom_call.1} parent=11 // pred_check_branch
          %567 = sbr.rel (%p565) target = $region80
        $region79: #{tpu_custom_call.1} parent=11 // pred_region
          _
        $region80: #{tpu_custom_call.1} parent=11 // pred_fallthru
          _
        // Predicated region
        $region81: #{tpu_custom_call.1} parent=11 // pred_check
          %p568 = pneg %p434
        $region82: #{tpu_custom_call.1} parent=11 // pred_check_branch
          %570 = sbr.rel (%p568) target = $region84
        $region83: #{tpu_custom_call.1} parent=11 // pred_region
          _
        $region84: #{tpu_custom_call.1} parent=11 // pred_fallthru
          _
        // Predicated region
        $region85: #{tpu_custom_call.1} parent=11 // pred_check
          %p571 = pneg %p455
        $region86: #{tpu_custom_call.1} parent=11 // pred_check_branch
          %573 = sbr.rel (%p571) target = $region88
        $region87: #{tpu_custom_call.1} parent=11 // pred_region
          _
        $region88: #{tpu_custom_call.1} parent=11 // pred_fallthru
          _
        // Predicated region
        $region89: #{tpu_custom_call.1} parent=11 // pred_check
          %p574 = pneg %p476
        $region90: #{tpu_custom_call.1} parent=11 // pred_check_branch
          %576 = sbr.rel (%p574) target = $region92
        $region91: #{tpu_custom_call.1} parent=11 // pred_region
          _
        $region92: #{tpu_custom_call.1} parent=11 // pred_fallthru
          _
      $region12: #{tpu_custom_call.1} parent=5 // pred_fallthru
        _
      %p577 = scmp.lt.s32.totalorder %s30, 2
      // Predicated region
      $region93: #{tpu_custom_call.1} parent=5 // pred_check
        %p578 = pneg %p577
      $region94: #{tpu_custom_call.1} parent=5 // pred_check_branch
        %580 = sbr.rel (%p578) target = $region96
      $region95: #{tpu_custom_call.1} parent=5 // pred_region
        // Predicated region
        $region97: #{tpu_custom_call.1} parent=95 // pred_check
          %p581 = pneg %p50
        $region98: #{tpu_custom_call.1} parent=95 // pred_check_branch
          %583 = sbr.rel (%p581) target = $region100
        $region99: #{tpu_custom_call.1} parent=95 // pred_region
          %s584 = smul.u32 2, %s30
          %p585 = scmp.lt.s32.totalorder %s584, 3
          %s586 = scalar_select %p585, %s584, 3
          %s587 = smul.addr %s586, 8
          %s588 = scalar_lea.vmem %s0, %s587
          %s589 = smul.u32 2, %s30
        $region100: #{tpu_custom_call.1} parent=95 // pred_fallthru
          _
      $region96: #{tpu_custom_call.1} parent=5 // pred_fallthru
        _
      %p590 = scmp.le.s32.totalorder 1, %s30
      %p591 = scmp.lt.s32.totalorder %s30, 3
      %p592 = pnand %p590, %p591
      %p593 = pneg %p592
      // Predicated region
      $region101: #{tpu_custom_call.1} parent=5 // pred_check
        _
      $region102: #{tpu_custom_call.1} parent=5 // pred_check_branch
        %595 = sbr.rel (%p592) target = $region104
      $region103: #{tpu_custom_call.1} parent=5 // pred_region
        %s596 = ssub.s32 %s30, 1
        %s597 = smul.u32 2, %s35
        %p598 = scmp.lt.s32.totalorder %s597, 3
        %s599 = scalar_select %p598, %s597, 3
        %s600 = smul.addr %s599, 8
        %s601 = scalar_lea.vmem %s0, %s600
        %p602 = pneg %p56
        %p603 = pneg %p53
        %p604 = pneg %p77
        %p605 = pneg %p74
        %p606 = pneg %p98
        %p607 = pneg %p95
        %p608 = pneg %p119
        %p609 = pneg %p116
        %p610 = pneg %p140
        %p611 = pneg %p137
        %p612 = pneg %p161
        %p613 = pneg %p158
        %p614 = pneg %p182
        %p615 = pneg %p179
        %p616 = pneg %p203
        %p617 = pneg %p200
        %p618 = pneg %p224
        %p619 = pneg %p221
        %p620 = pneg %p245
        %p621 = pneg %p242
        %p622 = pneg %p266
        %p623 = pneg %p263
        %p624 = pneg %p287
        %p625 = pneg %p284
        %p626 = pneg %p308
        %p627 = pneg %p305
        %p628 = pneg %p329
        %p629 = pneg %p326
        %p630 = pneg %p350
        %p631 = pneg %p347
        %p632 = pneg %p371
        %p633 = pneg %p368
        %p634 = pneg %p392
        %p635 = pneg %p389
        %p636 = pneg %p413
        %p637 = pneg %p410
        %p638 = pneg %p434
        %p639 = pneg %p431
        %p640 = pneg %p455
        %p641 = pneg %p452
        %p642 = pneg %p476
        %p643 = pneg %p473
        %p644 = pneg %p502
        %p645 = pneg %p499
        %s646 = sand.u32 %s489, 1
        %s647 = scalar_lea.sflag [#allocation4], %s646
        %s648 = sand.u32 %s489, 1
        %s649 = smul.addr %s648, 16
        %s650 = scalar_lea.vmem [#allocation3], %s649
        %s651 = smul.u32 2, %s35
        %p652 = scmp.lt.s32.totalorder %s651, 3
        %s653 = scalar_select %p652, %s651, 3
        %s654 = smul.addr %s653, 8
        %s655 = scalar_lea.vmem %s0, %s654
        %s656 = smul.u32 2, %s35
        %s657 = smul.u32 2, %s35
        %v659 = vld [vmem:[%s655] sm:$0xff]
        %v660 = vld [vmem:[%s655 + $0x8] sm:$0xff]
        %v661 = vld [vmem:[%s1] sm:$0x1]
        %vm662 = vcmask 523264
        %v663 = vsel %vm662, %v659, 0.0
        %664 = vadd.xlane.f32.xlu0 %v663
        %v665 = vpop.xlane.xlu0 %664
        %v666 = vsel %vm662, %v660, 0.0
        %667 = vadd.xlane.f32.xlu0 %v666
        %v668 = vpop.xlane.xlu0 %667
        %v669 = vrcp.pop 64.0
        %v670 = vmul.f32 64.0, %v669
        %v671 = vsub.f32 1.0, %v670
        %v672 = vmul.f32 %v669, %v671
        %v673 = vadd.f32 %v669, %v672
        %vm674 = vweird.f32 %v669
        %v675 = vsel %vm674, %v669, %v673
        %v676 = vmul.f32 %v665, %v675
        %v677 = vmul.f32 %v668, %v675
        %v678 = vsub.f32 %v659, %v676
        %v679 = vsub.f32 %v660, %v677
        %v680 = vmul.f32 %v678, %v678
        %v681 = vmul.f32 %v679, %v679
        %v682 = vsel %vm662, %v680, 0.0
        %683 = vadd.xlane.f32.xlu0 %v682
        %v684 = vpop.xlane.xlu0 %683
        %v685 = vsel %vm662, %v681, 0.0
        %686 = vadd.xlane.f32.xlu0 %v685
        %v687 = vpop.xlane.xlu0 %686
        %v688 = vmul.f32 %v684, %v675
        %v689 = vmul.f32 %v687, %v675
        %v690 = vadd.f32 %v688, 1e-05
        %v691 = vadd.f32 %v689, 1e-05
        %v692 = vrsqrt.pop %v690
        %v693 = vmul.f32 %v692, %v690
        %v694 = vmul.f32 %v693, %v692
        %v695 = vmul.f32 0.5, %v694
        %v696 = vsub.f32 1.5, %v695
        %v697 = vmul.f32 %v692, %v696
        %vm698 = vweird.f32 %v690
        %vm699 = vweird.f32 %v692
        %vm700 = vmor %vm698, %vm699
        %v701 = vsel %vm700, %v692, %v697
        %v702 = vrsqrt.pop %v691
        %v703 = vmul.f32 %v702, %v691
        %v704 = vmul.f32 %v703, %v702
        %v705 = vmul.f32 0.5, %v704
        %v706 = vsub.f32 1.5, %v705
        %v707 = vmul.f32 %v702, %v706
        %vm708 = vweird.f32 %v691
        %vm709 = vweird.f32 %v702
        %vm710 = vmor %vm708, %vm709
        %v711 = vsel %vm710, %v702, %v707
        %v712 = vmul.f32 %v678, %v701
        %v713 = vmul.f32 %v679, %v711
        %v715 = vperm.slane %v661, 0
        %v717 = vmul.f32 %v712, %v715
        %v718 = vmul.f32 %v713, %v715
        %v719 = vpack.c.bf16 %v718, %v717
        %v720 = vld [vmem:[%s2] sm:$0xf]
        %v721 = vld [vmem:[%s2 + $0x4] sm:$0xf]
        %v722 = vld [vmem:[%s2 + $0x8] sm:$0xf]
        %v723 = vld [vmem:[%s2 + $0xc] sm:$0xf]
        %v724 = vld [vmem:[%s2 + $0x10] sm:$0xf]
        %v725 = vld [vmem:[%s2 + $0x14] sm:$0xf]
        %v726 = vld [vmem:[%s2 + $0x18] sm:$0xf]
        %v727 = vld [vmem:[%s2 + $0x1c] sm:$0xf]
        %v728 = vld [vmem:[%s2 + $0x20] sm:$0xf]
        %v729 = vld [vmem:[%s2 + $0x24] sm:$0xf]
        %v730 = vld [vmem:[%s2 + $0x28] sm:$0xf]
        %v731 = vld [vmem:[%s2 + $0x2c] sm:$0xf]
        %v732 = vld [vmem:[%s2 + $0x30] sm:$0xf]
        %v733 = vld [vmem:[%s2 + $0x34] sm:$0xf]
        %v734 = vld [vmem:[%s2 + $0x38] sm:$0xf]
        %v735 = vld [vmem:[%s2 + $0x3c] sm:$0xf]
        %v736 = vld [vmem:[%s2 + $0x40] sm:$0xf]
        %v737 = vld [vmem:[%s2 + $0x44] sm:$0xf]
        %v738 = vld [vmem:[%s2 + $0x48] sm:$0xf]
        %v739 = vld [vmem:[%s2 + $0x4c] sm:$0xf]
        %v740 = vld [vmem:[%s2 + $0x50] sm:$0xf]
        %v741 = vld [vmem:[%s2 + $0x54] sm:$0xf]
        %v742 = vld [vmem:[%s2 + $0x58] sm:$0xf]
        %v743 = vld [vmem:[%s2 + $0x5c] sm:$0xf]
        %v744 = vld [vmem:[%s2 + $0x60] sm:$0xf]
        %v745 = vld [vmem:[%s2 + $0x64] sm:$0xf]
        %v746 = vld [vmem:[%s2 + $0x68] sm:$0xf]
        %v747 = vld [vmem:[%s2 + $0x6c] sm:$0xf]
        %v748 = vld [vmem:[%s2 + $0x70] sm:$0xf]
        %v749 = vld [vmem:[%s2 + $0x74] sm:$0xf]
        %v750 = vld [vmem:[%s2 + $0x78] sm:$0xf]
        %v751 = vld [vmem:[%s2 + $0x7c] sm:$0xf]
        %v784 = vunpack.c.l.b16 %v720
        %v785 = vunpack.c.l.b16 %v721
        %v786 = vunpack.c.l.b16 %v722
        %v787 = vunpack.c.l.b16 %v723
        %v788 = vunpack.c.l.b16 %v724
        %v789 = vunpack.c.l.b16 %v725
        %v790 = vunpack.c.l.b16 %v726
        %v791 = vunpack.c.l.b16 %v727
        %v792 = vunpack.c.l.b16 %v728
        %v793 = vunpack.c.l.b16 %v729
        %v794 = vunpack.c.l.b16 %v730
        %v795 = vunpack.c.l.b16 %v731
        %v796 = vunpack.c.l.b16 %v732
        %v797 = vunpack.c.l.b16 %v733
        %v798 = vunpack.c.l.b16 %v734
        %v799 = vunpack.c.l.b16 %v735
        %v800 = vunpack.c.l.b16 %v736
        %v801 = vunpack.c.l.b16 %v737
        %v802 = vunpack.c.l.b16 %v738
        %v803 = vunpack.c.l.b16 %v739
        %v804 = vunpack.c.l.b16 %v740
        %v805 = vunpack.c.l.b16 %v741
        %v806 = vunpack.c.l.b16 %v742
        %v807 = vunpack.c.l.b16 %v743
        %v808 = vunpack.c.l.b16 %v744
        %v809 = vunpack.c.l.b16 %v745
        %v810 = vunpack.c.l.b16 %v746
        %v811 = vunpack.c.l.b16 %v747
        %v812 = vunpack.c.l.b16 %v748
        %v813 = vunpack.c.l.b16 %v749
        %v814 = vunpack.c.l.b16 %v750
        %v815 = vunpack.c.l.b16 %v751
        %v816 = vpack.c.b16 %v785, %v784
        %v817 = vpack.c.b16 %v787, %v786
        %v818 = vpack.c.b16 %v789, %v788
        %v819 = vpack.c.b16 %v791, %v790
        %v820 = vpack.c.b16 %v793, %v792
        %v821 = vpack.c.b16 %v795, %v794
        %v822 = vpack.c.b16 %v797, %v796
        %v823 = vpack.c.b16 %v799, %v798
        %v824 = vpack.c.b16 %v801, %v800
        %v825 = vpack.c.b16 %v803, %v802
        %v826 = vpack.c.b16 %v805, %v804
        %v827 = vpack.c.b16 %v807, %v806
        %v828 = vpack.c.b16 %v809, %v808
        %v829 = vpack.c.b16 %v811, %v810
        %v830 = vpack.c.b16 %v813, %v812
        %v831 = vpack.c.b16 %v815, %v814
        %v833 = vsel %vm662, %v719, 0
        %v836 = vsel %vm662, %v816, 0
        %v839 = vsel %vm662, %v817, 0
        %v842 = vsel %vm662, %v818, 0
        %v845 = vsel %vm662, %v819, 0
        %v848 = vsel %vm662, %v820, 0
        %v851 = vsel %vm662, %v821, 0
        %v854 = vsel %vm662, %v822, 0
        %v857 = vsel %vm662, %v823, 0
        %v860 = vsel %vm662, %v824, 0
        %v863 = vsel %vm662, %v825, 0
        %v866 = vsel %vm662, %v826, 0
        %v869 = vsel %vm662, %v827, 0
        %v872 = vsel %vm662, %v828, 0
        %v875 = vsel %vm662, %v829, 0
        %v878 = vsel %vm662, %v830, 0
        %v881 = vsel %vm662, %v831, 0
        %883 = vmatpush.bf16.xpose.msra.mxu0 %v857
        %884 = vmatpush.bf16.xpose.msra.mxu0 %v854
        %885 = vmatpush.bf16.xpose.msra.mxu0 %v851
        %886 = vmatpush.bf16.xpose.msra.mxu0 %v848
        %887 = vmatpush.bf16.xpose.msra.mxu0 %v845
        %888 = vmatpush.bf16.xpose.msra.mxu0 %v842
        %889 = vmatpush.bf16.xpose.msra.mxu0 %v839
        %890 = vmatpush.bf16.xpose.msra.mxu0 %v836
        %891 = vmatmul.bf16.gmra.mxu0 %v833
        %v892 = vpop.f32.mrf.mxu0
        %v893 = vadd.f32 0.0, %v892
        %v894 = vpop.f32.mrf.mxu0
        %v895 = vadd.f32 0.0, %v894
        %896 = vdwg.mxu0
        %897 = vmatpush.bf16.xpose.msra.mxu0 %v881
        %898 = vmatpush.bf16.xpose.msra.mxu0 %v878
        %899 = vmatpush.bf16.xpose.msra.mxu0 %v875
        %900 = vmatpush.bf16.xpose.msra.mxu0 %v872
        %901 = vmatpush.bf16.xpose.msra.mxu0 %v869
        %902 = vmatpush.bf16.xpose.msra.mxu0 %v866
        %903 = vmatpush.bf16.xpose.msra.mxu0 %v863
        %904 = vmatpush.bf16.xpose.msra.mxu0 %v860
        %905 = vmatmul.bf16.gmra.mxu0 %v833
        %v906 = vpop.f32.mrf.mxu0
        %v907 = vadd.f32 0.0, %v906
        %v908 = vpop.f32.mrf.mxu0
        %v909 = vadd.f32 0.0, %v908
        %910 = vdwg.mxu0
        %v911 = vlaneseq
        %v912 = vshrl.u32 %v911, 7
        %v913 = vadd.s32 %v912, 8
        %vm914 = vcmp.lt.s32.totalorder %v912, 0
        %v915 = vsub.s32 0, %v912
        %v916 = vsel %vm914, %v915, %v912
        %v917 = vshrl.u32 %v916, 3
        %v918 = vand.u32 %v916, 7
        %v919 = vsub.s32 0, %v918
        %v920 = vsel %vm914, %v919, %v918
        %vm921 = vcmp.lt.s32.totalorder %v913, 0
        %v922 = vsub.s32 0, %v913
        %v923 = vsel %vm921, %v922, %v913
        %v924 = vshrl.u32 %v923, 3
        %v925 = vand.u32 %v923, 7
        %v926 = vsub.s32 0, %v925
        %v927 = vsel %vm921, %v926, %v925
        %vm928 = vcmp.ne.s32.totalorder %v920, 0
        %vm929 = vcmp.ne.s32.totalorder %v927, 0
        %vm930 = vcmp.lt.s32.totalorder %v920, 0
        %vm931 = vcmp.lt.s32.totalorder %v927, 0
        %vm932 = vmand %vm930, %vm928
        %vm933 = vmand %vm931, %vm929
        %v934 = vadd.s32 %v920, 8
        %v935 = vadd.s32 %v927, 8
        %v936 = vsel %vm932, %v934, %v920
        %v937 = vsel %vm933, %v935, %v927
        %v938 = vld [vmem:[%s3 + $0x3] sm:$0x1]
        %v939 = vperm.slane %v938, 0
        %v940 = vmul.f32 %v893, %v939
        %v941 = vmul.f32 %v895, %v939
        %v942 = vld [vmem:[%s4] sm:$0x1]
        %v944 = vperm.slane %v942, 0
        %v946 = vadd.f32 %v940, %v944
        %v947 = vadd.f32 %v941, %v944
        %vm948 = vcmp.ge.s32.totalorder %v936, 1
        %vm949 = vcmp.ge.s32.totalorder %v937, 1
        %v950 = vrot.slane %v893, 7
        %v951 = vrot.slane %v895, 7
        %vm952 = vcmp.lt.s32.totalorder %v912, 1
        %v953 = vsel %vm952, %v950, %v951
        %v954 = vsel %vm952, %v951, %v950
        %v955 = vsel %vm948, 1, 0
        %v956 = vsel %vm949, 1, 0
        %vm957 = vcmp.eq.s32.totalorder %v955, 1
        %vm958 = vcmp.eq.s32.totalorder %v956, 1
        %v959 = vsel %vm957, %v954, 0.0
        %v960 = vsel %vm958, %v953, 0.0
        %v961 = vld [vmem:[%s3 + $0x2] sm:$0x1]
        %v962 = vperm.slane %v961, 0
        %v963 = vmul.f32 %v959, %v962
        %v964 = vmul.f32 %v960, %v962
        %v965 = vadd.f32 %v946, %v963
        %v966 = vadd.f32 %v947, %v964
        %vm967 = vcmp.ge.s32.totalorder %v936, 2
        %vm968 = vcmp.ge.s32.totalorder %v937, 2
        %v969 = vrot.slane %v893, 6
        %v970 = vrot.slane %v895, 6
        %vm971 = vcmp.lt.s32.totalorder %v912, 2
        %v972 = vsel %vm971, %v969, %v970
        %v973 = vsel %vm971, %v970, %v969
        %v974 = vsel %vm967, 1, 0
        %v975 = vsel %vm968, 1, 0
        %vm976 = vcmp.eq.s32.totalorder %v974, 1
        %vm977 = vcmp.eq.s32.totalorder %v975, 1
        %v978 = vsel %vm976, %v973, 0.0
        %v979 = vsel %vm977, %v972, 0.0
        %v980 = vld [vmem:[%s3 + $0x1] sm:$0x1]
        %v981 = vperm.slane %v980, 0
        %v982 = vmul.f32 %v978, %v981
        %v983 = vmul.f32 %v979, %v981
        %v984 = vadd.f32 %v965, %v982
        %v985 = vadd.f32 %v966, %v983
        %vm986 = vcmp.ge.s32.totalorder %v936, 3
        %vm987 = vcmp.ge.s32.totalorder %v937, 3
        %v988 = vrot.slane %v893, 5
        %v989 = vrot.slane %v895, 5
        %vm990 = vcmp.lt.s32.totalorder %v912, 3
        %v991 = vsel %vm990, %v988, %v989
        %v992 = vsel %vm990, %v989, %v988
        %v993 = vsel %vm986, 1, 0
        %v994 = vsel %vm987, 1, 0
        %vm995 = vcmp.eq.s32.totalorder %v993, 1
        %vm996 = vcmp.eq.s32.totalorder %v994, 1
        %v997 = vsel %vm995, %v992, 0.0
        %v998 = vsel %vm996, %v991, 0.0
        %v999 = vld [vmem:[%s3] sm:$0x1]
        %v1000 = vperm.slane %v999, 0
        %v1001 = vmul.f32 %v997, %v1000
        %v1002 = vmul.f32 %v998, %v1000
        %v1003 = vadd.f32 %v984, %v1001
        %v1004 = vadd.f32 %v985, %v1002
        %v1005 = vand.u32 2147483647, %v1003
        %v1006 = vand.u32 2147483647, %v1004
        %v1007 = vsub.f32 0.0, %v1005
        %v1008 = vsub.f32 0.0, %v1006
        %v1009 = vmul.f32 %v1007, 1.442695
        %v1010 = vpow.pop %v1009
        %v1011 = vmul.f32 %v1008, 1.442695
        %v1012 = vpow.pop %v1011
        %v1013 = vadd.f32 %v1010, 1.0
        %v1014 = vadd.f32 %v1012, 1.0
        %v1015 = vrcp.pop %v1013
        %v1016 = vrcp.pop %v1014
        %vm1017 = vcmp.ge.f32.partialorder %v1003, 0.0
        %vm1018 = vcmp.ge.f32.partialorder %v1004, 0.0
        %v1019 = vmul.f32 %v1010, %v1015
        %v1020 = vmul.f32 %v1012, %v1016
        %v1021 = vsel %vm1017, %v1015, %v1019
        %v1022 = vsel %vm1018, %v1016, %v1020
        %v1023 = vmul.f32 %v1003, %v1021
        %v1024 = vmul.f32 %v1004, %v1022
        %1025 = vrot.lane.b32.xlu0 %v1023, 127
        %v1026 = vpop.permute.xlu0 %1025
        %1027 = vrot.lane.b32.xlu0 %v1024, 127
        %v1028 = vpop.permute.xlu0 %1027
        %1029 = vrot.lane.b32.xlu0 %v1023, 1
        %v1030 = vpop.permute.xlu0 %1029
        %1031 = vrot.lane.b32.xlu0 %v1024, 1
        %v1032 = vpop.permute.xlu0 %1031
        %1033 = vrot.lane.b32.xlu0 %v893, 127
        %v1034 = vpop.permute.xlu0 %1033
        %1035 = vrot.lane.b32.xlu0 %v895, 127
        %v1036 = vpop.permute.xlu0 %1035
        %1037 = vrot.lane.b32.xlu0 %v893, 1
        %v1038 = vpop.permute.xlu0 %1037
        %1039 = vrot.lane.b32.xlu0 %v895, 1
        %v1040 = vpop.permute.xlu0 %1039
        %1041 = vrot.lane.b32.xlu0 %v1023, 126
        %v1042 = vpop.permute.xlu0 %1041
        %1043 = vrot.lane.b32.xlu0 %v1024, 126
        %v1044 = vpop.permute.xlu0 %1043
        %1045 = vrot.lane.b32.xlu0 %v1023, 2
        %v1046 = vpop.permute.xlu0 %1045
        %1047 = vrot.lane.b32.xlu0 %v1024, 2
        %v1048 = vpop.permute.xlu0 %1047
        %1049 = vrot.lane.b32.xlu0 %v893, 126
        %v1050 = vpop.permute.xlu0 %1049
        %1051 = vrot.lane.b32.xlu0 %v895, 126
        %v1052 = vpop.permute.xlu0 %1051
        %1053 = vrot.lane.b32.xlu0 %v893, 2
        %v1054 = vpop.permute.xlu0 %1053
        %1055 = vrot.lane.b32.xlu0 %v895, 2
        %v1056 = vpop.permute.xlu0 %1055
        %1057 = vrot.lane.b32.xlu0 %v1023, 125
        %v1058 = vpop.permute.xlu0 %1057
        %1059 = vrot.lane.b32.xlu0 %v1024, 125
        %v1060 = vpop.permute.xlu0 %1059
        %1061 = vrot.lane.b32.xlu0 %v1023, 3
        %v1062 = vpop.permute.xlu0 %1061
        %1063 = vrot.lane.b32.xlu0 %v1024, 3
        %v1064 = vpop.permute.xlu0 %1063
        %1065 = vrot.lane.b32.xlu0 %v893, 125
        %v1066 = vpop.permute.xlu0 %1065
        %1067 = vrot.lane.b32.xlu0 %v895, 125
        %v1068 = vpop.permute.xlu0 %1067
        %1069 = vrot.lane.b32.xlu0 %v893, 3
        %v1070 = vpop.permute.xlu0 %1069
        %1071 = vrot.lane.b32.xlu0 %v895, 3
        %v1072 = vpop.permute.xlu0 %1071
        %v1073 = vld [vmem:[%s5 + $0x3] sm:$0x1]
        %v1074 = vperm.slane %v1073, 0
        %v1075 = vmul.f32 %v1023, %v1074
        %v1076 = vmul.f32 %v1024, %v1074
        %v1077 = vld [vmem:[%s5 + $0x4] sm:$0x1]
        %v1078 = vperm.slane %v1077, 0
        %v1079 = vmul.f32 %v1026, %v1078
        %v1080 = vmul.f32 %v1028, %v1078
        %v1081 = vadd.f32 %v1075, %v1079
        %v1082 = vadd.f32 %v1076, %v1080
        %v1083 = vld [vmem:[%s5 + $0x2] sm:$0x1]
        %v1084 = vperm.slane %v1083, 0
        %v1085 = vmul.f32 %v1030, %v1084
        %v1086 = vmul.f32 %v1032, %v1084
        %v1087 = vadd.f32 %v1081, %v1085
        %v1088 = vadd.f32 %v1082, %v1086
        %v1089 = vld [vmem:[%s5 + $0x5] sm:$0x1]
        %v1090 = vperm.slane %v1089, 0
        %v1091 = vmul.f32 %v1042, %v1090
        %v1092 = vmul.f32 %v1044, %v1090
        %v1093 = vadd.f32 %v1087, %v1091
        %v1094 = vadd.f32 %v1088, %v1092
        %v1095 = vld [vmem:[%s5 + $0x1] sm:$0x1]
        %v1096 = vperm.slane %v1095, 0
        %v1097 = vmul.f32 %v1046, %v1096
        %v1098 = vmul.f32 %v1048, %v1096
        %v1099 = vadd.f32 %v1093, %v1097
        %v1100 = vadd.f32 %v1094, %v1098
        %v1101 = vld [vmem:[%s5 + $0x6] sm:$0x1]
        %v1102 = vperm.slane %v1101, 0
        %v1103 = vmul.f32 %v1058, %v1102
        %v1104 = vmul.f32 %v1060, %v1102
        %v1105 = vadd.f32 %v1099, %v1103
        %v1106 = vadd.f32 %v1100, %v1104
        %v1107 = vld [vmem:[%s5] sm:$0x1]
        %v1108 = vperm.slane %v1107, 0
        %v1109 = vmul.f32 %v1062, %v1108
        %v1110 = vmul.f32 %v1064, %v1108
        %v1111 = vadd.f32 %v1105, %v1109
        %v1112 = vadd.f32 %v1106, %v1110
        %v1113 = vld [vmem:[%s6 + $0x3] sm:$0x1]
        %v1114 = vperm.slane %v1113, 0
        %v1115 = vmul.f32 %v1023, %v1114
        %v1116 = vmul.f32 %v1024, %v1114
        %v1117 = vld [vmem:[%s6 + $0x4] sm:$0x1]
        %v1118 = vperm.slane %v1117, 0
        %v1119 = vmul.f32 %v1026, %v1118
        %v1120 = vmul.f32 %v1028, %v1118
        %v1121 = vadd.f32 %v1115, %v1119
        %v1122 = vadd.f32 %v1116, %v1120
        %v1123 = vld [vmem:[%s6 + $0x2] sm:$0x1]
        %v1124 = vperm.slane %v1123, 0
        %v1125 = vmul.f32 %v1030, %v1124
        %v1126 = vmul.f32 %v1032, %v1124
        %v1127 = vadd.f32 %v1121, %v1125
        %v1128 = vadd.f32 %v1122, %v1126
        %v1129 = vld [vmem:[%s6 + $0x5] sm:$0x1]
        %v1130 = vperm.slane %v1129, 0
        %v1131 = vmul.f32 %v1042, %v1130
        %v1132 = vmul.f32 %v1044, %v1130
        %v1133 = vadd.f32 %v1127, %v1131
        %v1134 = vadd.f32 %v1128, %v1132
        %v1135 = vld [vmem:[%s6 + $0x1] sm:$0x1]
        %v1136 = vperm.slane %v1135, 0
        %v1137 = vmul.f32 %v1046, %v1136
        %v1138 = vmul.f32 %v1048, %v1136
        %v1139 = vadd.f32 %v1133, %v1137
        %v1140 = vadd.f32 %v1134, %v1138
        %v1141 = vld [vmem:[%s6 + $0x6] sm:$0x1]
        %v1142 = vperm.slane %v1141, 0
        %v1143 = vmul.f32 %v1058, %v1142
        %v1144 = vmul.f32 %v1060, %v1142
        %v1145 = vadd.f32 %v1139, %v1143
        %v1146 = vadd.f32 %v1140, %v1144
        %v1147 = vld [vmem:[%s6] sm:$0x1]
        %v1148 = vperm.slane %v1147, 0
        %v1149 = vmul.f32 %v1062, %v1148
        %v1150 = vmul.f32 %v1064, %v1148
        %v1151 = vadd.f32 %v1145, %v1149
        %v1152 = vadd.f32 %v1146, %v1150
        %v1153 = vld [vmem:[%s7 + $0x3] sm:$0x1]
        %v1154 = vperm.slane %v1153, 0
        %v1155 = vmul.f32 %v893, %v1154
        %v1156 = vmul.f32 %v895, %v1154
        %v1157 = vld [vmem:[%s7 + $0x4] sm:$0x1]
        %v1158 = vperm.slane %v1157, 0
        %v1159 = vmul.f32 %v1034, %v1158
        %v1160 = vmul.f32 %v1036, %v1158
        %v1161 = vadd.f32 %v1155, %v1159
        %v1162 = vadd.f32 %v1156, %v1160
        %v1163 = vld [vmem:[%s7 + $0x2] sm:$0x1]
        %v1164 = vperm.slane %v1163, 0
        %v1165 = vmul.f32 %v1038, %v1164
        %v1166 = vmul.f32 %v1040, %v1164
        %v1167 = vadd.f32 %v1161, %v1165
        %v1168 = vadd.f32 %v1162, %v1166
        %v1169 = vld [vmem:[%s7 + $0x5] sm:$0x1]
        %v1170 = vperm.slane %v1169, 0
        %v1171 = vmul.f32 %v1050, %v1170
        %v1172 = vmul.f32 %v1052, %v1170
        %v1173 = vadd.f32 %v1167, %v1171
        %v1174 = vadd.f32 %v1168, %v1172
        %v1175 = vld [vmem:[%s7 + $0x1] sm:$0x1]
        %v1176 = vperm.slane %v1175, 0
        %v1177 = vmul.f32 %v1054, %v1176
        %v1178 = vmul.f32 %v1056, %v1176
        %v1179 = vadd.f32 %v1173, %v1177
        %v1180 = vadd.f32 %v1174, %v1178
        %v1181 = vld [vmem:[%s7 + $0x6] sm:$0x1]
        %v1182 = vperm.slane %v1181, 0
        %v1183 = vmul.f32 %v1066, %v1182
        %v1184 = vmul.f32 %v1068, %v1182
        %v1185 = vadd.f32 %v1179, %v1183
        %v1186 = vadd.f32 %v1180, %v1184
        %v1187 = vld [vmem:[%s7] sm:$0x1]
        %v1188 = vperm.slane %v1187, 0
        %v1189 = vmul.f32 %v1070, %v1188
        %v1190 = vmul.f32 %v1072, %v1188
        %v1191 = vadd.f32 %v1185, %v1189
        %v1192 = vadd.f32 %v1186, %v1190
        %v1193 = vpack.c.bf16 %v1111, %v1111
        %v1194 = vpack.c.bf16 %v1112, %v1112
        %v1195 = vpack.c.bf16 %v1151, %v1151
        %v1196 = vpack.c.bf16 %v1152, %v1152
        %v1197 = vpack.c.bf16 %v1191, %v1191
        %v1198 = vpack.c.bf16 %v1192, %v1192
        %v1199 = vld [vmem:[%s8] sm:$0xf]
        %v1200 = vld [vmem:[%s9] sm:$0xf]
        %v1203 = vunpack.c.l.b16 %v1195
        %v1204 = vunpack.c.l.b16 %v1196
        %v1205 = vpack.c.b16 %v1204, %v1203
        %1207 = vmatpush.bf16.xpose.msra.mxu0 0
        %1208 = vmatpush.bf16.xpose.msra.mxu0 0
        %1209 = vmatpush.bf16.xpose.msra.mxu0 0
        %1210 = vmatpush.bf16.xpose.msra.mxu0 0
        %1211 = vmatpush.bf16.xpose.msra.mxu0 0
        %1212 = vmatpush.bf16.xpose.msra.mxu0 0
        %1213 = vmatpush.bf16.xpose.msra.mxu0 0
        %1214 = vmatpush.bf16.xpose.msra.mxu0 %v1200
        %1215 = vmatmul.bf16.gmra.mxu0 %v1205
        %v1216 = vpop.f32.mrf.mxu0
        %v1217 = vadd.f32 0.0, %v1216
        %v1218 = vpop.f32.mrf.mxu0
        %v1219 = vadd.f32 0.0, %v1218
        %1220 = vdwg.mxu0
        %v1223 = vunpack.c.l.b16 %v1193
        %v1224 = vunpack.c.l.b16 %v1194
        %v1225 = vpack.c.b16 %v1224, %v1223
        %1227 = vmatpush.bf16.xpose.msra.mxu0 0
        %1228 = vmatpush.bf16.xpose.msra.mxu0 0
        %1229 = vmatpush.bf16.xpose.msra.mxu0 0
        %1230 = vmatpush.bf16.xpose.msra.mxu0 0
        %1231 = vmatpush.bf16.xpose.msra.mxu0 0
        %1232 = vmatpush.bf16.xpose.msra.mxu0 0
        %1233 = vmatpush.bf16.xpose.msra.mxu0 0
        %1234 = vmatpush.bf16.xpose.msra.mxu0 %v1199
        %1235 = vmatmul.bf16.gmra.mxu0 %v1225
        %v1236 = vpop.f32.mrf.mxu0
        %v1237 = vadd.f32 %v1217, %v1236
        %v1238 = vpop.f32.mrf.mxu0
        %v1239 = vadd.f32 %v1219, %v1238
        %1240 = vdwg.mxu0
        %v1241 = vld [vmem:[%s10] sm:$0xf]
        %v1244 = vunpack.c.l.b16 %v1197
        %v1245 = vunpack.c.l.b16 %v1198
        %v1246 = vpack.c.b16 %v1245, %v1244
        %1248 = vmatpush.bf16.xpose.msra.mxu0 0
        %1249 = vmatpush.bf16.xpose.msra.mxu0 0
        %1250 = vmatpush.bf16.xpose.msra.mxu0 0
        %1251 = vmatpush.bf16.xpose.msra.mxu0 0
        %1252 = vmatpush.bf16.xpose.msra.mxu0 0
        %1253 = vmatpush.bf16.xpose.msra.mxu0 0
        %1254 = vmatpush.bf16.xpose.msra.mxu0 0
        %1255 = vmatpush.bf16.xpose.msra.mxu0 %v1241
        %1256 = vmatmul.bf16.gmra.mxu0 %v1246
        %v1257 = vpop.f32.mrf.mxu0
        %v1258 = vadd.f32 0.0, %v1257
        %v1259 = vpop.f32.mrf.mxu0
        %v1260 = vadd.f32 0.0, %v1259
        %1261 = vdwg.mxu0
        %v1262 = vadd.f32 %v1237, %v1258
        %v1263 = vadd.f32 %v1239, %v1260
        %v1264 = vld [vmem:[%s11] sm:$0x1]
        %v1266 = vperm.slane %v1264, 0
        %v1268 = vadd.f32 %v1262, %v1266
        %v1269 = vadd.f32 %v1263, %v1266
        %v1270 = vld [vmem:[%s12] sm:$0xff]
        %v1271 = vld [vmem:[%s12 + $0x8] sm:$0xff]
        %v1272 = vsub.f32 %v1270, 1.0
        %v1273 = vsub.f32 %v1271, 1.0
        %v1274 = vmul.f32 %v1272, 1e+30
        %v1275 = vmul.f32 %v1273, 1e+30
        %v1276 = vld [vmem:[%s13] sm:$0xff]
        %v1277 = vld [vmem:[%s13 + $0x8] sm:$0xff]
        %v1278 = vmin.f32 %v1268, 0.0
        %v1279 = vmin.f32 %v1269, 0.0
        %v1280 = vand.u32 2147483647, %v1268
        %v1281 = vand.u32 2147483647, %v1269
        %v1282 = vsub.f32 0.0, %v1280
        %v1283 = vsub.f32 0.0, %v1281
        %v1284 = vmul.f32 %v1282, 1.442695
        %v1285 = vpow.pop %v1284
        %v1286 = vmul.f32 %v1283, 1.442695
        %v1287 = vpow.pop %v1286
        %v1288 = vadd.f32 %v1285, 1.0
        %v1289 = vadd.f32 %v1287, 1.0
        %v1290 = vlog2.pop %v1288
        %v1291 = vmul.f32 %v1290, 0.6931472
        %v1292 = vlog2.pop %v1289
        %v1293 = vmul.f32 %v1292, 0.6931472
        %v1294 = vsub.f32 %v1278, %v1291
        %v1295 = vsub.f32 %v1279, %v1293
        %1298 = vrot.lane.b32.xlu0 %v1294, 124
        %v1299 = vpop.permute.xlu0 %1298
        %1300 = vrot.lane.b32.xlu0 %v1295, 124
        %v1301 = vpop.permute.xlu0 %1300
        %vm1304 = vcmask 130048
        %v1306 = vsel %vm1304, %v1270, 0
        %v1309 = vsel %vm1304, %v1271, 0
        %1311 = vmatpush.msra.mxu0 0.0
        %1312 = vmatpush.msra.mxu0 0.0
        %1313 = vmatpush.msra.mxu0 0.0
        %1314 = vmatpush.msra.mxu0 0.0
        %1315 = vmatpush.msra.mxu0 0.0
        %1316 = vmatpush.msra.mxu0 0.0
        %1317 = vmatpush.msra.mxu0 0.0
        %1318 = vmatpush.msra.mxu0 0.0
        %1319 = vmatpush.msra.mxu0 0.0
        %1320 = vmatpush.msra.mxu0 0.0
        %1321 = vmatpush.msra.mxu0 0.0
        %1322 = vmatpush.msra.mxu0 0.0
        %1323 = vmatpush.msra.mxu0 0.0
        %1324 = vmatpush.msra.mxu0 0.0
        %1325 = vmatpush.msra.mxu0 %v1301
        %1326 = vmatpush.msra.mxu0 %v1299
        %1327 = vmatmul.f32.gmra.mxu0 %v1306
        %v1328 = vpop.f32.mrf.mxu0
        %v1329 = vadd.f32 0.0, %v1328
        %1330 = vmatmul.f32.gmra.mxu0 %v1309
        %v1331 = vpop.f32.mrf.mxu0
        %v1332 = vadd.f32 0.0, %v1331
        %1333 = vdwg.mxu0
        %v1334 = vsub.f32 %v1268, %v1329
        %v1335 = vsub.f32 %v1269, %v1332
        %1337 = vset.pattern.permute.xlu0 0
        %1338 = vperm.xlu0 %1337, %v1334
        %v1339 = vpop.permute.xlu0 %1338
        %1342 = vset.pattern.permute.xlu0 0
        %1343 = vperm.xlu0 %1342, %v1335
        %v1344 = vpop.permute.xlu0 %1343
        %v1346 = vmul.f32 %v1276, %v1339
        %v1347 = vmul.f32 %v1277, %v1344
        %v1348 = vsel %vm1304, %v1346, 0.0
        %v1349 = vsel %vm1304, %v1347, 0.0
        %v1350 = vadd.f32 %v1348, %v1349
        %v1351 = vrot.slane %v1350, 4
        %v1352 = vadd.f32 %v1350, %v1351
        %v1353 = vrot.slane %v1352, 2
        %v1354 = vadd.f32 %v1352, %v1353
        %v1355 = vrot.slane %v1354, 1
        %v1356 = vadd.f32 %v1354, %v1355
        %1358 = vset.pattern.permute.xlu0 0
        %1359 = vperm.xlu0 %1358, %v1329
        %v1360 = vpop.permute.xlu0 %1359
        %1363 = vset.pattern.permute.xlu0 0
        %1364 = vperm.xlu0 %1363, %v1332
        %v1365 = vpop.permute.xlu0 %1364
        %v1367 = vadd.f32 %v1360, %v1356
        %v1368 = vadd.f32 %v1365, %v1356
        %v1369 = vadd.f32 %v1367, %v1274
        %v1370 = vadd.f32 %v1368, %v1275
        %v1371 = vsel %vm1304, %v1369, -inf
        %1372 = vmax.xlane.f32.xlu0 %v1371
        %v1373 = vpop.xlane.xlu0 %1372
        %v1374 = vsel %vm1304, %v1370, -inf
        %1375 = vmax.xlane.f32.xlu0 %v1374
        %v1376 = vpop.xlane.xlu0 %1375
        %v1377 = vsub.f32 %v1369, %v1373
        %v1378 = vsub.f32 %v1370, %v1376
        %v1379 = vmul.f32 %v1377, 1.442695
        %v1380 = vpow.pop %v1379
        %v1381 = vmul.f32 %v1378, 1.442695
        %v1382 = vpow.pop %v1381
        %vm1383 = vcmask 261120
        %v1385 = vsel %vm1383, %v1225, 0
        %v1388 = vsel %vm1383, %v1205, 0
        %1390 = vmatpush.bf16.xpose.msra.mxu0 0
        %1391 = vmatpush.bf16.xpose.msra.mxu0 0
        %1392 = vmatpush.bf16.xpose.msra.mxu0 0
        %1393 = vmatpush.bf16.xpose.msra.mxu0 0
        %1394 = vmatpush.bf16.xpose.msra.mxu0 0
        %1395 = vmatpush.bf16.xpose.msra.mxu0 0
        %1396 = vmatpush.bf16.xpose.msra.mxu0 0
        %1397 = vmatpush.bf16.xpose.msra.mxu0 %v1388
        %1398 = vmatmul.bf16.gmra.mxu0 %v1385
        %v1399 = vpop.f32.mrf.mxu0
        %v1400 = vadd.f32 0.0, %v1399
        %v1401 = vpop.f32.mrf.mxu0
        %v1402 = vadd.f32 0.0, %v1401
        %1403 = vdwg.mxu0
        %v1404 = vmul.f32 %v1400, 0.17677669
        %v1405 = vmul.f32 %v1402, 0.17677669
        %v1406 = vmul.f32 %v1404, %v1380
        %v1407 = vmul.f32 %v1405, %v1382
        %v1408 = vsel %vm1304, %v1406, 0.0
        %1409 = vadd.xlane.f32.xlu0 %v1408
        %v1410 = vpop.xlane.xlu0 %1409
        %v1411 = vsel %vm1304, %v1407, 0.0
        %1412 = vadd.xlane.f32.xlu0 %v1411
        %v1413 = vpop.xlane.xlu0 %1412
        %v1414 = vand.u32 2147483647, %v1410
        %v1415 = vand.u32 2147483647, %v1413
        %v1416 = vsub.f32 0.0, %v1373
        %v1417 = vsub.f32 0.0, %v1376
        %v1418 = vmul.f32 %v1416, 1.442695
        %v1419 = vpow.pop %v1418
        %v1420 = vmul.f32 %v1417, 1.442695
        %v1421 = vpow.pop %v1420
        %v1422 = vmax.f32 %v1414, %v1419
        %v1423 = vmax.f32 %v1415, %v1421
        %v1424 = vadd.f32 %v1422, 1e-06
        %v1425 = vadd.f32 %v1423, 1e-06
        %v1426 = vrcp.pop %v1424
        %v1427 = vmul.f32 %v1424, %v1426
        %v1428 = vsub.f32 1.0, %v1427
        %v1429 = vmul.f32 %v1426, %v1428
        %v1430 = vadd.f32 %v1426, %v1429
        %vm1431 = vweird.f32 %v1424
        %vm1432 = vweird.f32 %v1426
        %vm1433 = vmor %vm1431, %vm1432
        %v1434 = vsel %vm1433, %v1426, %v1430
        %v1435 = vand.u32 2147483647, %v1424
        %vm1436 = vcmp.eq.f32.partialorder %v1435, 8.507059e+37
        %v1437 = vand.u32 %v1424, 2147483648
        %v1438 = vor.u32 1.1754944e-38, %v1437
        %v1439 = vsel %vm1436, %v1438, %v1434
        %v1440 = vmul.f32 %v1406, %v1439
        %v1441 = vrcp.pop %v1425
        %v1442 = vmul.f32 %v1425, %v1441
        %v1443 = vsub.f32 1.0, %v1442
        %v1444 = vmul.f32 %v1441, %v1443
        %v1445 = vadd.f32 %v1441, %v1444
        %vm1446 = vweird.f32 %v1425
        %vm1447 = vweird.f32 %v1441
        %vm1448 = vmor %vm1446, %vm1447
        %v1449 = vsel %vm1448, %v1441, %v1445
        %v1450 = vand.u32 2147483647, %v1425
        %vm1451 = vcmp.eq.f32.partialorder %v1450, 8.507059e+37
        %v1452 = vand.u32 %v1425, 2147483648
        %v1453 = vor.u32 1.1754944e-38, %v1452
        %v1454 = vsel %vm1451, %v1453, %v1449
        %v1455 = vmul.f32 %v1407, %v1454
        %v1456 = vpack.c.bf16 %v1455, %v1440
        %v1458 = vsel %vm1304, %v1456, 0
        %1460 = vmatpush.bf16.msra.mxu0 0
        %1461 = vmatpush.bf16.msra.mxu0 0
        %1462 = vmatpush.bf16.msra.mxu0 0
        %1463 = vmatpush.bf16.msra.mxu0 0
        %1464 = vmatpush.bf16.msra.mxu0 0
        %1465 = vmatpush.bf16.msra.mxu0 0
        %1466 = vmatpush.bf16.msra.mxu0 0
        %1467 = vmatpush.bf16.msra.mxu0 %v1246
        %1468 = vmatmul.bf16.gmra.mxu0 %v1458
        %v1469 = vpop.f32.mrf.mxu0
        %v1470 = vadd.f32 0.0, %v1469
        %v1471 = vpop.f32.mrf.mxu0
        %v1472 = vadd.f32 0.0, %v1471
        %1473 = vdwg.mxu0
        %1474 = vst.msk [vmem:[#allocation2] sm:$0xff] %vm1383, %v1470
        %1475 = vst.msk [vmem:[#allocation2 + $0x8] sm:$0xff] %vm1383, %v1472
        %1476 = vset.pattern.permute.xlu0 1
        %1477 = vperm.xlu0 %1476, %v1334
        %v1478 = vpop.permute.xlu0 %1477
        %1480 = vset.pattern.permute.xlu0 1
        %1481 = vperm.xlu0 %1480, %v1335
        %v1482 = vpop.permute.xlu0 %1481
        %v1484 = vmul.f32 %v1276, %v1478
        %v1485 = vmul.f32 %v1277, %v1482
        %v1486 = vsel %vm1304, %v1484, 0.0
        %v1487 = vsel %vm1304, %v1485, 0.0
        %v1488 = vadd.f32 %v1486, %v1487
        %v1489 = vrot.slane %v1488, 4
        %v1490 = vadd.f32 %v1488, %v1489
        %v1491 = vrot.slane %v1490, 2
        %v1492 = vadd.f32 %v1490, %v1491
        %v1493 = vrot.slane %v1492, 1
        %v1494 = vadd.f32 %v1492, %v1493
        %1495 = vset.pattern.permute.xlu0 1
        %1496 = vperm.xlu0 %1495, %v1329
        %v1497 = vpop.permute.xlu0 %1496
        %1499 = vset.pattern.permute.xlu0 1
        %1500 = vperm.xlu0 %1499, %v1332
        %v1501 = vpop.permute.xlu0 %1500
        %v1503 = vadd.f32 %v1497, %v1494
        %v1504 = vadd.f32 %v1501, %v1494
        %v1505 = vadd.f32 %v1503, %v1274
        %v1506 = vadd.f32 %v1504, %v1275
        %v1507 = vsel %vm1304, %v1505, -inf
        %1508 = vmax.xlane.f32.xlu0 %v1507
        %v1509 = vpop.xlane.xlu0 %1508
        %v1510 = vsel %vm1304, %v1506, -inf
        %1511 = vmax.xlane.f32.xlu0 %v1510
        %v1512 = vpop.xlane.xlu0 %1511
        %v1513 = vsub.f32 %v1505, %v1509
        %v1514 = vsub.f32 %v1506, %v1512
        %v1515 = vmul.f32 %v1513, 1.442695
        %v1516 = vpow.pop %v1515
        %v1517 = vmul.f32 %v1514, 1.442695
        %v1518 = vpow.pop %v1517
        %1519 = vrot.lane.b32.xlu0 %v1225, 96
        %v1520 = vpop.permute.xlu0 %1519
        %1521 = vrot.lane.b32.xlu0 %v1205, 96
        %v1522 = vpop.permute.xlu0 %1521
        %v1524 = vsel %vm1383, %v1520, 0
        %v1527 = vsel %vm1383, %v1522, 0
        %1529 = vmatpush.bf16.xpose.msra.mxu0 0
        %1530 = vmatpush.bf16.xpose.msra.mxu0 0
        %1531 = vmatpush.bf16.xpose.msra.mxu0 0
        %1532 = vmatpush.bf16.xpose.msra.mxu0 0
        %1533 = vmatpush.bf16.xpose.msra.mxu0 0
        %1534 = vmatpush.bf16.xpose.msra.mxu0 0
        %1535 = vmatpush.bf16.xpose.msra.mxu0 0
        %1536 = vmatpush.bf16.xpose.msra.mxu0 %v1527
        %1537 = vmatmul.bf16.gmra.mxu0 %v1524
        %v1538 = vpop.f32.mrf.mxu0
        %v1539 = vadd.f32 0.0, %v1538
        %v1540 = vpop.f32.mrf.mxu0
        %v1541 = vadd.f32 0.0, %v1540
        %1542 = vdwg.mxu0
        %v1543 = vmul.f32 %v1539, 0.17677669
        %v1544 = vmul.f32 %v1541, 0.17677669
        %v1545 = vmul.f32 %v1543, %v1516
        %v1546 = vmul.f32 %v1544, %v1518
        %v1547 = vsel %vm1304, %v1545, 0.0
        %1548 = vadd.xlane.f32.xlu0 %v1547
        %v1549 = vpop.xlane.xlu0 %1548
        %v1550 = vsel %vm1304, %v1546, 0.0
        %1551 = vadd.xlane.f32.xlu0 %v1550
        %v1552 = vpop.xlane.xlu0 %1551
        %v1553 = vand.u32 2147483647, %v1549
        %v1554 = vand.u32 2147483647, %v1552
        %v1555 = vsub.f32 0.0, %v1509
        %v1556 = vsub.f32 0.0, %v1512
        %v1557 = vmul.f32 %v1555, 1.442695
        %v1558 = vpow.pop %v1557
        %v1559 = vmul.f32 %v1556, 1.442695
        %v1560 = vpow.pop %v1559
        %v1561 = vmax.f32 %v1553, %v1558
        %v1562 = vmax.f32 %v1554, %v1560
        %v1563 = vadd.f32 %v1561, 1e-06
        %v1564 = vadd.f32 %v1562, 1e-06
        %v1565 = vrcp.pop %v1563
        %v1566 = vmul.f32 %v1563, %v1565
        %v1567 = vsub.f32 1.0, %v1566
        %v1568 = vmul.f32 %v1565, %v1567
        %v1569 = vadd.f32 %v1565, %v1568
        %vm1570 = vweird.f32 %v1563
        %vm1571 = vweird.f32 %v1565
        %vm1572 = vmor %vm1570, %vm1571
        %v1573 = vsel %vm1572, %v1565, %v1569
        %v1574 = vand.u32 2147483647, %v1563
        %vm1575 = vcmp.eq.f32.partialorder %v1574, 8.507059e+37
        %v1576 = vand.u32 %v1563, 2147483648
        %v1577 = vor.u32 1.1754944e-38, %v1576
        %v1578 = vsel %vm1575, %v1577, %v1573
        %v1579 = vmul.f32 %v1545, %v1578
        %v1580 = vrcp.pop %v1564
        %v1581 = vmul.f32 %v1564, %v1580
        %v1582 = vsub.f32 1.0, %v1581
        %v1583 = vmul.f32 %v1580, %v1582
        %v1584 = vadd.f32 %v1580, %v1583
        %vm1585 = vweird.f32 %v1564
        %vm1586 = vweird.f32 %v1580
        %vm1587 = vmor %vm1585, %vm1586
        %v1588 = vsel %vm1587, %v1580, %v1584
        %v1589 = vand.u32 2147483647, %v1564
        %vm1590 = vcmp.eq.f32.partialorder %v1589, 8.507059e+37
        %v1591 = vand.u32 %v1564, 2147483648
        %v1592 = vor.u32 1.1754944e-38, %v1591
        %v1593 = vsel %vm1590, %v1592, %v1588
        %v1594 = vmul.f32 %v1546, %v1593
        %v1595 = vpack.c.bf16 %v1594, %v1579
        %1596 = vrot.lane.b32.xlu0 %v1246, 96
        %v1597 = vpop.permute.xlu0 %1596
        %v1600 = vsel %vm1304, %v1595, 0
        %1602 = vmatpush.bf16.msra.mxu0 0
        %1603 = vmatpush.bf16.msra.mxu0 0
        %1604 = vmatpush.bf16.msra.mxu0 0
        %1605 = vmatpush.bf16.msra.mxu0 0
        %1606 = vmatpush.bf16.msra.mxu0 0
        %1607 = vmatpush.bf16.msra.mxu0 0
        %1608 = vmatpush.bf16.msra.mxu0 0
        %1609 = vmatpush.bf16.msra.mxu0 %v1597
        %1610 = vmatmul.bf16.gmra.mxu0 %v1600
        %v1611 = vpop.f32.mrf.mxu0
        %v1612 = vadd.f32 0.0, %v1611
        %v1613 = vpop.f32.mrf.mxu0
        %v1614 = vadd.f32 0.0, %v1613
        %1615 = vdwg.mxu0
        %1618 = vrot.lane.b32.xlu0 %v1612, 32
        %v1619 = vpop.permute.xlu0 %1618
        %1620 = vrot.lane.b32.xlu0 %v1614, 32
        %v1621 = vpop.permute.xlu0 %1620
        %vm1624 = vcmask 523520
        %1625 = vst.msk [vmem:[#allocation2] sm:$0xff] %vm1624, %v1619
        %1626 = vst.msk [vmem:[#allocation2 + $0x8] sm:$0xff] %vm1624, %v1621
        %1627 = vset.pattern.permute.xlu0 2
        %1628 = vperm.xlu0 %1627, %v1334
        %v1629 = vpop.permute.xlu0 %1628
        %1631 = vset.pattern.permute.xlu0 2
        %1632 = vperm.xlu0 %1631, %v1335
        %v1633 = vpop.permute.xlu0 %1632
        %v1635 = vmul.f32 %v1276, %v1629
        %v1636 = vmul.f32 %v1277, %v1633
        %v1637 = vsel %vm1304, %v1635, 0.0
        %v1638 = vsel %vm1304, %v1636, 0.0
        %v1639 = vadd.f32 %v1637, %v1638
        %v1640 = vrot.slane %v1639, 4
        %v1641 = vadd.f32 %v1639, %v1640
        %v1642 = vrot.slane %v1641, 2
        %v1643 = vadd.f32 %v1641, %v1642
        %v1644 = vrot.slane %v1643, 1
        %v1645 = vadd.f32 %v1643, %v1644
        %1646 = vset.pattern.permute.xlu0 2
        %1647 = vperm.xlu0 %1646, %v1329
        %v1648 = vpop.permute.xlu0 %1647
        %1650 = vset.pattern.permute.xlu0 2
        %1651 = vperm.xlu0 %1650, %v1332
        %v1652 = vpop.permute.xlu0 %1651
        %v1654 = vadd.f32 %v1648, %v1645
        %v1655 = vadd.f32 %v1652, %v1645
        %v1656 = vadd.f32 %v1654, %v1274
        %v1657 = vadd.f32 %v1655, %v1275
        %v1658 = vsel %vm1304, %v1656, -inf
        %1659 = vmax.xlane.f32.xlu0 %v1658
        %v1660 = vpop.xlane.xlu0 %1659
        %v1661 = vsel %vm1304, %v1657, -inf
        %1662 = vmax.xlane.f32.xlu0 %v1661
        %v1663 = vpop.xlane.xlu0 %1662
        %v1664 = vsub.f32 %v1656, %v1660
        %v1665 = vsub.f32 %v1657, %v1663
        %v1666 = vmul.f32 %v1664, 1.442695
        %v1667 = vpow.pop %v1666
        %v1668 = vmul.f32 %v1665, 1.442695
        %v1669 = vpow.pop %v1668
        %1670 = vrot.lane.b32.xlu0 %v1225, 64
        %v1671 = vpop.permute.xlu0 %1670
        %1672 = vrot.lane.b32.xlu0 %v1205, 64
        %v1673 = vpop.permute.xlu0 %1672
        %v1675 = vsel %vm1383, %v1671, 0
        %v1678 = vsel %vm1383, %v1673, 0
        %1680 = vmatpush.bf16.xpose.msra.mxu0 0
        %1681 = vmatpush.bf16.xpose.msra.mxu0 0
        %1682 = vmatpush.bf16.xpose.msra.mxu0 0
        %1683 = vmatpush.bf16.xpose.msra.mxu0 0
        %1684 = vmatpush.bf16.xpose.msra.mxu0 0
        %1685 = vmatpush.bf16.xpose.msra.mxu0 0
        %1686 = vmatpush.bf16.xpose.msra.mxu0 0
        %1687 = vmatpush.bf16.xpose.msra.mxu0 %v1678
        %1688 = vmatmul.bf16.gmra.mxu0 %v1675
        %v1689 = vpop.f32.mrf.mxu0
        %v1690 = vadd.f32 0.0, %v1689
        %v1691 = vpop.f32.mrf.mxu0
        %v1692 = vadd.f32 0.0, %v1691
        %1693 = vdwg.mxu0
        %v1694 = vmul.f32 %v1690, 0.17677669
        %v1695 = vmul.f32 %v1692, 0.17677669
        %v1696 = vmul.f32 %v1694, %v1667
        %v1697 = vmul.f32 %v1695, %v1669
        %v1698 = vsel %vm1304, %v1696, 0.0
        %1699 = vadd.xlane.f32.xlu0 %v1698
        %v1700 = vpop.xlane.xlu0 %1699
        %v1701 = vsel %vm1304, %v1697, 0.0
        %1702 = vadd.xlane.f32.xlu0 %v1701
        %v1703 = vpop.xlane.xlu0 %1702
        %v1704 = vand.u32 2147483647, %v1700
        %v1705 = vand.u32 2147483647, %v1703
        %v1706 = vsub.f32 0.0, %v1660
        %v1707 = vsub.f32 0.0, %v1663
        %v1708 = vmul.f32 %v1706, 1.442695
        %v1709 = vpow.pop %v1708
        %v1710 = vmul.f32 %v1707, 1.442695
        %v1711 = vpow.pop %v1710
        %v1712 = vmax.f32 %v1704, %v1709
        %v1713 = vmax.f32 %v1705, %v1711
        %v1714 = vadd.f32 %v1712, 1e-06
        %v1715 = vadd.f32 %v1713, 1e-06
        %v1716 = vrcp.pop %v1714
        %v1717 = vmul.f32 %v1714, %v1716
        %v1718 = vsub.f32 1.0, %v1717
        %v1719 = vmul.f32 %v1716, %v1718
        %v1720 = vadd.f32 %v1716, %v1719
        %vm1721 = vweird.f32 %v1714
        %vm1722 = vweird.f32 %v1716
        %vm1723 = vmor %vm1721, %vm1722
        %v1724 = vsel %vm1723, %v1716, %v1720
        %v1725 = vand.u32 2147483647, %v1714
        %vm1726 = vcmp.eq.f32.partialorder %v1725, 8.507059e+37
        %v1727 = vand.u32 %v1714, 2147483648
        %v1728 = vor.u32 1.1754944e-38, %v1727
        %v1729 = vsel %vm1726, %v1728, %v1724
        %v1730 = vmul.f32 %v1696, %v1729
        %v1731 = vrcp.pop %v1715
        %v1732 = vmul.f32 %v1715, %v1731
        %v1733 = vsub.f32 1.0, %v1732
        %v1734 = vmul.f32 %v1731, %v1733
        %v1735 = vadd.f32 %v1731, %v1734
        %vm1736 = vweird.f32 %v1715
        %vm1737 = vweird.f32 %v1731
        %vm1738 = vmor %vm1736, %vm1737
        %v1739 = vsel %vm1738, %v1731, %v1735
        %v1740 = vand.u32 2147483647, %v1715
        %vm1741 = vcmp.eq.f32.partialorder %v1740, 8.507059e+37
        %v1742 = vand.u32 %v1715, 2147483648
        %v1743 = vor.u32 1.1754944e-38, %v1742
        %v1744 = vsel %vm1741, %v1743, %v1739
        %v1745 = vmul.f32 %v1697, %v1744
        %v1746 = vpack.c.bf16 %v1745, %v1730
        %1747 = vrot.lane.b32.xlu0 %v1246, 64
        %v1748 = vpop.permute.xlu0 %1747
        %v1751 = vsel %vm1304, %v1746, 0
        %1753 = vmatpush.bf16.msra.mxu0 0
        %1754 = vmatpush.bf16.msra.mxu0 0
        %1755 = vmatpush.bf16.msra.mxu0 0
        %1756 = vmatpush.bf16.msra.mxu0 0
        %1757 = vmatpush.bf16.msra.mxu0 0
        %1758 = vmatpush.bf16.msra.mxu0 0
        %1759 = vmatpush.bf16.msra.mxu0 0
        %1760 = vmatpush.bf16.msra.mxu0 %v1748
        %1761 = vmatmul.bf16.gmra.mxu0 %v1751
        %v1762 = vpop.f32.mrf.mxu0
        %v1763 = vadd.f32 0.0, %v1762
        %v1764 = vpop.f32.mrf.mxu0
        %v1765 = vadd.f32 0.0, %v1764
        %1766 = vdwg.mxu0
        %1769 = vrot.lane.b32.xlu0 %v1763, 64
        %v1770 = vpop.permute.xlu0 %1769
        %1771 = vrot.lane.b32.xlu0 %v1765, 64
        %v1772 = vpop.permute.xlu0 %1771
        %vm1775 = vcmask 785920
        %1776 = vst.msk [vmem:[#allocation2] sm:$0xff] %vm1775, %v1770
        %1777 = vst.msk [vmem:[#allocation2 + $0x8] sm:$0xff] %vm1775, %v1772
        %1778 = vset.pattern.permute.xlu0 3
        %1779 = vperm.xlu0 %1778, %v1334
        %v1780 = vpop.permute.xlu0 %1779
        %1782 = vset.pattern.permute.xlu0 3
        %1783 = vperm.xlu0 %1782, %v1335
        %v1784 = vpop.permute.xlu0 %1783
        %v1786 = vmul.f32 %v1276, %v1780
        %v1787 = vmul.f32 %v1277, %v1784
        %v1788 = vsel %vm1304, %v1786, 0.0
        %v1789 = vsel %vm1304, %v1787, 0.0
        %v1790 = vadd.f32 %v1788, %v1789
        %v1791 = vrot.slane %v1790, 4
        %v1792 = vadd.f32 %v1790, %v1791
        %v1793 = vrot.slane %v1792, 2
        %v1794 = vadd.f32 %v1792, %v1793
        %v1795 = vrot.slane %v1794, 1
        %v1796 = vadd.f32 %v1794, %v1795
        %1797 = vset.pattern.permute.xlu0 3
        %1798 = vperm.xlu0 %1797, %v1329
        %v1799 = vpop.permute.xlu0 %1798
        %1801 = vset.pattern.permute.xlu0 3
        %1802 = vperm.xlu0 %1801, %v1332
        %v1803 = vpop.permute.xlu0 %1802
        %v1805 = vadd.f32 %v1799, %v1796
        %v1806 = vadd.f32 %v1803, %v1796
        %v1807 = vadd.f32 %v1805, %v1274
        %v1808 = vadd.f32 %v1806, %v1275
        %v1809 = vsel %vm1304, %v1807, -inf
        %1810 = vmax.xlane.f32.xlu0 %v1809
        %v1811 = vpop.xlane.xlu0 %1810
        %v1812 = vsel %vm1304, %v1808, -inf
        %1813 = vmax.xlane.f32.xlu0 %v1812
        %v1814 = vpop.xlane.xlu0 %1813
        %v1815 = vsub.f32 %v1807, %v1811
        %v1816 = vsub.f32 %v1808, %v1814
        %v1817 = vmul.f32 %v1815, 1.442695
        %v1818 = vpow.pop %v1817
        %v1819 = vmul.f32 %v1816, 1.442695
        %v1820 = vpow.pop %v1819
        %1821 = vrot.lane.b32.xlu0 %v1225, 32
        %v1822 = vpop.permute.xlu0 %1821
        %1823 = vrot.lane.b32.xlu0 %v1205, 32
        %v1824 = vpop.permute.xlu0 %1823
        %v1826 = vsel %vm1383, %v1822, 0
        %v1829 = vsel %vm1383, %v1824, 0
        %1831 = vmatpush.bf16.xpose.msra.mxu0 0
        %1832 = vmatpush.bf16.xpose.msra.mxu0 0
        %1833 = vmatpush.bf16.xpose.msra.mxu0 0
        %1834 = vmatpush.bf16.xpose.msra.mxu0 0
        %1835 = vmatpush.bf16.xpose.msra.mxu0 0
        %1836 = vmatpush.bf16.xpose.msra.mxu0 0
        %1837 = vmatpush.bf16.xpose.msra.mxu0 0
        %1838 = vmatpush.bf16.xpose.msra.mxu0 %v1829
        %1839 = vmatmul.bf16.gmra.mxu0 %v1826
        %v1840 = vpop.f32.mrf.mxu0
        %v1841 = vadd.f32 0.0, %v1840
        %v1842 = vpop.f32.mrf.mxu0
        %v1843 = vadd.f32 0.0, %v1842
        %1844 = vdwg.mxu0
        %v1845 = vmul.f32 %v1841, 0.17677669
        %v1846 = vmul.f32 %v1843, 0.17677669
        %v1847 = vmul.f32 %v1845, %v1818
        %v1848 = vmul.f32 %v1846, %v1820
        %v1849 = vsel %vm1304, %v1847, 0.0
        %1850 = vadd.xlane.f32.xlu0 %v1849
        %v1851 = vpop.xlane.xlu0 %1850
        %v1852 = vsel %vm1304, %v1848, 0.0
        %1853 = vadd.xlane.f32.xlu0 %v1852
        %v1854 = vpop.xlane.xlu0 %1853
        %v1855 = vand.u32 2147483647, %v1851
        %v1856 = vand.u32 2147483647, %v1854
        %v1857 = vsub.f32 0.0, %v1811
        %v1858 = vsub.f32 0.0, %v1814
        %v1859 = vmul.f32 %v1857, 1.442695
        %v1860 = vpow.pop %v1859
        %v1861 = vmul.f32 %v1858, 1.442695
        %v1862 = vpow.pop %v1861
        %v1863 = vmax.f32 %v1855, %v1860
        %v1864 = vmax.f32 %v1856, %v1862
        %v1865 = vadd.f32 %v1863, 1e-06
        %v1866 = vadd.f32 %v1864, 1e-06
        %v1867 = vrcp.pop %v1865
        %v1868 = vmul.f32 %v1865, %v1867
        %v1869 = vsub.f32 1.0, %v1868
        %v1870 = vmul.f32 %v1867, %v1869
        %v1871 = vadd.f32 %v1867, %v1870
        %vm1872 = vweird.f32 %v1865
        %vm1873 = vweird.f32 %v1867
        %vm1874 = vmor %vm1872, %vm1873
        %v1875 = vsel %vm1874, %v1867, %v1871
        %v1876 = vand.u32 2147483647, %v1865
        %vm1877 = vcmp.eq.f32.partialorder %v1876, 8.507059e+37
        %v1878 = vand.u32 %v1865, 2147483648
        %v1879 = vor.u32 1.1754944e-38, %v1878
        %v1880 = vsel %vm1877, %v1879, %v1875
        %v1881 = vmul.f32 %v1847, %v1880
        %v1882 = vrcp.pop %v1866
        %v1883 = vmul.f32 %v1866, %v1882
        %v1884 = vsub.f32 1.0, %v1883
        %v1885 = vmul.f32 %v1882, %v1884
        %v1886 = vadd.f32 %v1882, %v1885
        %vm1887 = vweird.f32 %v1866
        %vm1888 = vweird.f32 %v1882
        %vm1889 = vmor %vm1887, %vm1888
        %v1890 = vsel %vm1889, %v1882, %v1886
        %v1891 = vand.u32 2147483647, %v1866
        %vm1892 = vcmp.eq.f32.partialorder %v1891, 8.507059e+37
        %v1893 = vand.u32 %v1866, 2147483648
        %v1894 = vor.u32 1.1754944e-38, %v1893
        %v1895 = vsel %vm1892, %v1894, %v1890
        %v1896 = vmul.f32 %v1848, %v1895
        %v1897 = vpack.c.bf16 %v1896, %v1881
        %1898 = vrot.lane.b32.xlu0 %v1246, 32
        %v1899 = vpop.permute.xlu0 %1898
        %v1902 = vsel %vm1304, %v1897, 0
        %1904 = vmatpush.bf16.msra.mxu0 0
        %1905 = vmatpush.bf16.msra.mxu0 0
        %1906 = vmatpush.bf16.msra.mxu0 0
        %1907 = vmatpush.bf16.msra.mxu0 0
        %1908 = vmatpush.bf16.msra.mxu0 0
        %1909 = vmatpush.bf16.msra.mxu0 0
        %1910 = vmatpush.bf16.msra.mxu0 0
        %1911 = vmatpush.bf16.msra.mxu0 %v1899
        %1912 = vmatmul.bf16.gmra.mxu0 %v1902
        %v1913 = vpop.f32.mrf.mxu0
        %v1914 = vadd.f32 0.0, %v1913
        %v1915 = vpop.f32.mrf.mxu0
        %v1916 = vadd.f32 0.0, %v1915
        %1917 = vdwg.mxu0
        %1920 = vrot.lane.b32.xlu0 %v1914, 96
        %v1921 = vpop.permute.xlu0 %1920
        %1922 = vrot.lane.b32.xlu0 %v1916, 96
        %v1923 = vpop.permute.xlu0 %1922
        %vm1926 = vcmask 1048320
        %1927 = vst.msk [vmem:[#allocation2] sm:$0xff] %vm1926, %v1921
        %1928 = vst.msk [vmem:[#allocation2 + $0x8] sm:$0xff] %vm1926, %v1923
        %v1929 = vld [vmem:[#allocation2] sm:$0xff]
        %v1930 = vld [vmem:[#allocation2 + $0x8] sm:$0xff]
        %v1931 = vld [vmem:[%s14] sm:$0xff]
        %v1932 = vld [vmem:[%s14 + $0x8] sm:$0xff]
        %v1933 = vld [vmem:[%s14 + $0x10] sm:$0xff]
        %v1934 = vld [vmem:[%s14 + $0x18] sm:$0xff]
        %v1935 = vld [vmem:[%s14 + $0x20] sm:$0xff]
        %v1936 = vld [vmem:[%s14 + $0x28] sm:$0xff]
        %v1937 = vld [vmem:[%s14 + $0x30] sm:$0xff]
        %v1938 = vld [vmem:[%s14 + $0x38] sm:$0xff]
        %v1939 = vld [vmem:[%s14 + $0x40] sm:$0xff]
        %v1940 = vld [vmem:[%s14 + $0x48] sm:$0xff]
        %v1941 = vld [vmem:[%s14 + $0x50] sm:$0xff]
        %v1942 = vld [vmem:[%s14 + $0x58] sm:$0xff]
        %v1943 = vld [vmem:[%s14 + $0x60] sm:$0xff]
        %v1944 = vld [vmem:[%s14 + $0x68] sm:$0xff]
        %v1945 = vld [vmem:[%s14 + $0x70] sm:$0xff]
        %v1946 = vld [vmem:[%s14 + $0x78] sm:$0xff]
        %1947 = vmatpush.msra.mxu0 %v1946
        %1948 = vmatpush.msra.mxu0 %v1945
        %1949 = vmatpush.msra.mxu0 %v1944
        %1950 = vmatpush.msra.mxu0 %v1943
        %1951 = vmatpush.msra.mxu0 %v1942
        %1952 = vmatpush.msra.mxu0 %v1941
        %1953 = vmatpush.msra.mxu0 %v1940
        %1954 = vmatpush.msra.mxu0 %v1939
        %1955 = vmatpush.msra.mxu0 %v1938
        %1956 = vmatpush.msra.mxu0 %v1937
        %1957 = vmatpush.msra.mxu0 %v1936
        %1958 = vmatpush.msra.mxu0 %v1935
        %1959 = vmatpush.msra.mxu0 %v1934
        %1960 = vmatpush.msra.mxu0 %v1933
        %1961 = vmatpush.msra.mxu0 %v1932
        %1962 = vmatpush.msra.mxu0 %v1931
        %1963 = vmatmul.f32.gmra.mxu0 %v1929
        %v1964 = vpop.f32.mrf.mxu0
        %v1965 = vadd.f32 0.0, %v1964
        %1966 = vmatmul.f32.gmra.mxu0 %v1930
        %v1967 = vpop.f32.mrf.mxu0
        %v1968 = vadd.f32 0.0, %v1967
        %1969 = vdwg.mxu0
        %v1970 = vmul.f32 %v1965, 0.03125
        %v1971 = vmul.f32 %v1968, 0.03125
        %v1972 = vmul.f32 %v1929, %v1929
        %v1973 = vmul.f32 %v1930, %v1930
        %1974 = vmatpush.msra.mxu0 %v1946
        %1975 = vmatpush.msra.mxu0 %v1945
        %1976 = vmatpush.msra.mxu0 %v1944
        %1977 = vmatpush.msra.mxu0 %v1943
        %1978 = vmatpush.msra.mxu0 %v1942
        %1979 = vmatpush.msra.mxu0 %v1941
        %1980 = vmatpush.msra.mxu0 %v1940
        %1981 = vmatpush.msra.mxu0 %v1939
        %1982 = vmatpush.msra.mxu0 %v1938
        %1983 = vmatpush.msra.mxu0 %v1937
        %1984 = vmatpush.msra.mxu0 %v1936
        %1985 = vmatpush.msra.mxu0 %v1935
        %1986 = vmatpush.msra.mxu0 %v1934
        %1987 = vmatpush.msra.mxu0 %v1933
        %1988 = vmatpush.msra.mxu0 %v1932
        %1989 = vmatpush.msra.mxu0 %v1931
        %1990 = vmatmul.f32.gmra.mxu0 %v1972
        %v1991 = vpop.f32.mrf.mxu0
        %v1992 = vadd.f32 0.0, %v1991
        %1993 = vmatmul.f32.gmra.mxu0 %v1973
        %v1994 = vpop.f32.mrf.mxu0
        %v1995 = vadd.f32 0.0, %v1994
        %1996 = vdwg.mxu0
        %v1997 = vmul.f32 %v1992, 0.03125
        %v1998 = vmul.f32 %v1995, 0.03125
        %v1999 = vmul.f32 %v1970, %v1970
        %v2000 = vmul.f32 %v1971, %v1971
        %v2001 = vsub.f32 %v1997, %v1999
        %v2002 = vsub.f32 %v1998, %v2000
        %v2003 = vmax.f32 %v2001, 0.0
        %v2004 = vmax.f32 %v2002, 0.0
        %v2005 = vadd.f32 %v2003, 1e-05
        %v2006 = vadd.f32 %v2004, 1e-05
        %v2007 = vrsqrt.pop %v2005
        %v2008 = vmul.f32 %v2007, %v2005
        %v2009 = vmul.f32 %v2008, %v2007
        %v2010 = vmul.f32 0.5, %v2009
        %v2011 = vsub.f32 1.5, %v2010
        %v2012 = vmul.f32 %v2007, %v2011
        %vm2013 = vweird.f32 %v2005
        %vm2014 = vweird.f32 %v2007
        %vm2015 = vmor %vm2013, %vm2014
        %v2016 = vsel %vm2015, %v2007, %v2012
        %v2017 = vrsqrt.pop %v2006
        %v2018 = vmul.f32 %v2017, %v2006
        %v2019 = vmul.f32 %v2018, %v2017
        %v2020 = vmul.f32 0.5, %v2019
        %v2021 = vsub.f32 1.5, %v2020
        %v2022 = vmul.f32 %v2017, %v2021
        %vm2023 = vweird.f32 %v2006
        %vm2024 = vweird.f32 %v2017
        %vm2025 = vmor %vm2023, %vm2024
        %v2026 = vsel %vm2025, %v2017, %v2022
        %vm2027 = vcmask 31744
        %v2029 = vsel %vm2027, %v1970, 0
        %v2032 = vsel %vm2027, %v1971, 0
        %v2035 = vsel %vm2027, %v1931, 0
        %v2038 = vsel %vm2027, %v1932, 0
        %v2041 = vsel %vm2027, %v1933, 0
        %v2044 = vsel %vm2027, %v1934, 0
        %v2047 = vsel %vm2027, %v1935, 0
        %v2050 = vsel %vm2027, %v1936, 0
        %v2053 = vsel %vm2027, %v1937, 0
        %v2056 = vsel %vm2027, %v1938, 0
        %v2059 = vsel %vm2027, %v1939, 0
        %v2062 = vsel %vm2027, %v1940, 0
        %v2065 = vsel %vm2027, %v1941, 0
        %v2068 = vsel %vm2027, %v1942, 0
        %v2071 = vsel %vm2027, %v1943, 0
        %v2074 = vsel %vm2027, %v1944, 0
        %v2077 = vsel %vm2027, %v1945, 0
        %v2080 = vsel %vm2027, %v1946, 0
        %2082 = vmatpush.xpose.msra.mxu0 %v2080
        %2083 = vmatpush.xpose.msra.mxu0 %v2077
        %2084 = vmatpush.xpose.msra.mxu0 %v2074
        %2085 = vmatpush.xpose.msra.mxu0 %v2071
        %2086 = vmatpush.xpose.msra.mxu0 %v2068
        %2087 = vmatpush.xpose.msra.mxu0 %v2065
        %2088 = vmatpush.xpose.msra.mxu0 %v2062
        %2089 = vmatpush.xpose.msra.mxu0 %v2059
        %2090 = vmatpush.xpose.msra.mxu0 %v2056
        %2091 = vmatpush.xpose.msra.mxu0 %v2053
        %2092 = vmatpush.xpose.msra.mxu0 %v2050
        %2093 = vmatpush.xpose.msra.mxu0 %v2047
        %2094 = vmatpush.xpose.msra.mxu0 %v2044
        %2095 = vmatpush.xpose.msra.mxu0 %v2041
        %2096 = vmatpush.xpose.msra.mxu0 %v2038
        %2097 = vmatpush.xpose.msra.mxu0 %v2035
        %2098 = vmatmul.f32.gmra.mxu0 %v2029
        %v2099 = vpop.f32.mrf.mxu0
        %v2100 = vadd.f32 0.0, %v2099
        %2101 = vmatmul.f32.gmra.mxu0 %v2032
        %v2102 = vpop.f32.mrf.mxu0
        %v2103 = vadd.f32 0.0, %v2102
        %2104 = vdwg.mxu0
        %v2106 = vsel %vm2027, %v2016, 0
        %v2109 = vsel %vm2027, %v2026, 0
        %2111 = vmatpush.xpose.msra.mxu0 %v2080
        %2112 = vmatpush.xpose.msra.mxu0 %v2077
        %2113 = vmatpush.xpose.msra.mxu0 %v2074
        %2114 = vmatpush.xpose.msra.mxu0 %v2071
        %2115 = vmatpush.xpose.msra.mxu0 %v2068
        %2116 = vmatpush.xpose.msra.mxu0 %v2065
        %2117 = vmatpush.xpose.msra.mxu0 %v2062
        %2118 = vmatpush.xpose.msra.mxu0 %v2059
        %2119 = vmatpush.xpose.msra.mxu0 %v2056
        %2120 = vmatpush.xpose.msra.mxu0 %v2053
        %2121 = vmatpush.xpose.msra.mxu0 %v2050
        %2122 = vmatpush.xpose.msra.mxu0 %v2047
        %2123 = vmatpush.xpose.msra.mxu0 %v2044
        %2124 = vmatpush.xpose.msra.mxu0 %v2041
        %2125 = vmatpush.xpose.msra.mxu0 %v2038
        %2126 = vmatpush.xpose.msra.mxu0 %v2035
        %2127 = vmatmul.f32.gmra.mxu0 %v2106
        %v2128 = vpop.f32.mrf.mxu0
        %v2129 = vadd.f32 0.0, %v2128
        %2130 = vmatmul.f32.gmra.mxu0 %v2109
        %v2131 = vpop.f32.mrf.mxu0
        %v2132 = vadd.f32 0.0, %v2131
        %2133 = vdwg.mxu0
        %v2134 = vsub.f32 %v1929, %v2100
        %v2135 = vsub.f32 %v1930, %v2103
        %v2136 = vmul.f32 %v2134, %v2129
        %v2137 = vmul.f32 %v2135, %v2132
        %v2138 = vld [vmem:[%s15] sm:$0x1]
        %v2140 = vperm.slane %v2138, 0
        %v2142 = vmul.f32 %v2136, %v2140
        %v2143 = vmul.f32 %v2137, %v2140
        %v2144 = vld [vmem:[%s16] sm:$0x1]
        %v2146 = vperm.slane %v2144, 0
        %v2148 = vmul.f32 %v2146, %v1023
        %v2149 = vmul.f32 %v2146, %v1024
        %v2150 = vadd.f32 %v2142, %v2148
        %v2151 = vadd.f32 %v2143, %v2149
        %v2152 = vand.u32 2147483647, %v907
        %v2153 = vand.u32 2147483647, %v909
        %v2154 = vsub.f32 0.0, %v2152
        %v2155 = vsub.f32 0.0, %v2153
        %v2156 = vmul.f32 %v2154, 1.442695
        %v2157 = vpow.pop %v2156
        %v2158 = vmul.f32 %v2155, 1.442695
        %v2159 = vpow.pop %v2158
        %v2160 = vadd.f32 %v2157, 1.0
        %v2161 = vadd.f32 %v2159, 1.0
        %v2162 = vrcp.pop %v2160
        %v2163 = vrcp.pop %v2161
        %vm2164 = vcmp.ge.f32.partialorder %v907, 0.0
        %vm2165 = vcmp.ge.f32.partialorder %v909, 0.0
        %v2166 = vmul.f32 %v2157, %v2162
        %v2167 = vmul.f32 %v2159, %v2163
        %v2168 = vsel %vm2164, %v2162, %v2166
        %v2169 = vsel %vm2165, %v2163, %v2167
        %v2170 = vmul.f32 %v907, %v2168
        %v2171 = vmul.f32 %v909, %v2169
        %v2172 = vmul.f32 %v2150, %v2170
        %v2173 = vmul.f32 %v2151, %v2171
        %v2174 = vpack.c.bf16 %v2173, %v2172
        %v2175 = vld [vmem:[%s17] sm:$0xf]
        %v2176 = vld [vmem:[%s17 + $0x4] sm:$0xf]
        %v2177 = vld [vmem:[%s17 + $0x8] sm:$0xf]
        %v2178 = vld [vmem:[%s17 + $0xc] sm:$0xf]
        %v2179 = vld [vmem:[%s17 + $0x10] sm:$0xf]
        %v2180 = vld [vmem:[%s17 + $0x14] sm:$0xf]
        %v2181 = vld [vmem:[%s17 + $0x18] sm:$0xf]
        %v2182 = vld [vmem:[%s17 + $0x1c] sm:$0xf]
        %v2191 = vunpack.c.l.b16 %v2175
        %v2192 = vunpack.c.l.b16 %v2176
        %v2193 = vunpack.c.l.b16 %v2177
        %v2194 = vunpack.c.l.b16 %v2178
        %v2195 = vunpack.c.l.b16 %v2179
        %v2196 = vunpack.c.l.b16 %v2180
        %v2197 = vunpack.c.l.b16 %v2181
        %v2198 = vunpack.c.l.b16 %v2182
        %v2199 = vpack.c.b16 %v2192, %v2191
        %v2200 = vpack.c.b16 %v2194, %v2193
        %v2201 = vpack.c.b16 %v2196, %v2195
        %v2202 = vpack.c.b16 %v2198, %v2197
        %2207 = vmatpush.bf16.xpose.msra.mxu0 0
        %2208 = vmatpush.bf16.xpose.msra.mxu0 0
        %2209 = vmatpush.bf16.xpose.msra.mxu0 0
        %2210 = vmatpush.bf16.xpose.msra.mxu0 0
        %2211 = vmatpush.bf16.xpose.msra.mxu0 %v2202
        %2212 = vmatpush.bf16.xpose.msra.mxu0 %v2201
        %2213 = vmatpush.bf16.xpose.msra.mxu0 %v2200
        %2214 = vmatpush.bf16.xpose.msra.mxu0 %v2199
        %2215 = vmatmul.bf16.gmra.mxu0 %v2174
        %v2216 = vpop.f32.mrf.mxu0
        %v2217 = vadd.f32 0.0, %v2216
        %v2218 = vpop.f32.mrf.mxu0
        %v2219 = vadd.f32 0.0, %v2218
        %2220 = vdwg.mxu0
        %v2221 = vadd.f32 %v659, %v2217
        %v2222 = vadd.f32 %v660, %v2219
        %v2223 = vld [vmem:[%s18] sm:$0x1]
        %v2224 = vsel %vm662, %v2221, 0.0
        %2225 = vadd.xlane.f32.xlu0 %v2224
        %v2226 = vpop.xlane.xlu0 %2225
        %v2227 = vsel %vm662, %v2222, 0.0
        %2228 = vadd.xlane.f32.xlu0 %v2227
        %v2229 = vpop.xlane.xlu0 %2228
        %v2230 = vmul.f32 %v2226, %v675
        %v2231 = vmul.f32 %v2229, %v675
        %v2232 = vsub.f32 %v2221, %v2230
        %v2233 = vsub.f32 %v2222, %v2231
        %v2234 = vmul.f32 %v2232, %v2232
        %v2235 = vmul.f32 %v2233, %v2233
        %v2236 = vsel %vm662, %v2234, 0.0
        %2237 = vadd.xlane.f32.xlu0 %v2236
        %v2238 = vpop.xlane.xlu0 %2237
        %v2239 = vsel %vm662, %v2235, 0.0
        %2240 = vadd.xlane.f32.xlu0 %v2239
        %v2241 = vpop.xlane.xlu0 %2240
        %v2242 = vmul.f32 %v2238, %v675
        %v2243 = vmul.f32 %v2241, %v675
        %v2244 = vadd.f32 %v2242, 1e-05
        %v2245 = vadd.f32 %v2243, 1e-05
        %v2246 = vrsqrt.pop %v2244
        %v2247 = vmul.f32 %v2246, %v2244
        %v2248 = vmul.f32 %v2247, %v2246
        %v2249 = vmul.f32 0.5, %v2248
        %v2250 = vsub.f32 1.5, %v2249
        %v2251 = vmul.f32 %v2246, %v2250
        %vm2252 = vweird.f32 %v2244
        %vm2253 = vweird.f32 %v2246
        %vm2254 = vmor %vm2252, %vm2253
        %v2255 = vsel %vm2254, %v2246, %v2251
        %v2256 = vrsqrt.pop %v2245
        %v2257 = vmul.f32 %v2256, %v2245
        %v2258 = vmul.f32 %v2257, %v2256
        %v2259 = vmul.f32 0.5, %v2258
        %v2260 = vsub.f32 1.5, %v2259
        %v2261 = vmul.f32 %v2256, %v2260
        %vm2262 = vweird.f32 %v2245
        %vm2263 = vweird.f32 %v2256
        %vm2264 = vmor %vm2262, %vm2263
        %v2265 = vsel %vm2264, %v2256, %v2261
        %v2266 = vmul.f32 %v2232, %v2255
        %v2267 = vmul.f32 %v2233, %v2265
        %v2269 = vperm.slane %v2223, 0
        %v2271 = vmul.f32 %v2266, %v2269
        %v2272 = vmul.f32 %v2267, %v2269
        %v2273 = vpack.c.bf16 %v2272, %v2271
        %v2274 = vld [vmem:[%s19] sm:$0xf]
        %v2275 = vld [vmem:[%s19 + $0x4] sm:$0xf]
        %v2276 = vld [vmem:[%s19 + $0x8] sm:$0xf]
        %v2277 = vld [vmem:[%s19 + $0xc] sm:$0xf]
        %v2278 = vld [vmem:[%s19 + $0x10] sm:$0xf]
        %v2279 = vld [vmem:[%s19 + $0x14] sm:$0xf]
        %v2280 = vld [vmem:[%s19 + $0x18] sm:$0xf]
        %v2281 = vld [vmem:[%s19 + $0x1c] sm:$0xf]
        %v2282 = vld [vmem:[%s19 + $0x20] sm:$0xf]
        %v2283 = vld [vmem:[%s19 + $0x24] sm:$0xf]
        %v2284 = vld [vmem:[%s19 + $0x28] sm:$0xf]
        %v2285 = vld [vmem:[%s19 + $0x2c] sm:$0xf]
        %v2286 = vld [vmem:[%s19 + $0x30] sm:$0xf]
        %v2287 = vld [vmem:[%s19 + $0x34] sm:$0xf]
        %v2288 = vld [vmem:[%s19 + $0x38] sm:$0xf]
        %v2289 = vld [vmem:[%s19 + $0x3c] sm:$0xf]
        %v2290 = vld [vmem:[%s19 + $0x40] sm:$0xf]
        %v2291 = vld [vmem:[%s19 + $0x44] sm:$0xf]
        %v2292 = vld [vmem:[%s19 + $0x48] sm:$0xf]
        %v2293 = vld [vmem:[%s19 + $0x4c] sm:$0xf]
        %v2294 = vld [vmem:[%s19 + $0x50] sm:$0xf]
        %v2295 = vld [vmem:[%s19 + $0x54] sm:$0xf]
        %v2296 = vld [vmem:[%s19 + $0x58] sm:$0xf]
        %v2297 = vld [vmem:[%s19 + $0x5c] sm:$0xf]
        %v2298 = vld [vmem:[%s19 + $0x60] sm:$0xf]
        %v2299 = vld [vmem:[%s19 + $0x64] sm:$0xf]
        %v2300 = vld [vmem:[%s19 + $0x68] sm:$0xf]
        %v2301 = vld [vmem:[%s19 + $0x6c] sm:$0xf]
        %v2302 = vld [vmem:[%s19 + $0x70] sm:$0xf]
        %v2303 = vld [vmem:[%s19 + $0x74] sm:$0xf]
        %v2304 = vld [vmem:[%s19 + $0x78] sm:$0xf]
        %v2305 = vld [vmem:[%s19 + $0x7c] sm:$0xf]
        %v2338 = vunpack.c.l.b16 %v2274
        %v2339 = vunpack.c.l.b16 %v2275
        %v2340 = vunpack.c.l.b16 %v2276
        %v2341 = vunpack.c.l.b16 %v2277
        %v2342 = vunpack.c.l.b16 %v2278
        %v2343 = vunpack.c.l.b16 %v2279
        %v2344 = vunpack.c.l.b16 %v2280
        %v2345 = vunpack.c.l.b16 %v2281
        %v2346 = vunpack.c.l.b16 %v2282
        %v2347 = vunpack.c.l.b16 %v2283
        %v2348 = vunpack.c.l.b16 %v2284
        %v2349 = vunpack.c.l.b16 %v2285
        %v2350 = vunpack.c.l.b16 %v2286
        %v2351 = vunpack.c.l.b16 %v2287
        %v2352 = vunpack.c.l.b16 %v2288
        %v2353 = vunpack.c.l.b16 %v2289
        %v2354 = vunpack.c.l.b16 %v2290
        %v2355 = vunpack.c.l.b16 %v2291
        %v2356 = vunpack.c.l.b16 %v2292
        %v2357 = vunpack.c.l.b16 %v2293
        %v2358 = vunpack.c.l.b16 %v2294
        %v2359 = vunpack.c.l.b16 %v2295
        %v2360 = vunpack.c.l.b16 %v2296
        %v2361 = vunpack.c.l.b16 %v2297
        %v2362 = vunpack.c.l.b16 %v2298
        %v2363 = vunpack.c.l.b16 %v2299
        %v2364 = vunpack.c.l.b16 %v2300
        %v2365 = vunpack.c.l.b16 %v2301
        %v2366 = vunpack.c.l.b16 %v2302
        %v2367 = vunpack.c.l.b16 %v2303
        %v2368 = vunpack.c.l.b16 %v2304
        %v2369 = vunpack.c.l.b16 %v2305
        %v2370 = vpack.c.b16 %v2339, %v2338
        %v2371 = vpack.c.b16 %v2341, %v2340
        %v2372 = vpack.c.b16 %v2343, %v2342
        %v2373 = vpack.c.b16 %v2345, %v2344
        %v2374 = vpack.c.b16 %v2347, %v2346
        %v2375 = vpack.c.b16 %v2349, %v2348
        %v2376 = vpack.c.b16 %v2351, %v2350
        %v2377 = vpack.c.b16 %v2353, %v2352
        %v2378 = vpack.c.b16 %v2355, %v2354
        %v2379 = vpack.c.b16 %v2357, %v2356
        %v2380 = vpack.c.b16 %v2359, %v2358
        %v2381 = vpack.c.b16 %v2361, %v2360
        %v2382 = vpack.c.b16 %v2363, %v2362
        %v2383 = vpack.c.b16 %v2365, %v2364
        %v2384 = vpack.c.b16 %v2367, %v2366
        %v2385 = vpack.c.b16 %v2369, %v2368
        %v2387 = vsel %vm662, %v2273, 0
        %v2390 = vsel %vm662, %v2370, 0
        %v2393 = vsel %vm662, %v2371, 0
        %v2396 = vsel %vm662, %v2372, 0
        %v2399 = vsel %vm662, %v2373, 0
        %v2402 = vsel %vm662, %v2374, 0
        %v2405 = vsel %vm662, %v2375, 0
        %v2408 = vsel %vm662, %v2376, 0
        %v2411 = vsel %vm662, %v2377, 0
        %v2414 = vsel %vm662, %v2378, 0
        %v2417 = vsel %vm662, %v2379, 0
        %v2420 = vsel %vm662, %v2380, 0
        %v2423 = vsel %vm662, %v2381, 0
        %v2426 = vsel %vm662, %v2382, 0
        %v2429 = vsel %vm662, %v2383, 0
        %v2432 = vsel %vm662, %v2384, 0
        %v2435 = vsel %vm662, %v2385, 0
        %2437 = vmatpush.bf16.xpose.msra.mxu0 %v2411
        %2438 = vmatpush.bf16.xpose.msra.mxu0 %v2408
        %2439 = vmatpush.bf16.xpose.msra.mxu0 %v2405
        %2440 = vmatpush.bf16.xpose.msra.mxu0 %v2402
        %2441 = vmatpush.bf16.xpose.msra.mxu0 %v2399
        %2442 = vmatpush.bf16.xpose.msra.mxu0 %v2396
        %2443 = vmatpush.bf16.xpose.msra.mxu0 %v2393
        %2444 = vmatpush.bf16.xpose.msra.mxu0 %v2390
        %2445 = vmatmul.bf16.gmra.mxu0 %v2387
        %v2446 = vpop.f32.mrf.mxu0
        %v2447 = vadd.f32 0.0, %v2446
        %v2448 = vpop.f32.mrf.mxu0
        %v2449 = vadd.f32 0.0, %v2448
        %2450 = vdwg.mxu0
        %2451 = vmatpush.bf16.xpose.msra.mxu0 %v2435
        %2452 = vmatpush.bf16.xpose.msra.mxu0 %v2432
        %2453 = vmatpush.bf16.xpose.msra.mxu0 %v2429
        %2454 = vmatpush.bf16.xpose.msra.mxu0 %v2426
        %2455 = vmatpush.bf16.xpose.msra.mxu0 %v2423
        %2456 = vmatpush.bf16.xpose.msra.mxu0 %v2420
        %2457 = vmatpush.bf16.xpose.msra.mxu0 %v2417
        %2458 = vmatpush.bf16.xpose.msra.mxu0 %v2414
        %2459 = vmatmul.bf16.gmra.mxu0 %v2387
        %v2460 = vpop.f32.mrf.mxu0
        %v2461 = vadd.f32 0.0, %v2460
        %v2462 = vpop.f32.mrf.mxu0
        %v2463 = vadd.f32 0.0, %v2462
        %2464 = vdwg.mxu0
        %v2465 = vmul.f32 %v2447, 0.5
        %v2466 = vmul.f32 %v2449, 0.5
        %v2467 = vmul.f32 %v2447, 0.70710677
        %v2468 = vmul.f32 %v2449, 0.70710677
        %vm2469 = vcmp.ge.f32.partialorder %v2467, 0.0
        %vm2470 = vcmp.ge.f32.partialorder %v2468, 0.0
        %v2471 = vsel %vm2469, 1.0, -1.0
        %v2472 = vsel %vm2470, 1.0, -1.0
        %v2473 = vand.u32 2147483647, %v2467
        %v2474 = vand.u32 2147483647, %v2468
        %v2475 = vmul.f32 %v2473, 0.3275911
        %v2476 = vmul.f32 %v2474, 0.3275911
        %v2477 = vadd.f32 %v2475, 1.0
        %v2478 = vadd.f32 %v2476, 1.0
        %v2479 = vrcp.pop %v2477
        %v2480 = vmul.f32 %v2477, %v2479
        %v2481 = vsub.f32 1.0, %v2480
        %v2482 = vmul.f32 %v2479, %v2481
        %v2483 = vadd.f32 %v2479, %v2482
        %vm2484 = vweird.f32 %v2477
        %vm2485 = vweird.f32 %v2479
        %vm2486 = vmor %vm2484, %vm2485
        %v2487 = vsel %vm2486, %v2479, %v2483
        %v2488 = vand.u32 2147483647, %v2477
        %vm2489 = vcmp.eq.f32.partialorder %v2488, 8.507059e+37
        %v2490 = vand.u32 %v2477, 2147483648
        %v2491 = vor.u32 1.1754944e-38, %v2490
        %v2492 = vsel %vm2489, %v2491, %v2487
        %v2493 = vmul.f32 1.0, %v2492
        %v2494 = vrcp.pop %v2478
        %v2495 = vmul.f32 %v2478, %v2494
        %v2496 = vsub.f32 1.0, %v2495
        %v2497 = vmul.f32 %v2494, %v2496
        %v2498 = vadd.f32 %v2494, %v2497
        %vm2499 = vweird.f32 %v2478
        %vm2500 = vweird.f32 %v2494
        %vm2501 = vmor %vm2499, %vm2500
        %v2502 = vsel %vm2501, %v2494, %v2498
        %v2503 = vand.u32 2147483647, %v2478
        %vm2504 = vcmp.eq.f32.partialorder %v2503, 8.507059e+37
        %v2505 = vand.u32 %v2478, 2147483648
        %v2506 = vor.u32 1.1754944e-38, %v2505
        %v2507 = vsel %vm2504, %v2506, %v2502
        %v2508 = vmul.f32 1.0, %v2507
        %v2509 = vmul.f32 %v2493, 1.0614054
        %v2510 = vmul.f32 %v2508, 1.0614054
        %v2511 = vadd.f32 %v2509, -1.4531521
        %v2512 = vadd.f32 %v2510, -1.4531521
        %v2513 = vmul.f32 %v2511, %v2493
        %v2514 = vmul.f32 %v2512, %v2508
        %v2515 = vadd.f32 %v2513, 1.4214138
        %v2516 = vadd.f32 %v2514, 1.4214138
        %v2517 = vmul.f32 %v2515, %v2493
        %v2518 = vmul.f32 %v2516, %v2508
        %v2519 = vadd.f32 %v2517, -0.28449672
        %v2520 = vadd.f32 %v2518, -0.28449672
        %v2521 = vmul.f32 %v2519, %v2493
        %v2522 = vmul.f32 %v2520, %v2508
        %v2523 = vadd.f32 %v2521, 0.2548296
        %v2524 = vadd.f32 %v2522, 0.2548296
        %v2525 = vmul.f32 %v2523, %v2493
        %v2526 = vmul.f32 %v2524, %v2508
        %v2527 = vsub.f32 0.0, %v2473
        %v2528 = vsub.f32 0.0, %v2474
        %v2529 = vmul.f32 %v2527, %v2473
        %v2530 = vmul.f32 %v2528, %v2474
        %v2531 = vmul.f32 %v2529, 1.442695
        %v2532 = vpow.pop %v2531
        %v2533 = vmul.f32 %v2530, 1.442695
        %v2534 = vpow.pop %v2533
        %v2535 = vmul.f32 %v2525, %v2532
        %v2536 = vmul.f32 %v2526, %v2534
        %v2537 = vsub.f32 1.0, %v2535
        %v2538 = vsub.f32 1.0, %v2536
        %v2539 = vmul.f32 %v2471, %v2537
        %v2540 = vmul.f32 %v2472, %v2538
        %v2541 = vadd.f32 %v2539, 1.0
        %v2542 = vadd.f32 %v2540, 1.0
        %v2543 = vmul.f32 %v2465, %v2541
        %v2544 = vmul.f32 %v2466, %v2542
        %v2545 = vmul.f32 %v2543, %v2461
        %v2546 = vmul.f32 %v2544, %v2463
        %v2547 = vpack.c.bf16 %v2546, %v2545
        %v2548 = vld [vmem:[%s20] sm:$0xf]
        %v2549 = vld [vmem:[%s20 + $0x4] sm:$0xf]
        %v2550 = vld [vmem:[%s20 + $0x8] sm:$0xf]
        %v2551 = vld [vmem:[%s20 + $0xc] sm:$0xf]
        %v2552 = vld [vmem:[%s20 + $0x10] sm:$0xf]
        %v2553 = vld [vmem:[%s20 + $0x14] sm:$0xf]
        %v2554 = vld [vmem:[%s20 + $0x18] sm:$0xf]
        %v2555 = vld [vmem:[%s20 + $0x1c] sm:$0xf]
        %v2564 = vunpack.c.l.b16 %v2548
        %v2565 = vunpack.c.l.b16 %v2549
        %v2566 = vunpack.c.l.b16 %v2550
        %v2567 = vunpack.c.l.b16 %v2551
        %v2568 = vunpack.c.l.b16 %v2552
        %v2569 = vunpack.c.l.b16 %v2553
        %v2570 = vunpack.c.l.b16 %v2554
        %v2571 = vunpack.c.l.b16 %v2555
        %v2572 = vpack.c.b16 %v2565, %v2564
        %v2573 = vpack.c.b16 %v2567, %v2566
        %v2574 = vpack.c.b16 %v2569, %v2568
        %v2575 = vpack.c.b16 %v2571, %v2570
        %2580 = vmatpush.bf16.xpose.msra.mxu0 0
        %2581 = vmatpush.bf16.xpose.msra.mxu0 0
        %2582 = vmatpush.bf16.xpose.msra.mxu0 0
        %2583 = vmatpush.bf16.xpose.msra.mxu0 0
        %2584 = vmatpush.bf16.xpose.msra.mxu0 %v2575
        %2585 = vmatpush.bf16.xpose.msra.mxu0 %v2574
        %2586 = vmatpush.bf16.xpose.msra.mxu0 %v2573
        %2587 = vmatpush.bf16.xpose.msra.mxu0 %v2572
        %2588 = vmatmul.bf16.gmra.mxu0 %v2547
        %v2589 = vpop.f32.mrf.mxu0
        %v2590 = vadd.f32 0.0, %v2589
        %v2591 = vpop.f32.mrf.mxu0
        %v2592 = vadd.f32 0.0, %v2591
        %2593 = vdwg.mxu0
        %v2594 = vadd.f32 %v2221, %v2590
        %v2595 = vadd.f32 %v2222, %v2592
        %2596 = vst.msk [vmem:[%s650] sm:$0xff] %vm662, %v2594
        %2597 = vst.msk [vmem:[%s650 + $0x8] sm:$0xff] %vm662, %v2595
        %s2598 = sand.u32 %s489, 1
        %s2599 = scalar_lea.sflag [#allocation4], %s2598
        %s2600 = sand.u32 %s489, 1
        %s2601 = smul.addr %s2600, 16
        %s2602 = scalar_lea.vmem [#allocation3], %s2601
        // Predicated region
        $region105: #{tpu_custom_call.1} parent=103 // pred_check
          %p2603 = pneg %p499
        $region106: #{tpu_custom_call.1} parent=103 // pred_check_branch
          %2605 = sbr.rel (%p2603) target = $region108
        $region107: #{tpu_custom_call.1} parent=103 // pred_region
          %s2606 = smul.u32 2, %s35
          %2608 = vsyncadd %s2599, 0
          %s2609 = smul.addr %s2606, 8
          %s2610 = scalar_lea.hbm %s21, %s2609
          %s2611 = sshll.u32 %s2602, 4
          %s2612 = int_to_ptr.vmem [resolvable:$true] %s2611
          %s2613 = sshll.u32 %s2610, 4
          %s2614 = int_to_ptr.hbm [resolvable:$true] %s2613
          %2619 = dma.vmem_to_hbm [thread:$0]  %s2612, 256, %s2614, %s2599, 128, 128, 8
        $region108: #{tpu_custom_call.1} parent=103 // pred_fallthru
          _
      $region104: #{tpu_custom_call.1} parent=5 // pred_fallthru
        _
      %p2620 = scmp.le.s32.totalorder 2, %s30
      // Predicated region
      $region109: #{tpu_custom_call.1} parent=5 // pred_check
        %p2621 = pneg %p2620
      $region110: #{tpu_custom_call.1} parent=5 // pred_check_branch
        %2623 = sbr.rel (%p2621) target = $region112
      $region111: #{tpu_custom_call.1} parent=5 // pred_region
        %s2624 = ssub.s32 %s30, 2
        // Predicated region
        $region113: #{tpu_custom_call.1} parent=111 // pred_check
          %p2625 = pneg %p505
        $region114: #{tpu_custom_call.1} parent=111 // pred_check_branch
          %2627 = sbr.rel (%p2625) target = $region116
        $region115: #{tpu_custom_call.1} parent=111 // pred_region
          %s2628 = sand.u32 %s490, 1
          %s2629 = scalar_lea.sflag [#allocation4], %s2628
          %s2630 = sand.u32 %s490, 1
          %s2631 = smul.addr %s2630, 16
          %s2632 = scalar_lea.vmem [#allocation3], %s2631
          %2634 = dma.done %s2629, 256
        $region116: #{tpu_custom_call.1} parent=111 // pred_fallthru
          _
      $region112: #{tpu_custom_call.1} parent=5 // pred_fallthru
        _
    $region6: #{tpu_custom_call.1} parent=1 // loop_footer
      %s34 = sadd.s32 1, %s30
    $region7: #{tpu_custom_call.1} parent=1 // loop_footer_branch
      %29 = sbr.rel target = $region3
    $region8: #{tpu_custom_call.1} parent=1 // loop_exit
      _
    %2635 = vsyncpa [#allocation4], 1
    %s2636 = scalar_lea.sflag [#allocation4], 1
    %2637 = vsyncpa %s2636, 1

</llo_original>
